<compile_context>
chip_gen: v7x
topology: tpu7x:2x2x1
jax: 0.10.0
libtpu: 0.0.40
codegen_flags: <defaults>
</compile_context>

<pallas_src>
import jax
import jax.numpy as jnp
import numpy as np
from jax.experimental import pallas as pl
from jax.experimental.pallas import tpu as pltpu

# ----------------------------- model config ---------------------------------
VOCAB_SIZE = 64
EMBED_DIM = 32
HIDDEN_DIM = 32
NLAYERS = 2
PADDING_IDX = 0
BS = 2
QS = 8


# ----------------------------- Pallas kernel --------------------------------
def fused_lstm_decoder_kernel(tok_ref, emb_ref, *refs):
    """Embedding gather + all LSTM layers + decoder head, one invocation.

    Argument order (after tok_ref, emb_ref):
      wx_0, wh_0, b_0, ..., wx_{L-1}, wh_{L-1}, b_{L-1}, h0, c0, w_dec   (in)
      logits, h_n, c_n                                                   (out)
    with gate columns in PyTorch order [i | f | g | o] and b_l = b_ih + b_hh.
    tok_ref holds TIME-major flat token ids (row = t*bs + b).
    logits are emitted BATCH-major (row = b*(qs-1) + t), matching
    out[:, :-1].reshape(bs*(qs-1), -1) of the reference module.
    """
    nl = (len(refs) - 6) // 3
    wx_refs = [refs[3 * l + 0] for l in range(nl)]
    wh_refs = [refs[3 * l + 1] for l in range(nl)]
    b_refs = [refs[3 * l + 2] for l in range(nl)]
    h0_ref, c0_ref, wdec_ref = refs[3 * nl], refs[3 * nl + 1], refs[3 * nl + 2]
    logits_ref, hN_ref, cN_ref = refs[3 * nl + 3], refs[3 * nl + 4], refs[3 * nl + 5]

    _, bs, H = h0_ref.shape
    V = emb_ref.shape[0]
    qs = tok_ref.shape[0] // bs

    # ---- in-kernel embedding gather via one-hot matmul (MXU is ~idle) ------
    tok = tok_ref[...]                                            # (qs*bs, 1) i32
    onehot = (tok == jax.lax.broadcasted_iota(jnp.int32, (qs * bs, V), 1)
              ).astype(jnp.float32)                               # (qs*bs, V)

    # ---- layer-0 input projections for the whole sequence, off the chain ---
    #   onehot @ (emb @ Wx0) + b0  ==  x_all @ Wx0 + b0   (exact: onehot rows)
    emb_proj = jnp.dot(emb_ref[...], wx_refs[0][...],
                       preferred_element_type=jnp.float32)        # (V, 4H)
    x0_gates = jnp.dot(onehot, emb_proj,
                       preferred_element_type=jnp.float32) + b_refs[0][...]  # (qs*bs, 4H)

    h = [h0_ref[l] for l in range(nl)]
    c = [c0_ref[l] for l in range(nl)]
    h_outs = []                                                   # last-layer h per step

    # Statically unrolled time loop: per step, layer 0 costs only ONE matmul
    # (h @ W_hh) on the serial chain; deeper layers cost two (no lane concat).
    for t in range(qs):
        inp = None
        for l in range(nl):
            if l == 0:
                gates = x0_gates[t * bs:(t + 1) * bs, :] + jnp.dot(
                    h[0], wh_refs[0][...], preferred_element_type=jnp.float32)
            else:
                gates = (jnp.dot(inp, wx_refs[l][...],
                                 preferred_element_type=jnp.float32)
                         + jnp.dot(h[l], wh_refs[l][...],
                                   preferred_element_type=jnp.float32)
                         + b_refs[l][...])
            sig = jax.nn.sigmoid(gates)                           # one EUP pass on slab
            i_g = sig[:, 0:H]                                     # gate order i|f|g|o
            f_g = sig[:, H:2 * H]
            o_g = sig[:, 3 * H:4 * H]
            g_g = jnp.tanh(gates[:, 2 * H:3 * H])
            c[l] = f_g * c[l] + i_g * g_g
            h[l] = o_g * jnp.tanh(c[l])
            inp = h[l]
        if t < qs - 1:                                            # out[:, :-1] head
            h_outs.append(h[nl - 1])

    # ---- batched decoder projection: ONE matmul, ONE lane-dense-ish store --
    # Batch-major row order b*(qs-1)+t so the wrapper needs no relayout.
    dec_in = jnp.concatenate(
        [h_outs[t][b:b + 1, :] for b in range(bs) for t in range(qs - 1)], axis=0)
    logits_ref[...] = jnp.dot(dec_in, wdec_ref[...],
                              preferred_element_type=jnp.float32)

    for l in range(nl):
        hN_ref[l] = h[l]
        cN_ref[l] = c[l]


# ----------------------------- wrapper ---------------------------------------
def fused_forward(tokens_tm, emb, wxs, whs, bs_, h0, c0, w_dec):
    """tokens_tm: (qs*bs, 1) int32 time-major ids. Returns (logits, h_n, c_n)."""
    nl = len(wxs)
    bsz = h0.shape[1]
    qs = tokens_tm.shape[0] // bsz
    H = h0.shape[2]
    V = w_dec.shape[1]

    flat_in = [tokens_tm, emb]
    for l in range(nl):
        flat_in += [wxs[l], whs[l], bs_[l]]
    flat_in += [h0, c0, w_dec]

    vmem = lambda: pl.BlockSpec(memory_space=pltpu.MemorySpace.VMEM)
    out_shape = (jax.ShapeDtypeStruct((bsz * (qs - 1), V), jnp.float32),
                 jax.ShapeDtypeStruct((nl, bsz, H), jnp.float32),
                 jax.ShapeDtypeStruct((nl, bsz, H), jnp.float32))

    # No grid: single invocation, everything (~40 KiB) VMEM resident.
    return pl.pallas_call(
        fused_lstm_decoder_kernel,
        out_shape=out_shape,
        in_specs=[vmem() for _ in flat_in],
        out_specs=(vmem(), vmem(), vmem()),
    )(*flat_in)


@jax.jit
def rnn_model_forward(params, dec_input, h0, c0):
    """Matches RNNModel.forward with experimental_loss=0 (Linear, no bias)."""
    bs, qs = dec_input.shape
    # Only a 64-byte int relayout stays outside the kernel; the embedding
    # gather, both LSTM layers and the decoder head run in ONE pallas_call,
    # and the logits come back already batch-major (bs*(qs-1), V).
    tokens_tm = dec_input.T.reshape(qs * bs, 1).astype(jnp.int32)
    logits, h_n, c_n = fused_forward(
        tokens_tm, params["embedding"], params["wx"], params["wh"],
        params["b"], h0, c0, params["w_dec"])
    return logits, (h_n, c_n)


# ----------------------------- pure-JAX reference ----------------------------
def ref_forward(params, dec_input, h0, c0):
    bs, qs = dec_input.shape
    H = HIDDEN_DIM
    x = jnp.take(params["embedding"], dec_input, axis=0).astype(jnp.float32)
    x = jnp.transpose(x, (1, 0, 2))                               # (qs, bs, E)
    hs, cs = [], []
    for l in range(NLAYERS):
        wx, wh, b = params["wx"][l], params["wh"][l], params["b"][l]

        def step(carry, x_t, wx=wx, wh=wh, b=b):
            h, c = carry
            g = x_t @ wx + h @ wh + b
            i = jax.nn.sigmoid(g[:, 0:H])
            f = jax.nn.sigmoid(g[:, H:2 * H])
            gg = jnp.tanh(g[:, 2 * H:3 * H])
            o = jax.nn.sigmoid(g[:, 3 * H:4 * H])
            c = f * c + i * gg
            h = o * jnp.tanh(c)
            return (h, c), h

        (h, c), ys = jax.lax.scan(step, (h0[l], c0[l]), x)
        x = ys
        hs.append(h)
        cs.append(c)
    out = jnp.transpose(x, (1, 0, 2))[:, :-1].reshape(bs * (qs - 1), H)
    return out @ params["w_dec"], (jnp.stack(hs), jnp.stack(cs))


# ----------------------------- parameter init --------------------------------
def init_params(key):
    keys = jax.random.split(key, 2 + 4 * NLAYERS)
    initrange = 0.1
    emb = jax.random.uniform(keys[0], (VOCAB_SIZE, EMBED_DIM),
                             jnp.float32, -initrange, initrange)
    emb = emb.at[PADDING_IDX].set(0.0)                  # padding_idx row zeroed

    stdv = 1.0 / np.sqrt(HIDDEN_DIM)
    wxs, whs, bs_ = [], [], []
    for l in range(NLAYERS):
        in_dim = EMBED_DIM if l == 0 else HIDDEN_DIM
        k1, k2, k3, k4 = keys[2 + 4 * l: 6 + 4 * l]
        # W_ih / W_hh kept separate (no lane concat in the kernel),
        # gate columns ordered [i | f | g | o]; fused bias b_ih + b_hh.
        # TODO(synk): real PyTorch weight_ih_l*/weight_hh_l* are (4H, in) and
        # must be transposed to (in, 4H) before use here.
        wxs.append(jax.random.uniform(k1, (in_dim, 4 * HIDDEN_DIM),
                                      jnp.float32, -stdv, stdv))
        whs.append(jax.random.uniform(k2, (HIDDEN_DIM, 4 * HIDDEN_DIM),
                                      jnp.float32, -stdv, stdv))
        b_ih = jax.random.uniform(k3, (1, 4 * HIDDEN_DIM), jnp.float32, -stdv, stdv)
        b_hh = jax.random.uniform(k4, (1, 4 * HIDDEN_DIM), jnp.float32, -stdv, stdv)
        bs_.append(b_ih + b_hh)
    w_dec = jax.random.uniform(keys[1], (HIDDEN_DIM, VOCAB_SIZE),
                               jnp.float32, -stdv, stdv)
    return {"embedding": emb, "wx": wxs, "wh": whs, "b": bs_, "w_dec": w_dec}


# ----------------------------- main ------------------------------------------
if __name__ == "__main__":
    key = jax.random.PRNGKey(0)
    pkey, dkey = jax.random.split(key)
    params = init_params(pkey)

    dec_input = jax.random.randint(dkey, (BS, QS), 0, VOCAB_SIZE, jnp.int32)
    # dec_output is only consumed by the factorized-softmax losses
    # (experimental_loss in {1,2,3}); with the plain Linear head it is unused.
    dec_output = jax.random.randint(dkey, (BS, QS - 1), 0, VOCAB_SIZE, jnp.int32)

    # init_hidden(bsz) equivalent: zeros (nlayers, bs, hidden)
    h0 = jnp.zeros((NLAYERS, BS, HIDDEN_DIM), jnp.float32)
    c0 = jnp.zeros((NLAYERS, BS, HIDDEN_DIM), jnp.float32)

    logits, (h_n, c_n) = rnn_model_forward(params, dec_input, h0, c0)
    jax.block_until_ready((logits, h_n, c_n))

    ref_logits, (ref_h, ref_c) = ref_forward(params, dec_input, h0, c0)
    np.testing.assert_allclose(np.asarray(logits), np.asarray(ref_logits),
                               rtol=2e-3, atol=2e-3)
    np.testing.assert_allclose(np.asarray(h_n), np.asarray(ref_h),
                               rtol=2e-3, atol=2e-3)
    np.testing.assert_allclose(np.asarray(c_n), np.asarray(ref_c),
                               rtol=2e-3, atol=2e-3)

    assert logits.shape == (BS * (QS - 1), VOCAB_SIZE)
    assert h_n.shape == (NLAYERS, BS, HIDDEN_DIM)
    assert c_n.shape == (NLAYERS, BS, HIDDEN_DIM)
    print("KERNEL_OK")
</pallas_src>

<mosaic_0001>
module attributes {stable_mosaic.version = 11 : i64} {
  func.func @fused_lstm_decoder_kernel(%arg0: memref<16x1xi32, #tpu.memory_space<vmem>>, %arg1: memref<64x32xf32, #tpu.memory_space<vmem>>, %arg2: memref<32x128xf32, #tpu.memory_space<vmem>>, %arg3: memref<32x128xf32, #tpu.memory_space<vmem>>, %arg4: memref<1x128xf32, #tpu.memory_space<vmem>>, %arg5: memref<32x128xf32, #tpu.memory_space<vmem>>, %arg6: memref<32x128xf32, #tpu.memory_space<vmem>>, %arg7: memref<1x128xf32, #tpu.memory_space<vmem>>, %arg8: memref<2x2x32xf32, #tpu.memory_space<vmem>>, %arg9: memref<2x2x32xf32, #tpu.memory_space<vmem>>, %arg10: memref<32x64xf32, #tpu.memory_space<vmem>>, %arg11: memref<14x64xf32, #tpu.memory_space<vmem>>, %arg12: memref<2x2x32xf32, #tpu.memory_space<vmem>>, %arg13: memref<2x2x32xf32, #tpu.memory_space<vmem>>) attributes {dimension_semantics = [], scalar_prefetch = 0 : i64, scratch_operands = 0 : i64, tpu.core_type = #tpu.core_type<tc>} {
    %c0 = arith.constant 0 : index
    %c0_0 = arith.constant 0 : index
    %0 = vector.load %arg0[%c0, %c0_0] : memref<16x1xi32, #tpu.memory_space<vmem>>, vector<16x1xi32>
    %1 = tpu.iota {dimensions = array<i32: 1>} : vector<16x64xi32>
    %2 = vector.broadcast %0 : vector<16x1xi32> to vector<16x64xi32>
    %3 = arith.cmpi eq, %2, %1 : vector<16x64xi32>
    %4 = arith.extui %3 : vector<16x64xi1> to vector<16x64xi32>
    %5 = arith.sitofp %4 : vector<16x64xi32> to vector<16x64xf32>
    %c0_1 = arith.constant 0 : index
    %c0_2 = arith.constant 0 : index
    %6 = vector.load %arg1[%c0_1, %c0_2] : memref<64x32xf32, #tpu.memory_space<vmem>>, vector<64x32xf32>
    %c0_3 = arith.constant 0 : index
    %c0_4 = arith.constant 0 : index
    %7 = vector.load %arg2[%c0_3, %c0_4] : memref<32x128xf32, #tpu.memory_space<vmem>>, vector<32x128xf32>
    %cst = arith.constant dense<0.000000e+00> : vector<64x128xf32>
    %8 = tpu.matmul %6, %7, %cst {dimension_numbers = #tpu.dot_dimension_numbers<[1], [0], [0], [1], [0, 0, 1, 1], [], []>} : vector<64x32xf32>, vector<32x128xf32>, vector<64x128xf32> -> vector<64x128xf32>
    %cst_5 = arith.constant dense<0.000000e+00> : vector<16x128xf32>
    %9 = tpu.matmul %5, %8, %cst_5 {dimension_numbers = #tpu.dot_dimension_numbers<[1], [0], [0], [1], [0, 0, 1, 1], [], []>} : vector<16x64xf32>, vector<64x128xf32>, vector<16x128xf32> -> vector<16x128xf32>
    %c0_6 = arith.constant 0 : index
    %c0_7 = arith.constant 0 : index
    %10 = vector.load %arg4[%c0_6, %c0_7] : memref<1x128xf32, #tpu.memory_space<vmem>>, vector<1x128xf32>
    %11 = vector.broadcast %10 : vector<1x128xf32> to vector<16x128xf32>
    %12 = arith.addf %9, %11 : vector<16x128xf32>
    %c0_8 = arith.constant 0 : index
    %c0_9 = arith.constant 0 : index
    %c0_10 = arith.constant 0 : index
    %13 = vector.load %arg8[%c0_8, %c0_9, %c0_10] : memref<2x2x32xf32, #tpu.memory_space<vmem>>, vector<1x2x32xf32>
    %14 = vector.shape_cast %13 : vector<1x2x32xf32> to vector<2x32xf32>
    %c1 = arith.constant 1 : index
    %c0_11 = arith.constant 0 : index
    %c0_12 = arith.constant 0 : index
    %15 = vector.load %arg8[%c1, %c0_11, %c0_12] : memref<2x2x32xf32, #tpu.memory_space<vmem>>, vector<1x2x32xf32>
    %16 = vector.shape_cast %15 : vector<1x2x32xf32> to vector<2x32xf32>
    %c0_13 = arith.constant 0 : index
    %c0_14 = arith.constant 0 : index
    %c0_15 = arith.constant 0 : index
    %17 = vector.load %arg9[%c0_13, %c0_14, %c0_15] : memref<2x2x32xf32, #tpu.memory_space<vmem>>, vector<1x2x32xf32>
    %18 = vector.shape_cast %17 : vector<1x2x32xf32> to vector<2x32xf32>
    %c1_16 = arith.constant 1 : index
    %c0_17 = arith.constant 0 : index
    %c0_18 = arith.constant 0 : index
    %19 = vector.load %arg9[%c1_16, %c0_17, %c0_18] : memref<2x2x32xf32, #tpu.memory_space<vmem>>, vector<1x2x32xf32>
    %20 = vector.shape_cast %19 : vector<1x2x32xf32> to vector<2x32xf32>
    %21 = vector.extract_strided_slice %12 {offsets = [0, 0], sizes = [2, 128], strides = [1, 1]} : vector<16x128xf32> to vector<2x128xf32>
    %c0_19 = arith.constant 0 : index
    %c0_20 = arith.constant 0 : index
    %22 = vector.load %arg3[%c0_19, %c0_20] : memref<32x128xf32, #tpu.memory_space<vmem>>, vector<32x128xf32>
    %cst_21 = arith.constant dense<0.000000e+00> : vector<2x128xf32>
    %23 = tpu.matmul %14, %22, %cst_21 {dimension_numbers = #tpu.dot_dimension_numbers<[1], [0], [0], [1], [0, 0, 1, 1], [], []>} : vector<2x32xf32>, vector<32x128xf32>, vector<2x128xf32> -> vector<2x128xf32>
    %24 = arith.addf %21, %23 : vector<2x128xf32>
    %25 = arith.negf %24 : vector<2x128xf32>
    %26 = math.exp %25 : vector<2x128xf32>
    %cst_22 = arith.constant 1.000000e+00 : f32
    %27 = vector.broadcast %cst_22 : f32 to vector<2x128xf32>
    %28 = arith.addf %27, %26 : vector<2x128xf32>
    %29 = arith.divf %27, %28 : vector<2x128xf32>
    %30 = vector.extract_strided_slice %29 {offsets = [0, 0], sizes = [2, 32], strides = [1, 1]} : vector<2x128xf32> to vector<2x32xf32>
    %31 = vector.extract_strided_slice %29 {offsets = [0, 32], sizes = [2, 32], strides = [1, 1]} : vector<2x128xf32> to vector<2x32xf32>
    %32 = vector.extract_strided_slice %29 {offsets = [0, 96], sizes = [2, 32], strides = [1, 1]} : vector<2x128xf32> to vector<2x32xf32>
    %33 = vector.extract_strided_slice %24 {offsets = [0, 64], sizes = [2, 32], strides = [1, 1]} : vector<2x128xf32> to vector<2x32xf32>
    %34 = math.tanh %33 : vector<2x32xf32>
    %35 = arith.mulf %31, %18 : vector<2x32xf32>
    %36 = arith.mulf %30, %34 : vector<2x32xf32>
    %37 = arith.addf %35, %36 : vector<2x32xf32>
    %38 = math.tanh %37 : vector<2x32xf32>
    %39 = arith.mulf %32, %38 : vector<2x32xf32>
    %c0_23 = arith.constant 0 : index
    %c0_24 = arith.constant 0 : index
    %40 = vector.load %arg5[%c0_23, %c0_24] : memref<32x128xf32, #tpu.memory_space<vmem>>, vector<32x128xf32>
    %cst_25 = arith.constant dense<0.000000e+00> : vector<2x128xf32>
    %41 = tpu.matmul %39, %40, %cst_25 {dimension_numbers = #tpu.dot_dimension_numbers<[1], [0], [0], [1], [0, 0, 1, 1], [], []>} : vector<2x32xf32>, vector<32x128xf32>, vector<2x128xf32> -> vector<2x128xf32>
    %c0_26 = arith.constant 0 : index
    %c0_27 = arith.constant 0 : index
    %42 = vector.load %arg6[%c0_26, %c0_27] : memref<32x128xf32, #tpu.memory_space<vmem>>, vector<32x128xf32>
    %cst_28 = arith.constant dense<0.000000e+00> : vector<2x128xf32>
    %43 = tpu.matmul %16, %42, %cst_28 {dimension_numbers = #tpu.dot_dimension_numbers<[1], [0], [0], [1], [0, 0, 1, 1], [], []>} : vector<2x32xf32>, vector<32x128xf32>, vector<2x128xf32> -> vector<2x128xf32>
    %44 = arith.addf %41, %43 : vector<2x128xf32>
    %c0_29 = arith.constant 0 : index
    %c0_30 = arith.constant 0 : index
    %45 = vector.load %arg7[%c0_29, %c0_30] : memref<1x128xf32, #tpu.memory_space<vmem>>, vector<1x128xf32>
    %46 = vector.broadcast %45 : vector<1x128xf32> to vector<2x128xf32>
    %47 = arith.addf %44, %46 : vector<2x128xf32>
    %48 = arith.negf %47 : vector<2x128xf32>
    %49 = math.exp %48 : vector<2x128xf32>
    %cst_31 = arith.constant 1.000000e+00 : f32
    %50 = vector.broadcast %cst_31 : f32 to vector<2x128xf32>
    %51 = arith.addf %50, %49 : vector<2x128xf32>
    %52 = arith.divf %50, %51 : vector<2x128xf32>
    %53 = vector.extract_strided_slice %52 {offsets = [0, 0], sizes = [2, 32], strides = [1, 1]} : vector<2x128xf32> to vector<2x32xf32>
    %54 = vector.extract_strided_slice %52 {offsets = [0, 32], sizes = [2, 32], strides = [1, 1]} : vector<2x128xf32> to vector<2x32xf32>
    %55 = vector.extract_strided_slice %52 {offsets = [0, 96], sizes = [2, 32], strides = [1, 1]} : vector<2x128xf32> to vector<2x32xf32>
    %56 = vector.extract_strided_slice %47 {offsets = [0, 64], sizes = [2, 32], strides = [1, 1]} : vector<2x128xf32> to vector<2x32xf32>
    %57 = math.tanh %56 : vector<2x32xf32>
    %58 = arith.mulf %54, %20 : vector<2x32xf32>
    %59 = arith.mulf %53, %57 : vector<2x32xf32>
    %60 = arith.addf %58, %59 : vector<2x32xf32>
    %61 = math.tanh %60 : vector<2x32xf32>
    %62 = arith.mulf %55, %61 : vector<2x32xf32>
    %63 = vector.extract_strided_slice %12 {offsets = [2, 0], sizes = [2, 128], strides = [1, 1]} : vector<16x128xf32> to vector<2x128xf32>
    %c0_32 = arith.constant 0 : index
    %c0_33 = arith.constant 0 : index
    %64 = vector.load %arg3[%c0_32, %c0_33] : memref<32x128xf32, #tpu.memory_space<vmem>>, vector<32x128xf32>
    %cst_34 = arith.constant dense<0.000000e+00> : vector<2x128xf32>
    %65 = tpu.matmul %39, %64, %cst_34 {dimension_numbers = #tpu.dot_dimension_numbers<[1], [0], [0], [1], [0, 0, 1, 1], [], []>} : vector<2x32xf32>, vector<32x128xf32>, vector<2x128xf32> -> vector<2x128xf32>
    %66 = arith.addf %63, %65 : vector<2x128xf32>
    %67 = arith.negf %66 : vector<2x128xf32>
    %68 = math.exp %67 : vector<2x128xf32>
    %cst_35 = arith.constant 1.000000e+00 : f32
    %69 = vector.broadcast %cst_35 : f32 to vector<2x128xf32>
    %70 = arith.addf %69, %68 : vector<2x128xf32>
    %71 = arith.divf %69, %70 : vector<2x128xf32>
    %72 = vector.extract_strided_slice %71 {offsets = [0, 0], sizes = [2, 32], strides = [1, 1]} : vector<2x128xf32> to vector<2x32xf32>
    %73 = vector.extract_strided_slice %71 {offsets = [0, 32], sizes = [2, 32], strides = [1, 1]} : vector<2x128xf32> to vector<2x32xf32>
    %74 = vector.extract_strided_slice %71 {offsets = [0, 96], sizes = [2, 32], strides = [1, 1]} : vector<2x128xf32> to vector<2x32xf32>
    %75 = vector.extract_strided_slice %66 {offsets = [0, 64], sizes = [2, 32], strides = [1, 1]} : vector<2x128xf32> to vector<2x32xf32>
    %76 = math.tanh %75 : vector<2x32xf32>
    %77 = arith.mulf %73, %37 : vector<2x32xf32>
    %78 = arith.mulf %72, %76 : vector<2x32xf32>
    %79 = arith.addf %77, %78 : vector<2x32xf32>
    %80 = math.tanh %79 : vector<2x32xf32>
    %81 = arith.mulf %74, %80 : vector<2x32xf32>
    %c0_36 = arith.constant 0 : index
    %c0_37 = arith.constant 0 : index
    %82 = vector.load %arg5[%c0_36, %c0_37] : memref<32x128xf32, #tpu.memory_space<vmem>>, vector<32x128xf32>
    %cst_38 = arith.constant dense<0.000000e+00> : vector<2x128xf32>
    %83 = tpu.matmul %81, %82, %cst_38 {dimension_numbers = #tpu.dot_dimension_numbers<[1], [0], [0], [1], [0, 0, 1, 1], [], []>} : vector<2x32xf32>, vector<32x128xf32>, vector<2x128xf32> -> vector<2x128xf32>
    %c0_39 = arith.constant 0 : index
    %c0_40 = arith.constant 0 : index
    %84 = vector.load %arg6[%c0_39, %c0_40] : memref<32x128xf32, #tpu.memory_space<vmem>>, vector<32x128xf32>
    %cst_41 = arith.constant dense<0.000000e+00> : vector<2x128xf32>
    %85 = tpu.matmul %62, %84, %cst_41 {dimension_numbers = #tpu.dot_dimension_numbers<[1], [0], [0], [1], [0, 0, 1, 1], [], []>} : vector<2x32xf32>, vector<32x128xf32>, vector<2x128xf32> -> vector<2x128xf32>
    %86 = arith.addf %83, %85 : vector<2x128xf32>
    %c0_42 = arith.constant 0 : index
    %c0_43 = arith.constant 0 : index
    %87 = vector.load %arg7[%c0_42, %c0_43] : memref<1x128xf32, #tpu.memory_space<vmem>>, vector<1x128xf32>
    %88 = vector.broadcast %87 : vector<1x128xf32> to vector<2x128xf32>
    %89 = arith.addf %86, %88 : vector<2x128xf32>
    %90 = arith.negf %89 : vector<2x128xf32>
    %91 = math.exp %90 : vector<2x128xf32>
    %cst_44 = arith.constant 1.000000e+00 : f32
    %92 = vector.broadcast %cst_44 : f32 to vector<2x128xf32>
    %93 = arith.addf %92, %91 : vector<2x128xf32>
    %94 = arith.divf %92, %93 : vector<2x128xf32>
    %95 = vector.extract_strided_slice %94 {offsets = [0, 0], sizes = [2, 32], strides = [1, 1]} : vector<2x128xf32> to vector<2x32xf32>
    %96 = vector.extract_strided_slice %94 {offsets = [0, 32], sizes = [2, 32], strides = [1, 1]} : vector<2x128xf32> to vector<2x32xf32>
    %97 = vector.extract_strided_slice %94 {offsets = [0, 96], sizes = [2, 32], strides = [1, 1]} : vector<2x128xf32> to vector<2x32xf32>
    %98 = vector.extract_strided_slice %89 {offsets = [0, 64], sizes = [2, 32], strides = [1, 1]} : vector<2x128xf32> to vector<2x32xf32>
    %99 = math.tanh %98 : vector<2x32xf32>
    %100 = arith.mulf %96, %60 : vector<2x32xf32>
    %101 = arith.mulf %95, %99 : vector<2x32xf32>
    %102 = arith.addf %100, %101 : vector<2x32xf32>
    %103 = math.tanh %102 : vector<2x32xf32>
    %104 = arith.mulf %97, %103 : vector<2x32xf32>
    %105 = vector.extract_strided_slice %12 {offsets = [4, 0], sizes = [2, 128], strides = [1, 1]} : vector<16x128xf32> to vector<2x128xf32>
    %c0_45 = arith.constant 0 : index
    %c0_46 = arith.constant 0 : index
    %106 = vector.load %arg3[%c0_45, %c0_46] : memref<32x128xf32, #tpu.memory_space<vmem>>, vector<32x128xf32>
    %cst_47 = arith.constant dense<0.000000e+00> : vector<2x128xf32>
    %107 = tpu.matmul %81, %106, %cst_47 {dimension_numbers = #tpu.dot_dimension_numbers<[1], [0], [0], [1], [0, 0, 1, 1], [], []>} : vector<2x32xf32>, vector<32x128xf32>, vector<2x128xf32> -> vector<2x128xf32>
    %108 = arith.addf %105, %107 : vector<2x128xf32>
    %109 = arith.negf %108 : vector<2x128xf32>
    %110 = math.exp %109 : vector<2x128xf32>
    %cst_48 = arith.constant 1.000000e+00 : f32
    %111 = vector.broadcast %cst_48 : f32 to vector<2x128xf32>
    %112 = arith.addf %111, %110 : vector<2x128xf32>
    %113 = arith.divf %111, %112 : vector<2x128xf32>
    %114 = vector.extract_strided_slice %113 {offsets = [0, 0], sizes = [2, 32], strides = [1, 1]} : vector<2x128xf32> to vector<2x32xf32>
    %115 = vector.extract_strided_slice %113 {offsets = [0, 32], sizes = [2, 32], strides = [1, 1]} : vector<2x128xf32> to vector<2x32xf32>
    %116 = vector.extract_strided_slice %113 {offsets = [0, 96], sizes = [2, 32], strides = [1, 1]} : vector<2x128xf32> to vector<2x32xf32>
    %117 = vector.extract_strided_slice %108 {offsets = [0, 64], sizes = [2, 32], strides = [1, 1]} : vector<2x128xf32> to vector<2x32xf32>
    %118 = math.tanh %117 : vector<2x32xf32>
    %119 = arith.mulf %115, %79 : vector<2x32xf32>
    %120 = arith.mulf %114, %118 : vector<2x32xf32>
    %121 = arith.addf %119, %120 : vector<2x32xf32>
    %122 = math.tanh %121 : vector<2x32xf32>
    %123 = arith.mulf %116, %122 : vector<2x32xf32>
    %c0_49 = arith.constant 0 : index
    %c0_50 = arith.constant 0 : index
    %124 = vector.load %arg5[%c0_49, %c0_50] : memref<32x128xf32, #tpu.memory_space<vmem>>, vector<32x128xf32>
    %cst_51 = arith.constant dense<0.000000e+00> : vector<2x128xf32>
    %125 = tpu.matmul %123, %124, %cst_51 {dimension_numbers = #tpu.dot_dimension_numbers<[1], [0], [0], [1], [0, 0, 1, 1], [], []>} : vector<2x32xf32>, vector<32x128xf32>, vector<2x128xf32> -> vector<2x128xf32>
    %c0_52 = arith.constant 0 : index
    %c0_53 = arith.constant 0 : index
    %126 = vector.load %arg6[%c0_52, %c0_53] : memref<32x128xf32, #tpu.memory_space<vmem>>, vector<32x128xf32>
    %cst_54 = arith.constant dense<0.000000e+00> : vector<2x128xf32>
    %127 = tpu.matmul %104, %126, %cst_54 {dimension_numbers = #tpu.dot_dimension_numbers<[1], [0], [0], [1], [0, 0, 1, 1], [], []>} : vector<2x32xf32>, vector<32x128xf32>, vector<2x128xf32> -> vector<2x128xf32>
    %128 = arith.addf %125, %127 : vector<2x128xf32>
    %c0_55 = arith.constant 0 : index
    %c0_56 = arith.constant 0 : index
    %129 = vector.load %arg7[%c0_55, %c0_56] : memref<1x128xf32, #tpu.memory_space<vmem>>, vector<1x128xf32>
    %130 = vector.broadcast %129 : vector<1x128xf32> to vector<2x128xf32>
    %131 = arith.addf %128, %130 : vector<2x128xf32>
    %132 = arith.negf %131 : vector<2x128xf32>
    %133 = math.exp %132 : vector<2x128xf32>
    %cst_57 = arith.constant 1.000000e+00 : f32
    %134 = vector.broadcast %cst_57 : f32 to vector<2x128xf32>
    %135 = arith.addf %134, %133 : vector<2x128xf32>
    %136 = arith.divf %134, %135 : vector<2x128xf32>
    %137 = vector.extract_strided_slice %136 {offsets = [0, 0], sizes = [2, 32], strides = [1, 1]} : vector<2x128xf32> to vector<2x32xf32>
    %138 = vector.extract_strided_slice %136 {offsets = [0, 32], sizes = [2, 32], strides = [1, 1]} : vector<2x128xf32> to vector<2x32xf32>
    %139 = vector.extract_strided_slice %136 {offsets = [0, 96], sizes = [2, 32], strides = [1, 1]} : vector<2x128xf32> to vector<2x32xf32>
    %140 = vector.extract_strided_slice %131 {offsets = [0, 64], sizes = [2, 32], strides = [1, 1]} : vector<2x128xf32> to vector<2x32xf32>
    %141 = math.tanh %140 : vector<2x32xf32>
    %142 = arith.mulf %138, %102 : vector<2x32xf32>
    %143 = arith.mulf %137, %141 : vector<2x32xf32>
    %144 = arith.addf %142, %143 : vector<2x32xf32>
    %145 = math.tanh %144 : vector<2x32xf32>
    %146 = arith.mulf %139, %145 : vector<2x32xf32>
    %147 = vector.extract_strided_slice %12 {offsets = [6, 0], sizes = [2, 128], strides = [1, 1]} : vector<16x128xf32> to vector<2x128xf32>
    %c0_58 = arith.constant 0 : index
    %c0_59 = arith.constant 0 : index
    %148 = vector.load %arg3[%c0_58, %c0_59] : memref<32x128xf32, #tpu.memory_space<vmem>>, vector<32x128xf32>
    %cst_60 = arith.constant dense<0.000000e+00> : vector<2x128xf32>
    %149 = tpu.matmul %123, %148, %cst_60 {dimension_numbers = #tpu.dot_dimension_numbers<[1], [0], [0], [1], [0, 0, 1, 1], [], []>} : vector<2x32xf32>, vector<32x128xf32>, vector<2x128xf32> -> vector<2x128xf32>
    %150 = arith.addf %147, %149 : vector<2x128xf32>
    %151 = arith.negf %150 : vector<2x128xf32>
    %152 = math.exp %151 : vector<2x128xf32>
    %cst_61 = arith.constant 1.000000e+00 : f32
    %153 = vector.broadcast %cst_61 : f32 to vector<2x128xf32>
    %154 = arith.addf %153, %152 : vector<2x128xf32>
    %155 = arith.divf %153, %154 : vector<2x128xf32>
    %156 = vector.extract_strided_slice %155 {offsets = [0, 0], sizes = [2, 32], strides = [1, 1]} : vector<2x128xf32> to vector<2x32xf32>
    %157 = vector.extract_strided_slice %155 {offsets = [0, 32], sizes = [2, 32], strides = [1, 1]} : vector<2x128xf32> to vector<2x32xf32>
    %158 = vector.extract_strided_slice %155 {offsets = [0, 96], sizes = [2, 32], strides = [1, 1]} : vector<2x128xf32> to vector<2x32xf32>
    %159 = vector.extract_strided_slice %150 {offsets = [0, 64], sizes = [2, 32], strides = [1, 1]} : vector<2x128xf32> to vector<2x32xf32>
    %160 = math.tanh %159 : vector<2x32xf32>
    %161 = arith.mulf %157, %121 : vector<2x32xf32>
    %162 = arith.mulf %156, %160 : vector<2x32xf32>
    %163 = arith.addf %161, %162 : vector<2x32xf32>
    %164 = math.tanh %163 : vector<2x32xf32>
    %165 = arith.mulf %158, %164 : vector<2x32xf32>
    %c0_62 = arith.constant 0 : index
    %c0_63 = arith.constant 0 : index
    %166 = vector.load %arg5[%c0_62, %c0_63] : memref<32x128xf32, #tpu.memory_space<vmem>>, vector<32x128xf32>
    %cst_64 = arith.constant dense<0.000000e+00> : vector<2x128xf32>
    %167 = tpu.matmul %165, %166, %cst_64 {dimension_numbers = #tpu.dot_dimension_numbers<[1], [0], [0], [1], [0, 0, 1, 1], [], []>} : vector<2x32xf32>, vector<32x128xf32>, vector<2x128xf32> -> vector<2x128xf32>
    %c0_65 = arith.constant 0 : index
    %c0_66 = arith.constant 0 : index
    %168 = vector.load %arg6[%c0_65, %c0_66] : memref<32x128xf32, #tpu.memory_space<vmem>>, vector<32x128xf32>
    %cst_67 = arith.constant dense<0.000000e+00> : vector<2x128xf32>
    %169 = tpu.matmul %146, %168, %cst_67 {dimension_numbers = #tpu.dot_dimension_numbers<[1], [0], [0], [1], [0, 0, 1, 1], [], []>} : vector<2x32xf32>, vector<32x128xf32>, vector<2x128xf32> -> vector<2x128xf32>
    %170 = arith.addf %167, %169 : vector<2x128xf32>
    %c0_68 = arith.constant 0 : index
    %c0_69 = arith.constant 0 : index
    %171 = vector.load %arg7[%c0_68, %c0_69] : memref<1x128xf32, #tpu.memory_space<vmem>>, vector<1x128xf32>
    %172 = vector.broadcast %171 : vector<1x128xf32> to vector<2x128xf32>
    %173 = arith.addf %170, %172 : vector<2x128xf32>
    %174 = arith.negf %173 : vector<2x128xf32>
    %175 = math.exp %174 : vector<2x128xf32>
    %cst_70 = arith.constant 1.000000e+00 : f32
    %176 = vector.broadcast %cst_70 : f32 to vector<2x128xf32>
    %177 = arith.addf %176, %175 : vector<2x128xf32>
    %178 = arith.divf %176, %177 : vector<2x128xf32>
    %179 = vector.extract_strided_slice %178 {offsets = [0, 0], sizes = [2, 32], strides = [1, 1]} : vector<2x128xf32> to vector<2x32xf32>
    %180 = vector.extract_strided_slice %178 {offsets = [0, 32], sizes = [2, 32], strides = [1, 1]} : vector<2x128xf32> to vector<2x32xf32>
    %181 = vector.extract_strided_slice %178 {offsets = [0, 96], sizes = [2, 32], strides = [1, 1]} : vector<2x128xf32> to vector<2x32xf32>
    %182 = vector.extract_strided_slice %173 {offsets = [0, 64], sizes = [2, 32], strides = [1, 1]} : vector<2x128xf32> to vector<2x32xf32>
    %183 = math.tanh %182 : vector<2x32xf32>
    %184 = arith.mulf %180, %144 : vector<2x32xf32>
    %185 = arith.mulf %179, %183 : vector<2x32xf32>
    %186 = arith.addf %184, %185 : vector<2x32xf32>
    %187 = math.tanh %186 : vector<2x32xf32>
    %188 = arith.mulf %181, %187 : vector<2x32xf32>
    %189 = vector.extract_strided_slice %12 {offsets = [8, 0], sizes = [2, 128], strides = [1, 1]} : vector<16x128xf32> to vector<2x128xf32>
    %c0_71 = arith.constant 0 : index
    %c0_72 = arith.constant 0 : index
    %190 = vector.load %arg3[%c0_71, %c0_72] : memref<32x128xf32, #tpu.memory_space<vmem>>, vector<32x128xf32>
    %cst_73 = arith.constant dense<0.000000e+00> : vector<2x128xf32>
    %191 = tpu.matmul %165, %190, %cst_73 {dimension_numbers = #tpu.dot_dimension_numbers<[1], [0], [0], [1], [0, 0, 1, 1], [], []>} : vector<2x32xf32>, vector<32x128xf32>, vector<2x128xf32> -> vector<2x128xf32>
    %192 = arith.addf %189, %191 : vector<2x128xf32>
    %193 = arith.negf %192 : vector<2x128xf32>
    %194 = math.exp %193 : vector<2x128xf32>
    %cst_74 = arith.constant 1.000000e+00 : f32
    %195 = vector.broadcast %cst_74 : f32 to vector<2x128xf32>
    %196 = arith.addf %195, %194 : vector<2x128xf32>
    %197 = arith.divf %195, %196 : vector<2x128xf32>
    %198 = vector.extract_strided_slice %197 {offsets = [0, 0], sizes = [2, 32], strides = [1, 1]} : vector<2x128xf32> to vector<2x32xf32>
    %199 = vector.extract_strided_slice %197 {offsets = [0, 32], sizes = [2, 32], strides = [1, 1]} : vector<2x128xf32> to vector<2x32xf32>
    %200 = vector.extract_strided_slice %197 {offsets = [0, 96], sizes = [2, 32], strides = [1, 1]} : vector<2x128xf32> to vector<2x32xf32>
    %201 = vector.extract_strided_slice %192 {offsets = [0, 64], sizes = [2, 32], strides = [1, 1]} : vector<2x128xf32> to vector<2x32xf32>
    %202 = math.tanh %201 : vector<2x32xf32>
    %203 = arith.mulf %199, %163 : vector<2x32xf32>
    %204 = arith.mulf %198, %202 : vector<2x32xf32>
    %205 = arith.addf %203, %204 : vector<2x32xf32>
    %206 = math.tanh %205 : vector<2x32xf32>
    %207 = arith.mulf %200, %206 : vector<2x32xf32>
    %c0_75 = arith.constant 0 : index
    %c0_76 = arith.constant 0 : index
    %208 = vector.load %arg5[%c0_75, %c0_76] : memref<32x128xf32, #tpu.memory_space<vmem>>, vector<32x128xf32>
    %cst_77 = arith.constant dense<0.000000e+00> : vector<2x128xf32>
    %209 = tpu.matmul %207, %208, %cst_77 {dimension_numbers = #tpu.dot_dimension_numbers<[1], [0], [0], [1], [0, 0, 1, 1], [], []>} : vector<2x32xf32>, vector<32x128xf32>, vector<2x128xf32> -> vector<2x128xf32>
    %c0_78 = arith.constant 0 : index
    %c0_79 = arith.constant 0 : index
    %210 = vector.load %arg6[%c0_78, %c0_79] : memref<32x128xf32, #tpu.memory_space<vmem>>, vector<32x128xf32>
    %cst_80 = arith.constant dense<0.000000e+00> : vector<2x128xf32>
    %211 = tpu.matmul %188, %210, %cst_80 {dimension_numbers = #tpu.dot_dimension_numbers<[1], [0], [0], [1], [0, 0, 1, 1], [], []>} : vector<2x32xf32>, vector<32x128xf32>, vector<2x128xf32> -> vector<2x128xf32>
    %212 = arith.addf %209, %211 : vector<2x128xf32>
    %c0_81 = arith.constant 0 : index
    %c0_82 = arith.constant 0 : index
    %213 = vector.load %arg7[%c0_81, %c0_82] : memref<1x128xf32, #tpu.memory_space<vmem>>, vector<1x128xf32>
    %214 = vector.broadcast %213 : vector<1x128xf32> to vector<2x128xf32>
    %215 = arith.addf %212, %214 : vector<2x128xf32>
    %216 = arith.negf %215 : vector<2x128xf32>
    %217 = math.exp %216 : vector<2x128xf32>
    %cst_83 = arith.constant 1.000000e+00 : f32
    %218 = vector.broadcast %cst_83 : f32 to vector<2x128xf32>
    %219 = arith.addf %218, %217 : vector<2x128xf32>
    %220 = arith.divf %218, %219 : vector<2x128xf32>
    %221 = vector.extract_strided_slice %220 {offsets = [0, 0], sizes = [2, 32], strides = [1, 1]} : vector<2x128xf32> to vector<2x32xf32>
    %222 = vector.extract_strided_slice %220 {offsets = [0, 32], sizes = [2, 32], strides = [1, 1]} : vector<2x128xf32> to vector<2x32xf32>
    %223 = vector.extract_strided_slice %220 {offsets = [0, 96], sizes = [2, 32], strides = [1, 1]} : vector<2x128xf32> to vector<2x32xf32>
    %224 = vector.extract_strided_slice %215 {offsets = [0, 64], sizes = [2, 32], strides = [1, 1]} : vector<2x128xf32> to vector<2x32xf32>
    %225 = math.tanh %224 : vector<2x32xf32>
    %226 = arith.mulf %222, %186 : vector<2x32xf32>
    %227 = arith.mulf %221, %225 : vector<2x32xf32>
    %228 = arith.addf %226, %227 : vector<2x32xf32>
    %229 = math.tanh %228 : vector<2x32xf32>
    %230 = arith.mulf %223, %229 : vector<2x32xf32>
    %231 = vector.extract_strided_slice %12 {offsets = [10, 0], sizes = [2, 128], strides = [1, 1]} : vector<16x128xf32> to vector<2x128xf32>
    %c0_84 = arith.constant 0 : index
    %c0_85 = arith.constant 0 : index
    %232 = vector.load %arg3[%c0_84, %c0_85] : memref<32x128xf32, #tpu.memory_space<vmem>>, vector<32x128xf32>
    %cst_86 = arith.constant dense<0.000000e+00> : vector<2x128xf32>
    %233 = tpu.matmul %207, %232, %cst_86 {dimension_numbers = #tpu.dot_dimension_numbers<[1], [0], [0], [1], [0, 0, 1, 1], [], []>} : vector<2x32xf32>, vector<32x128xf32>, vector<2x128xf32> -> vector<2x128xf32>
    %234 = arith.addf %231, %233 : vector<2x128xf32>
    %235 = arith.negf %234 : vector<2x128xf32>
    %236 = math.exp %235 : vector<2x128xf32>
    %cst_87 = arith.constant 1.000000e+00 : f32
    %237 = vector.broadcast %cst_87 : f32 to vector<2x128xf32>
    %238 = arith.addf %237, %236 : vector<2x128xf32>
    %239 = arith.divf %237, %238 : vector<2x128xf32>
    %240 = vector.extract_strided_slice %239 {offsets = [0, 0], sizes = [2, 32], strides = [1, 1]} : vector<2x128xf32> to vector<2x32xf32>
    %241 = vector.extract_strided_slice %239 {offsets = [0, 32], sizes = [2, 32], strides = [1, 1]} : vector<2x128xf32> to vector<2x32xf32>
    %242 = vector.extract_strided_slice %239 {offsets = [0, 96], sizes = [2, 32], strides = [1, 1]} : vector<2x128xf32> to vector<2x32xf32>
    %243 = vector.extract_strided_slice %234 {offsets = [0, 64], sizes = [2, 32], strides = [1, 1]} : vector<2x128xf32> to vector<2x32xf32>
    %244 = math.tanh %243 : vector<2x32xf32>
    %245 = arith.mulf %241, %205 : vector<2x32xf32>
    %246 = arith.mulf %240, %244 : vector<2x32xf32>
    %247 = arith.addf %245, %246 : vector<2x32xf32>
    %248 = math.tanh %247 : vector<2x32xf32>
    %249 = arith.mulf %242, %248 : vector<2x32xf32>
    %c0_88 = arith.constant 0 : index
    %c0_89 = arith.constant 0 : index
    %250 = vector.load %arg5[%c0_88, %c0_89] : memref<32x128xf32, #tpu.memory_space<vmem>>, vector<32x128xf32>
    %cst_90 = arith.constant dense<0.000000e+00> : vector<2x128xf32>
    %251 = tpu.matmul %249, %250, %cst_90 {dimension_numbers = #tpu.dot_dimension_numbers<[1], [0], [0], [1], [0, 0, 1, 1], [], []>} : vector<2x32xf32>, vector<32x128xf32>, vector<2x128xf32> -> vector<2x128xf32>
    %c0_91 = arith.constant 0 : index
    %c0_92 = arith.constant 0 : index
    %252 = vector.load %arg6[%c0_91, %c0_92] : memref<32x128xf32, #tpu.memory_space<vmem>>, vector<32x128xf32>
    %cst_93 = arith.constant dense<0.000000e+00> : vector<2x128xf32>
    %253 = tpu.matmul %230, %252, %cst_93 {dimension_numbers = #tpu.dot_dimension_numbers<[1], [0], [0], [1], [0, 0, 1, 1], [], []>} : vector<2x32xf32>, vector<32x128xf32>, vector<2x128xf32> -> vector<2x128xf32>
    %254 = arith.addf %251, %253 : vector<2x128xf32>
    %c0_94 = arith.constant 0 : index
    %c0_95 = arith.constant 0 : index
    %255 = vector.load %arg7[%c0_94, %c0_95] : memref<1x128xf32, #tpu.memory_space<vmem>>, vector<1x128xf32>
    %256 = vector.broadcast %255 : vector<1x128xf32> to vector<2x128xf32>
    %257 = arith.addf %254, %256 : vector<2x128xf32>
    %258 = arith.negf %257 : vector<2x128xf32>
    %259 = math.exp %258 : vector<2x128xf32>
    %cst_96 = arith.constant 1.000000e+00 : f32
    %260 = vector.broadcast %cst_96 : f32 to vector<2x128xf32>
    %261 = arith.addf %260, %259 : vector<2x128xf32>
    %262 = arith.divf %260, %261 : vector<2x128xf32>
    %263 = vector.extract_strided_slice %262 {offsets = [0, 0], sizes = [2, 32], strides = [1, 1]} : vector<2x128xf32> to vector<2x32xf32>
    %264 = vector.extract_strided_slice %262 {offsets = [0, 32], sizes = [2, 32], strides = [1, 1]} : vector<2x128xf32> to vector<2x32xf32>
    %265 = vector.extract_strided_slice %262 {offsets = [0, 96], sizes = [2, 32], strides = [1, 1]} : vector<2x128xf32> to vector<2x32xf32>
    %266 = vector.extract_strided_slice %257 {offsets = [0, 64], sizes = [2, 32], strides = [1, 1]} : vector<2x128xf32> to vector<2x32xf32>
    %267 = math.tanh %266 : vector<2x32xf32>
    %268 = arith.mulf %264, %228 : vector<2x32xf32>
    %269 = arith.mulf %263, %267 : vector<2x32xf32>
    %270 = arith.addf %268, %269 : vector<2x32xf32>
    %271 = math.tanh %270 : vector<2x32xf32>
    %272 = arith.mulf %265, %271 : vector<2x32xf32>
    %273 = vector.extract_strided_slice %12 {offsets = [12, 0], sizes = [2, 128], strides = [1, 1]} : vector<16x128xf32> to vector<2x128xf32>
    %c0_97 = arith.constant 0 : index
    %c0_98 = arith.constant 0 : index
    %274 = vector.load %arg3[%c0_97, %c0_98] : memref<32x128xf32, #tpu.memory_space<vmem>>, vector<32x128xf32>
    %cst_99 = arith.constant dense<0.000000e+00> : vector<2x128xf32>
    %275 = tpu.matmul %249, %274, %cst_99 {dimension_numbers = #tpu.dot_dimension_numbers<[1], [0], [0], [1], [0, 0, 1, 1], [], []>} : vector<2x32xf32>, vector<32x128xf32>, vector<2x128xf32> -> vector<2x128xf32>
    %276 = arith.addf %273, %275 : vector<2x128xf32>
    %277 = arith.negf %276 : vector<2x128xf32>
    %278 = math.exp %277 : vector<2x128xf32>
    %cst_100 = arith.constant 1.000000e+00 : f32
    %279 = vector.broadcast %cst_100 : f32 to vector<2x128xf32>
    %280 = arith.addf %279, %278 : vector<2x128xf32>
    %281 = arith.divf %279, %280 : vector<2x128xf32>
    %282 = vector.extract_strided_slice %281 {offsets = [0, 0], sizes = [2, 32], strides = [1, 1]} : vector<2x128xf32> to vector<2x32xf32>
    %283 = vector.extract_strided_slice %281 {offsets = [0, 32], sizes = [2, 32], strides = [1, 1]} : vector<2x128xf32> to vector<2x32xf32>
    %284 = vector.extract_strided_slice %281 {offsets = [0, 96], sizes = [2, 32], strides = [1, 1]} : vector<2x128xf32> to vector<2x32xf32>
    %285 = vector.extract_strided_slice %276 {offsets = [0, 64], sizes = [2, 32], strides = [1, 1]} : vector<2x128xf32> to vector<2x32xf32>
    %286 = math.tanh %285 : vector<2x32xf32>
    %287 = arith.mulf %283, %247 : vector<2x32xf32>
    %288 = arith.mulf %282, %286 : vector<2x32xf32>
    %289 = arith.addf %287, %288 : vector<2x32xf32>
    %290 = math.tanh %289 : vector<2x32xf32>
    %291 = arith.mulf %284, %290 : vector<2x32xf32>
    %c0_101 = arith.constant 0 : index
    %c0_102 = arith.constant 0 : index
    %292 = vector.load %arg5[%c0_101, %c0_102] : memref<32x128xf32, #tpu.memory_space<vmem>>, vector<32x128xf32>
    %cst_103 = arith.constant dense<0.000000e+00> : vector<2x128xf32>
    %293 = tpu.matmul %291, %292, %cst_103 {dimension_numbers = #tpu.dot_dimension_numbers<[1], [0], [0], [1], [0, 0, 1, 1], [], []>} : vector<2x32xf32>, vector<32x128xf32>, vector<2x128xf32> -> vector<2x128xf32>
    %c0_104 = arith.constant 0 : index
    %c0_105 = arith.constant 0 : index
    %294 = vector.load %arg6[%c0_104, %c0_105] : memref<32x128xf32, #tpu.memory_space<vmem>>, vector<32x128xf32>
    %cst_106 = arith.constant dense<0.000000e+00> : vector<2x128xf32>
    %295 = tpu.matmul %272, %294, %cst_106 {dimension_numbers = #tpu.dot_dimension_numbers<[1], [0], [0], [1], [0, 0, 1, 1], [], []>} : vector<2x32xf32>, vector<32x128xf32>, vector<2x128xf32> -> vector<2x128xf32>
    %296 = arith.addf %293, %295 : vector<2x128xf32>
    %c0_107 = arith.constant 0 : index
    %c0_108 = arith.constant 0 : index
    %297 = vector.load %arg7[%c0_107, %c0_108] : memref<1x128xf32, #tpu.memory_space<vmem>>, vector<1x128xf32>
    %298 = vector.broadcast %297 : vector<1x128xf32> to vector<2x128xf32>
    %299 = arith.addf %296, %298 : vector<2x128xf32>
    %300 = arith.negf %299 : vector<2x128xf32>
    %301 = math.exp %300 : vector<2x128xf32>
    %cst_109 = arith.constant 1.000000e+00 : f32
    %302 = vector.broadcast %cst_109 : f32 to vector<2x128xf32>
    %303 = arith.addf %302, %301 : vector<2x128xf32>
    %304 = arith.divf %302, %303 : vector<2x128xf32>
    %305 = vector.extract_strided_slice %304 {offsets = [0, 0], sizes = [2, 32], strides = [1, 1]} : vector<2x128xf32> to vector<2x32xf32>
    %306 = vector.extract_strided_slice %304 {offsets = [0, 32], sizes = [2, 32], strides = [1, 1]} : vector<2x128xf32> to vector<2x32xf32>
    %307 = vector.extract_strided_slice %304 {offsets = [0, 96], sizes = [2, 32], strides = [1, 1]} : vector<2x128xf32> to vector<2x32xf32>
    %308 = vector.extract_strided_slice %299 {offsets = [0, 64], sizes = [2, 32], strides = [1, 1]} : vector<2x128xf32> to vector<2x32xf32>
    %309 = math.tanh %308 : vector<2x32xf32>
    %310 = arith.mulf %306, %270 : vector<2x32xf32>
    %311 = arith.mulf %305, %309 : vector<2x32xf32>
    %312 = arith.addf %310, %311 : vector<2x32xf32>
    %313 = math.tanh %312 : vector<2x32xf32>
    %314 = arith.mulf %307, %313 : vector<2x32xf32>
    %315 = vector.extract_strided_slice %12 {offsets = [14, 0], sizes = [2, 128], strides = [1, 1]} : vector<16x128xf32> to vector<2x128xf32>
    %c0_110 = arith.constant 0 : index
    %c0_111 = arith.constant 0 : index
    %316 = vector.load %arg3[%c0_110, %c0_111] : memref<32x128xf32, #tpu.memory_space<vmem>>, vector<32x128xf32>
    %cst_112 = arith.constant dense<0.000000e+00> : vector<2x128xf32>
    %317 = tpu.matmul %291, %316, %cst_112 {dimension_numbers = #tpu.dot_dimension_numbers<[1], [0], [0], [1], [0, 0, 1, 1], [], []>} : vector<2x32xf32>, vector<32x128xf32>, vector<2x128xf32> -> vector<2x128xf32>
    %318 = arith.addf %315, %317 : vector<2x128xf32>
    %319 = arith.negf %318 : vector<2x128xf32>
    %320 = math.exp %319 : vector<2x128xf32>
    %cst_113 = arith.constant 1.000000e+00 : f32
    %321 = vector.broadcast %cst_113 : f32 to vector<2x128xf32>
    %322 = arith.addf %321, %320 : vector<2x128xf32>
    %323 = arith.divf %321, %322 : vector<2x128xf32>
    %324 = vector.extract_strided_slice %323 {offsets = [0, 0], sizes = [2, 32], strides = [1, 1]} : vector<2x128xf32> to vector<2x32xf32>
    %325 = vector.extract_strided_slice %323 {offsets = [0, 32], sizes = [2, 32], strides = [1, 1]} : vector<2x128xf32> to vector<2x32xf32>
    %326 = vector.extract_strided_slice %323 {offsets = [0, 96], sizes = [2, 32], strides = [1, 1]} : vector<2x128xf32> to vector<2x32xf32>
    %327 = vector.extract_strided_slice %318 {offsets = [0, 64], sizes = [2, 32], strides = [1, 1]} : vector<2x128xf32> to vector<2x32xf32>
    %328 = math.tanh %327 : vector<2x32xf32>
    %329 = arith.mulf %325, %289 : vector<2x32xf32>
    %330 = arith.mulf %324, %328 : vector<2x32xf32>
    %331 = arith.addf %329, %330 : vector<2x32xf32>
    %332 = math.tanh %331 : vector<2x32xf32>
    %333 = arith.mulf %326, %332 : vector<2x32xf32>
    %c0_114 = arith.constant 0 : index
    %c0_115 = arith.constant 0 : index
    %334 = vector.load %arg5[%c0_114, %c0_115] : memref<32x128xf32, #tpu.memory_space<vmem>>, vector<32x128xf32>
    %cst_116 = arith.constant dense<0.000000e+00> : vector<2x128xf32>
    %335 = tpu.matmul %333, %334, %cst_116 {dimension_numbers = #tpu.dot_dimension_numbers<[1], [0], [0], [1], [0, 0, 1, 1], [], []>} : vector<2x32xf32>, vector<32x128xf32>, vector<2x128xf32> -> vector<2x128xf32>
    %c0_117 = arith.constant 0 : index
    %c0_118 = arith.constant 0 : index
    %336 = vector.load %arg6[%c0_117, %c0_118] : memref<32x128xf32, #tpu.memory_space<vmem>>, vector<32x128xf32>
    %cst_119 = arith.constant dense<0.000000e+00> : vector<2x128xf32>
    %337 = tpu.matmul %314, %336, %cst_119 {dimension_numbers = #tpu.dot_dimension_numbers<[1], [0], [0], [1], [0, 0, 1, 1], [], []>} : vector<2x32xf32>, vector<32x128xf32>, vector<2x128xf32> -> vector<2x128xf32>
    %338 = arith.addf %335, %337 : vector<2x128xf32>
    %c0_120 = arith.constant 0 : index
    %c0_121 = arith.constant 0 : index
    %339 = vector.load %arg7[%c0_120, %c0_121] : memref<1x128xf32, #tpu.memory_space<vmem>>, vector<1x128xf32>
    %340 = vector.broadcast %339 : vector<1x128xf32> to vector<2x128xf32>
    %341 = arith.addf %338, %340 : vector<2x128xf32>
    %342 = arith.negf %341 : vector<2x128xf32>
    %343 = math.exp %342 : vector<2x128xf32>
    %cst_122 = arith.constant 1.000000e+00 : f32
    %344 = vector.broadcast %cst_122 : f32 to vector<2x128xf32>
    %345 = arith.addf %344, %343 : vector<2x128xf32>
    %346 = arith.divf %344, %345 : vector<2x128xf32>
    %347 = vector.extract_strided_slice %346 {offsets = [0, 0], sizes = [2, 32], strides = [1, 1]} : vector<2x128xf32> to vector<2x32xf32>
    %348 = vector.extract_strided_slice %346 {offsets = [0, 32], sizes = [2, 32], strides = [1, 1]} : vector<2x128xf32> to vector<2x32xf32>
    %349 = vector.extract_strided_slice %346 {offsets = [0, 96], sizes = [2, 32], strides = [1, 1]} : vector<2x128xf32> to vector<2x32xf32>
    %350 = vector.extract_strided_slice %341 {offsets = [0, 64], sizes = [2, 32], strides = [1, 1]} : vector<2x128xf32> to vector<2x32xf32>
    %351 = math.tanh %350 : vector<2x32xf32>
    %352 = arith.mulf %348, %312 : vector<2x32xf32>
    %353 = arith.mulf %347, %351 : vector<2x32xf32>
    %354 = arith.addf %352, %353 : vector<2x32xf32>
    %355 = math.tanh %354 : vector<2x32xf32>
    %356 = arith.mulf %349, %355 : vector<2x32xf32>
    %357 = vector.extract_strided_slice %62 {offsets = [0, 0], sizes = [1, 32], strides = [1, 1]} : vector<2x32xf32> to vector<1x32xf32>
    %358 = vector.extract_strided_slice %104 {offsets = [0, 0], sizes = [1, 32], strides = [1, 1]} : vector<2x32xf32> to vector<1x32xf32>
    %359 = vector.extract_strided_slice %146 {offsets = [0, 0], sizes = [1, 32], strides = [1, 1]} : vector<2x32xf32> to vector<1x32xf32>
    %360 = vector.extract_strided_slice %188 {offsets = [0, 0], sizes = [1, 32], strides = [1, 1]} : vector<2x32xf32> to vector<1x32xf32>
    %361 = vector.extract_strided_slice %230 {offsets = [0, 0], sizes = [1, 32], strides = [1, 1]} : vector<2x32xf32> to vector<1x32xf32>
    %362 = vector.extract_strided_slice %272 {offsets = [0, 0], sizes = [1, 32], strides = [1, 1]} : vector<2x32xf32> to vector<1x32xf32>
    %363 = vector.extract_strided_slice %314 {offsets = [0, 0], sizes = [1, 32], strides = [1, 1]} : vector<2x32xf32> to vector<1x32xf32>
    %364 = vector.extract_strided_slice %62 {offsets = [1, 0], sizes = [1, 32], strides = [1, 1]} : vector<2x32xf32> to vector<1x32xf32>
    %365 = vector.extract_strided_slice %104 {offsets = [1, 0], sizes = [1, 32], strides = [1, 1]} : vector<2x32xf32> to vector<1x32xf32>
    %366 = vector.extract_strided_slice %146 {offsets = [1, 0], sizes = [1, 32], strides = [1, 1]} : vector<2x32xf32> to vector<1x32xf32>
    %367 = vector.extract_strided_slice %188 {offsets = [1, 0], sizes = [1, 32], strides = [1, 1]} : vector<2x32xf32> to vector<1x32xf32>
    %368 = vector.extract_strided_slice %230 {offsets = [1, 0], sizes = [1, 32], strides = [1, 1]} : vector<2x32xf32> to vector<1x32xf32>
    %369 = vector.extract_strided_slice %272 {offsets = [1, 0], sizes = [1, 32], strides = [1, 1]} : vector<2x32xf32> to vector<1x32xf32>
    %370 = vector.extract_strided_slice %314 {offsets = [1, 0], sizes = [1, 32], strides = [1, 1]} : vector<2x32xf32> to vector<1x32xf32>
    %371 = tpu.concatenate %357, %358, %359, %360, %361, %362, %363, %364, %365, %366, %367, %368, %369, %370 in 0 : vector<1x32xf32>, vector<1x32xf32>, vector<1x32xf32>, vector<1x32xf32>, vector<1x32xf32>, vector<1x32xf32>, vector<1x32xf32>, vector<1x32xf32>, vector<1x32xf32>, vector<1x32xf32>, vector<1x32xf32>, vector<1x32xf32>, vector<1x32xf32>, vector<1x32xf32> -> vector<14x32xf32>
    %c0_123 = arith.constant 0 : index
    %c0_124 = arith.constant 0 : index
    %372 = vector.load %arg10[%c0_123, %c0_124] : memref<32x64xf32, #tpu.memory_space<vmem>>, vector<32x64xf32>
    %cst_125 = arith.constant dense<0.000000e+00> : vector<14x64xf32>
    %373 = tpu.matmul %371, %372, %cst_125 {dimension_numbers = #tpu.dot_dimension_numbers<[1], [0], [0], [1], [0, 0, 1, 1], [], []>} : vector<14x32xf32>, vector<32x64xf32>, vector<14x64xf32> -> vector<14x64xf32>
    %c0_126 = arith.constant 0 : index
    %c0_127 = arith.constant 0 : index
    %374 = vector.load %arg11[%c0_126, %c0_127] : memref<14x64xf32, #tpu.memory_space<vmem>>, vector<14x64xf32>
    tpu.vector_store %arg11[%c0_126, %c0_127], %373 {strides = array<i32>} : memref<14x64xf32, #tpu.memory_space<vmem>>, vector<14x64xf32>,
    %c0_128 = arith.constant 0 : index
    %c0_129 = arith.constant 0 : index
    %c0_130 = arith.constant 0 : index
    %375 = vector.load %arg12[%c0_128, %c0_129, %c0_130] : memref<2x2x32xf32, #tpu.memory_space<vmem>>, vector<1x2x32xf32>
    %376 = vector.shape_cast %375 : vector<1x2x32xf32> to vector<2x32xf32>
    %377 = vector.shape_cast %333 : vector<2x32xf32> to vector<1x2x32xf32>
    tpu.vector_store %arg12[%c0_128, %c0_129, %c0_130], %377 {strides = array<i32>} : memref<2x2x32xf32, #tpu.memory_space<vmem>>, vector<1x2x32xf32>,
    %c0_131 = arith.constant 0 : index
    %c0_132 = arith.constant 0 : index
    %c0_133 = arith.constant 0 : index
    %378 = vector.load %arg13[%c0_131, %c0_132, %c0_133] : memref<2x2x32xf32, #tpu.memory_space<vmem>>, vector<1x2x32xf32>
    %379 = vector.shape_cast %378 : vector<1x2x32xf32> to vector<2x32xf32>
    %380 = vector.shape_cast %331 : vector<2x32xf32> to vector<1x2x32xf32>
    tpu.vector_store %arg13[%c0_131, %c0_132, %c0_133], %380 {strides = array<i32>} : memref<2x2x32xf32, #tpu.memory_space<vmem>>, vector<1x2x32xf32>,
    %c1_134 = arith.constant 1 : index
    %c0_135 = arith.constant 0 : index
    %c0_136 = arith.constant 0 : index
    %381 = vector.load %arg12[%c1_134, %c0_135, %c0_136] : memref<2x2x32xf32, #tpu.memory_space<vmem>>, vector<1x2x32xf32>
    %382 = vector.shape_cast %381 : vector<1x2x32xf32> to vector<2x32xf32>
    %383 = vector.shape_cast %356 : vector<2x32xf32> to vector<1x2x32xf32>
    tpu.vector_store %arg12[%c1_134, %c0_135, %c0_136], %383 {strides = array<i32>} : memref<2x2x32xf32, #tpu.memory_space<vmem>>, vector<1x2x32xf32>,
    %c1_137 = arith.constant 1 : index
    %c0_138 = arith.constant 0 : index
    %c0_139 = arith.constant 0 : index
    %384 = vector.load %arg13[%c1_137, %c0_138, %c0_139] : memref<2x2x32xf32, #tpu.memory_space<vmem>>, vector<1x2x32xf32>
    %385 = vector.shape_cast %384 : vector<1x2x32xf32> to vector<2x32xf32>
    %386 = vector.shape_cast %354 : vector<2x32xf32> to vector<1x2x32xf32>
    tpu.vector_store %arg13[%c1_137, %c0_138, %c0_139], %386 {strides = array<i32>} : memref<2x2x32xf32, #tpu.memory_space<vmem>>, vector<1x2x32xf32>,
    return
  }
}

</mosaic_0001>

<llo_original>
// kernel: rnn_model_forward.1
$region0: #{rnn_model_forward.1}
  #allocation0 [shape = 'u32[]', space=smem, size = 0x4, offset = 0x4, fixed_abs, tag = 'smem constant byte address 0x4 - core index']
  #allocation1 [shape = 'u32[144,128]{1,0:T(1,128)}', space=vmem, size = 0x12000, scoped, tag = 'internal scratch']
  %s0 = inlined_call_operand.vmem [shape: s32[16,1], index: 0, kind: input, shape index: {}]
  %s1 = inlined_call_operand.vmem [shape: f32[64,32], index: 1, kind: input, shape index: {}]
  %s2 = inlined_call_operand.vmem [shape: f32[32,128], index: 2, kind: input, shape index: {}]
  %s3 = inlined_call_operand.vmem [shape: f32[32,128], index: 3, kind: input, shape index: {}]
  %s4 = inlined_call_operand.vmem [shape: f32[1,128], index: 4, kind: input, shape index: {}]
  %s5 = inlined_call_operand.vmem [shape: f32[32,128], index: 5, kind: input, shape index: {}]
  %s6 = inlined_call_operand.hbm [shape: f32[32,128], index: 6, kind: input, shape index: {}]
  %s7 = inlined_call_operand.vmem [shape: f32[1,128], index: 7, kind: input, shape index: {}]
  %s8 = inlined_call_operand.vmem [shape: f32[2,2,32], index: 8, kind: input, shape index: {}]
  %s9 = inlined_call_operand.vmem [shape: f32[2,2,32], index: 9, kind: input, shape index: {}]
  %s10 = inlined_call_operand.hbm [shape: f32[32,64], index: 10, kind: input, shape index: {}]
  %s11 = inlined_call_operand.hbm [shape: f32[14,64], index: 11, kind: output, shape index: {0}]
  %s12 = inlined_call_operand.hbm [shape: f32[2,2,32], index: 12, kind: output, shape index: {1}]
  %s13 = inlined_call_operand.hbm [shape: f32[2,2,32], index: 13, kind: output, shape index: {2}]
  %14 = xla_tuple %s11, %s12, %s13
  %s15 = sld [smem:[#allocation0]]
  $region78: #{rnn_model_forward.1} parent=0
    _
  %s17 = ssub.s32 1, %s15
  %s18 = scalar_select 0, %s17, %s15
  $region1: #{rnn_model_forward.1} parent=0
    #allocation2 [shape = 'u8[16384]{0}', space=vmem, size = 0x4000, scoped, tag = 'input window, operand 6, single buffered']
    #allocation3 [shape = 's32[1]{0}', space=sflag, size = 0x4, scoped, tag = 'scoped memory for rnn_model_forward.1']
    #allocation4 [shape = 's32[1]{0}', space=sflag, size = 0x4, scoped, tag = 'scoped memory for rnn_model_forward.1']
    #allocation5 [shape = 'u8[16384]{0}', space=vmem, size = 0x4000, scoped, tag = 'input window, operand 10, single buffered']
    #allocation6 [shape = 's32[1]{0}', space=sflag, size = 0x4, scoped, tag = 'scoped memory for rnn_model_forward.1']
    #allocation7 [shape = 'u8[8192]{0}', space=vmem, size = 0x2000, scoped, tag = 'output window, operand 0, single buffered']
    #allocation8 [shape = 'u8[2048]{0}', space=vmem, size = 0x800, scoped, tag = 'output window, operand 1, single buffered']
    #allocation9 [shape = 's32[1]{0}', space=sflag, size = 0x4, scoped, tag = 'scoped memory for rnn_model_forward.1']
    #allocation10 [shape = 'u8[2048]{0}', space=vmem, size = 0x800, scoped, tag = 'output window, operand 2, single buffered']
    %19 = vsyncpa [#allocation3], 0
    %20 = vsyncpa [#allocation6], 0
    %21 = vsyncpa [#allocation4], 0
    %22 = vsyncpa [#allocation9], 0
    // Predicated region
    $region2: #{rnn_model_forward.1} parent=1 // pred_check
      _
    $region3: #{rnn_model_forward.1} parent=1 // pred_check_branch
      %24 = sbr.rel (0) target = $region5
    $region4: #{rnn_model_forward.1} parent=1 // pred_region
      _
    $region5: #{rnn_model_forward.1} parent=1 // pred_fallthru
      _
    // Predicated region
    $region6: #{rnn_model_forward.1} parent=1 // pred_check
      _
    $region7: #{rnn_model_forward.1} parent=1 // pred_check_branch
      %26 = sbr.rel (0) target = $region9
    $region8: #{rnn_model_forward.1} parent=1 // pred_region
      _
    $region9: #{rnn_model_forward.1} parent=1 // pred_fallthru
      _
    // Predicated region
    $region10: #{rnn_model_forward.1} parent=1 // pred_check
      _
    $region11: #{rnn_model_forward.1} parent=1 // pred_check_branch
      %28 = sbr.rel (0) target = $region13
    $region12: #{rnn_model_forward.1} parent=1 // pred_region
      _
    $region13: #{rnn_model_forward.1} parent=1 // pred_fallthru
      _
    // Predicated region
    $region14: #{rnn_model_forward.1} parent=1 // pred_check
      _
    $region15: #{rnn_model_forward.1} parent=1 // pred_check_branch
      %30 = sbr.rel (0) target = $region17
    $region16: #{rnn_model_forward.1} parent=1 // pred_region
      _
    $region17: #{rnn_model_forward.1} parent=1 // pred_fallthru
      _
    // Predicated region
    $region18: #{rnn_model_forward.1} parent=1 // pred_check
      _
    $region19: #{rnn_model_forward.1} parent=1 // pred_check_branch
      %32 = sbr.rel (0) target = $region21
    $region20: #{rnn_model_forward.1} parent=1 // pred_region
      _
    $region21: #{rnn_model_forward.1} parent=1 // pred_fallthru
      _
    // Predicated region
    $region22: #{rnn_model_forward.1} parent=1 // pred_check
      _
    $region23: #{rnn_model_forward.1} parent=1 // pred_check_branch
      %34 = sbr.rel (0) target = $region25
    $region24: #{rnn_model_forward.1} parent=1 // pred_region
      _
    $region25: #{rnn_model_forward.1} parent=1 // pred_fallthru
      _
    // Predicated region
    $region26: #{rnn_model_forward.1} parent=1 // pred_check
      _
    $region27: #{rnn_model_forward.1} parent=1 // pred_check_branch
      %36 = sbr.rel (0) target = $region29
    $region28: #{rnn_model_forward.1} parent=1 // pred_region
      %s38 = ssub.s32 512, 512
      %39 = vsyncadd [#allocation3], %s38
      %s40 = sshll.u32 [#allocation2], 4
      %s41 = int_to_ptr.vmem [resolvable:$true] %s40
      %46 = dma.hbm_to_vmem [thread:$0]  %s6, 512, %s41, [#allocation3], 128, 128, 8
    $region29: #{rnn_model_forward.1} parent=1 // pred_fallthru
      _
    // Predicated region
    $region30: #{rnn_model_forward.1} parent=1 // pred_check
      _
    $region31: #{rnn_model_forward.1} parent=1 // pred_check_branch
      %48 = sbr.rel (0) target = $region33
    $region32: #{rnn_model_forward.1} parent=1 // pred_region
      _
    $region33: #{rnn_model_forward.1} parent=1 // pred_fallthru
      _
    // Predicated region
    $region34: #{rnn_model_forward.1} parent=1 // pred_check
      _
    $region35: #{rnn_model_forward.1} parent=1 // pred_check_branch
      %50 = sbr.rel (0) target = $region37
    $region36: #{rnn_model_forward.1} parent=1 // pred_region
      _
    $region37: #{rnn_model_forward.1} parent=1 // pred_fallthru
      _
    // Predicated region
    $region38: #{rnn_model_forward.1} parent=1 // pred_check
      _
    $region39: #{rnn_model_forward.1} parent=1 // pred_check_branch
      %52 = sbr.rel (0) target = $region41
    $region40: #{rnn_model_forward.1} parent=1 // pred_region
      _
    $region41: #{rnn_model_forward.1} parent=1 // pred_fallthru
      _
    // Predicated region
    $region42: #{rnn_model_forward.1} parent=1 // pred_check
      _
    $region43: #{rnn_model_forward.1} parent=1 // pred_check_branch
      %54 = sbr.rel (0) target = $region45
    $region44: #{rnn_model_forward.1} parent=1 // pred_region
      %s56 = ssub.s32 512, 512
      %57 = vsyncadd [#allocation6], %s56
      %s58 = sshll.u32 [#allocation5], 4
      %s59 = int_to_ptr.vmem [resolvable:$true] %s58
      %64 = dma.hbm_to_vmem [thread:$0]  %s10, 512, %s59, [#allocation6], 128, 128, 8
    $region45: #{rnn_model_forward.1} parent=1 // pred_fallthru
      _
    // Predicated region
    $region46: #{rnn_model_forward.1} parent=1 // pred_check
      _
    $region47: #{rnn_model_forward.1} parent=1 // pred_check_branch
      %66 = sbr.rel (0) target = $region49
    $region48: #{rnn_model_forward.1} parent=1 // pred_region
      %67 = dma.done [#allocation3], 512
    $region49: #{rnn_model_forward.1} parent=1 // pred_fallthru
      _
    // Predicated region
    $region50: #{rnn_model_forward.1} parent=1 // pred_check
      _
    $region51: #{rnn_model_forward.1} parent=1 // pred_check_branch
      %69 = sbr.rel (0) target = $region53
    $region52: #{rnn_model_forward.1} parent=1 // pred_region
      %70 = dma.done [#allocation6], 512
    $region53: #{rnn_model_forward.1} parent=1 // pred_fallthru
      _
    %v71 = vld [vmem:[%s0] sm:$0xff]
    %v72 = vld [vmem:[%s0 + $0x8] sm:$0xff]
    %v73 = vlaneseq
    %v74 = vand.u32 %v73, 127
    %75 = vset.pattern.permute.xlu0 0
    %76 = vperm.xlu0 %75, %v71
    %v77 = vpop.permute.xlu0 %76
    %78 = vset.pattern.permute.xlu0 0
    %79 = vperm.xlu0 %78, %v72
    %v80 = vpop.permute.xlu0 %79
    %vm81 = vcmp.eq.s32.totalorder %v77, %v74
    %vm82 = vcmp.eq.s32.totalorder %v80, %v74
    %v83 = vsel %vm81, 1, 0
    %v84 = vsel %vm82, 1, 0
    %v85 = vcvt.s32.f32 %v83
    %v86 = vcvt.s32.f32 %v84
    %v87 = vld [vmem:[%s1] sm:$0xff]
    %v88 = vld [vmem:[%s1 + $0x8] sm:$0xff]
    %v89 = vld [vmem:[%s1 + $0x10] sm:$0xff]
    %v90 = vld [vmem:[%s1 + $0x18] sm:$0xff]
    %v91 = vld [vmem:[%s1 + $0x20] sm:$0xff]
    %v92 = vld [vmem:[%s1 + $0x28] sm:$0xff]
    %v93 = vld [vmem:[%s1 + $0x30] sm:$0xff]
    %v94 = vld [vmem:[%s1 + $0x38] sm:$0xff]
    %v95 = vld [vmem:[%s2] sm:$0xff]
    %v96 = vld [vmem:[%s2 + $0x8] sm:$0xff]
    %v97 = vld [vmem:[%s2 + $0x10] sm:$0xff]
    %v98 = vld [vmem:[%s2 + $0x18] sm:$0xff]
    %vm99 = vcmask 261120
    %v101 = vsel %vm99, %v87, 0
    %v104 = vsel %vm99, %v88, 0
    %v107 = vsel %vm99, %v89, 0
    %v110 = vsel %vm99, %v90, 0
    %v113 = vsel %vm99, %v91, 0
    %v116 = vsel %vm99, %v92, 0
    %v119 = vsel %vm99, %v93, 0
    %v122 = vsel %vm99, %v94, 0
    %124 = vmatprep.subr.mxu0 0.0
    %125 = vmatpush1.msra.mxu0 %v95
    %126 = vmatprep.subr.mxu0 0.0
    %127 = vmatpush1.msra.mxu0 %v96
    %128 = vmatprep.subr.mxu0 0.0
    %129 = vmatpush1.msra.mxu0 %v97
    %130 = vmatprep.subr.mxu0 0.0
    %131 = vmatpush1.msra.mxu0 %v98
    %132 = vmatprep.subr.mxu0 0.0
    %133 = vmatpush1.msra.mxu0 0.0
    %134 = vmatprep.subr.mxu0 0.0
    %135 = vmatpush1.msra.mxu0 0.0
    %136 = vmatprep.subr.mxu0 0.0
    %137 = vmatpush1.msra.mxu0 0.0
    %138 = vmatprep.subr.mxu0 0.0
    %139 = vmatpush1.msra.mxu0 0.0
    %140 = vmatprep.subr.mxu0 0.0
    %141 = vmatpush1.msra.mxu0 0.0
    %142 = vmatprep.subr.mxu0 0.0
    %143 = vmatpush1.msra.mxu0 0.0
    %144 = vmatprep.subr.mxu0 0.0
    %145 = vmatpush1.msra.mxu0 0.0
    %146 = vmatprep.subr.mxu0 0.0
    %147 = vmatpush1.msra.mxu0 0.0
    %148 = vmatprep.subr.mxu0 0.0
    %149 = vmatpush1.msra.mxu0 0.0
    %150 = vmatprep.subr.mxu0 0.0
    %151 = vmatpush1.msra.mxu0 0.0
    %152 = vmatprep.subr.mxu0 0.0
    %153 = vmatpush1.msra.mxu0 0.0
    %154 = vmatprep.subr.mxu0 0.0
    %155 = vmatpush1.msra.mxu0 0.0
    %156 = vmatprep.subr.mxu0 0.0
    %157 = vmatpush1.msra.mxu0 0.0
    %158 = vmatprep.subr.mxu0 0.0
    %159 = vmatpush1.msra.mxu0 0.0
    %160 = vmatprep.subr.mxu0 0.0
    %161 = vmatpush1.msra.mxu0 0.0
    %162 = vmatprep.subr.mxu0 0.0
    %163 = vmatpush1.msra.mxu0 0.0
    %164 = vmatprep.subr.mxu0 0.0
    %165 = vmatpush1.msra.mxu0 0.0
    %166 = vmatprep.subr.mxu0 0.0
    %167 = vmatpush1.msra.mxu0 0.0
    %168 = vmatprep.subr.mxu0 0.0
    %169 = vmatpush1.msra.mxu0 0.0
    %170 = vmatprep.subr.mxu0 0.0
    %171 = vmatpush1.msra.mxu0 0.0
    %172 = vmatprep.subr.mxu0 0.0
    %173 = vmatpush1.msra.mxu0 0.0
    %174 = vmatprep.subr.mxu0 0.0
    %175 = vmatpush1.msra.mxu0 0.0
    %176 = vmatprep.subr.mxu0 0.0
    %177 = vmatpush1.msra.mxu0 0.0
    %178 = vmatprep.subr.mxu0 0.0
    %179 = vmatpush1.msra.mxu0 0.0
    %180 = vmatprep.subr.mxu0 0.0
    %181 = vmatpush1.msra.mxu0 0.0
    %182 = vmatprep.subr.mxu0 0.0
    %183 = vmatpush1.msra.mxu0 0.0
    %184 = vmatprep.subr.mxu0 0.0
    %185 = vmatpush1.msra.mxu0 0.0
    %186 = vmatprep.subr.mxu0 0.0
    %187 = vmatpush1.msra.mxu0 0.0
    %188 = vmatprep.mubr.f32.mxu0 0.0
    %189 = vmatmul.mubr.f32.gmra.mrb[0].mxu0 %v101
    %v190 = vpop.f32.mrb[0].mxu0
    %v191 = vadd.f32 0.0, %v190
    %v192 = vpop.f32.mrb[0].mxu0
    %193 = vmatprep.mubr.f32.mxu0 0.0
    %194 = vmatmul.mubr.f32.gmra.mrb[0].mxu0 %v104
    %v195 = vpop.f32.mrb[0].mxu0
    %v196 = vadd.f32 0.0, %v195
    %v197 = vpop.f32.mrb[0].mxu0
    %198 = vmatprep.mubr.f32.mxu0 0.0
    %199 = vmatmul.mubr.f32.gmra.mrb[0].mxu0 %v107
    %v200 = vpop.f32.mrb[0].mxu0
    %v201 = vadd.f32 0.0, %v200
    %v202 = vpop.f32.mrb[0].mxu0
    %203 = vmatprep.mubr.f32.mxu0 0.0
    %204 = vmatmul.mubr.f32.gmra.mrb[0].mxu0 %v110
    %v205 = vpop.f32.mrb[0].mxu0
    %v206 = vadd.f32 0.0, %v205
    %v207 = vpop.f32.mrb[0].mxu0
    %208 = vmatprep.mubr.f32.mxu0 0.0
    %209 = vmatmul.mubr.f32.gmra.mrb[0].mxu0 %v113
    %v210 = vpop.f32.mrb[0].mxu0
    %v211 = vadd.f32 0.0, %v210
    %v212 = vpop.f32.mrb[0].mxu0
    %213 = vmatprep.mubr.f32.mxu0 0.0
    %214 = vmatmul.mubr.f32.gmra.mrb[0].mxu0 %v116
    %v215 = vpop.f32.mrb[0].mxu0
    %v216 = vadd.f32 0.0, %v215
    %v217 = vpop.f32.mrb[0].mxu0
    %218 = vmatprep.mubr.f32.mxu0 0.0
    %219 = vmatmul.mubr.f32.gmra.mrb[0].mxu0 %v119
    %v220 = vpop.f32.mrb[0].mxu0
    %v221 = vadd.f32 0.0, %v220
    %v222 = vpop.f32.mrb[0].mxu0
    %223 = vmatprep.mubr.f32.mxu0 0.0
    %224 = vmatmul.mubr.f32.gmra.mrb[0].mxu0 %v122
    %v225 = vpop.f32.mrb[0].mxu0
    %v226 = vadd.f32 0.0, %v225
    %v227 = vpop.f32.mrb[0].mxu0
    %228 = vdwg.mxu0
    %v229 = vld [vmem:[%s4] sm:$0x1]
    %v231 = vlaneseq
    %v232 = vshrl.u32 %v231, 7
    %v233 = vsub.s32 0, %v232
    %v234 = vrot.slane %v229, %v233
    %vm236 = vcmask 523264
    %v238 = vsel %vm236, %v85, 0
    %v241 = vsel %vm236, %v86, 0
    %243 = vmatprep.subr.mxu0 0.0
    %244 = vmatpush1.msra.mxu0 %v191
    %245 = vmatprep.subr.mxu0 0.0
    %246 = vmatpush1.msra.mxu0 %v196
    %247 = vmatprep.subr.mxu0 0.0
    %248 = vmatpush1.msra.mxu0 %v201
    %249 = vmatprep.subr.mxu0 0.0
    %250 = vmatpush1.msra.mxu0 %v206
    %251 = vmatprep.subr.mxu0 0.0
    %252 = vmatpush1.msra.mxu0 %v211
    %253 = vmatprep.subr.mxu0 0.0
    %254 = vmatpush1.msra.mxu0 %v216
    %255 = vmatprep.subr.mxu0 0.0
    %256 = vmatpush1.msra.mxu0 %v221
    %257 = vmatprep.subr.mxu0 0.0
    %258 = vmatpush1.msra.mxu0 %v226
    %259 = vmatprep.subr.mxu0 0.0
    %260 = vmatpush1.msra.mxu0 0.0
    %261 = vmatprep.subr.mxu0 0.0
    %262 = vmatpush1.msra.mxu0 0.0
    %263 = vmatprep.subr.mxu0 0.0
    %264 = vmatpush1.msra.mxu0 0.0
    %265 = vmatprep.subr.mxu0 0.0
    %266 = vmatpush1.msra.mxu0 0.0
    %267 = vmatprep.subr.mxu0 0.0
    %268 = vmatpush1.msra.mxu0 0.0
    %269 = vmatprep.subr.mxu0 0.0
    %270 = vmatpush1.msra.mxu0 0.0
    %271 = vmatprep.subr.mxu0 0.0
    %272 = vmatpush1.msra.mxu0 0.0
    %273 = vmatprep.subr.mxu0 0.0
    %274 = vmatpush1.msra.mxu0 0.0
    %275 = vmatprep.subr.mxu0 0.0
    %276 = vmatpush1.msra.mxu0 0.0
    %277 = vmatprep.subr.mxu0 0.0
    %278 = vmatpush1.msra.mxu0 0.0
    %279 = vmatprep.subr.mxu0 0.0
    %280 = vmatpush1.msra.mxu0 0.0
    %281 = vmatprep.subr.mxu0 0.0
    %282 = vmatpush1.msra.mxu0 0.0
    %283 = vmatprep.subr.mxu0 0.0
    %284 = vmatpush1.msra.mxu0 0.0
    %285 = vmatprep.subr.mxu0 0.0
    %286 = vmatpush1.msra.mxu0 0.0
    %287 = vmatprep.subr.mxu0 0.0
    %288 = vmatpush1.msra.mxu0 0.0
    %289 = vmatprep.subr.mxu0 0.0
    %290 = vmatpush1.msra.mxu0 0.0
    %291 = vmatprep.subr.mxu0 0.0
    %292 = vmatpush1.msra.mxu0 0.0
    %293 = vmatprep.subr.mxu0 0.0
    %294 = vmatpush1.msra.mxu0 0.0
    %295 = vmatprep.subr.mxu0 0.0
    %296 = vmatpush1.msra.mxu0 0.0
    %297 = vmatprep.subr.mxu0 0.0
    %298 = vmatpush1.msra.mxu0 0.0
    %299 = vmatprep.subr.mxu0 0.0
    %300 = vmatpush1.msra.mxu0 0.0
    %301 = vmatprep.subr.mxu0 0.0
    %302 = vmatpush1.msra.mxu0 0.0
    %303 = vmatprep.subr.mxu0 0.0
    %304 = vmatpush1.msra.mxu0 0.0
    %305 = vmatprep.subr.mxu0 0.0
    %306 = vmatpush1.msra.mxu0 0.0
    %307 = vmatprep.mubr.f32.mxu0 0.0
    %308 = vmatmul.mubr.f32.gmra.mrb[0].mxu0 %v238
    %v309 = vpop.f32.mrb[0].mxu0
    %v310 = vadd.f32 %v234, %v309
    %v311 = vpop.f32.mrb[0].mxu0
    %312 = vmatprep.mubr.f32.mxu0 0.0
    %313 = vmatmul.mubr.f32.gmra.mrb[0].mxu0 %v241
    %v314 = vpop.f32.mrb[0].mxu0
    %v315 = vadd.f32 %v234, %v314
    %v316 = vpop.f32.mrb[0].mxu0
    %317 = vdwg.mxu0
    %v318 = vld [vmem:[%s8] sm:$0x3]
    %s319 = scalar_lea.vmem %s8, 2
    %v320 = vld [vmem:[%s319] sm:$0x3]
    %v321 = vld [vmem:[%s9] sm:$0x3]
    %s322 = scalar_lea.vmem %s9, 2
    %v323 = vld [vmem:[%s322] sm:$0x3]
    %v324 = vld [vmem:[%s3] sm:$0xff]
    %v325 = vld [vmem:[%s3 + $0x8] sm:$0xff]
    %v326 = vld [vmem:[%s3 + $0x10] sm:$0xff]
    %v327 = vld [vmem:[%s3 + $0x18] sm:$0xff]
    %v329 = vsel %vm99, %v318, 0
    %331 = vmatprep.subr.mxu0 0.0
    %332 = vmatpush1.msra.mxu0 %v324
    %333 = vmatprep.subr.mxu0 0.0
    %334 = vmatpush1.msra.mxu0 %v325
    %335 = vmatprep.subr.mxu0 0.0
    %336 = vmatpush1.msra.mxu0 %v326
    %337 = vmatprep.subr.mxu0 0.0
    %338 = vmatpush1.msra.mxu0 %v327
    %339 = vmatprep.subr.mxu0 0.0
    %340 = vmatpush1.msra.mxu0 0.0
    %341 = vmatprep.subr.mxu0 0.0
    %342 = vmatpush1.msra.mxu0 0.0
    %343 = vmatprep.subr.mxu0 0.0
    %344 = vmatpush1.msra.mxu0 0.0
    %345 = vmatprep.subr.mxu0 0.0
    %346 = vmatpush1.msra.mxu0 0.0
    %347 = vmatprep.subr.mxu0 0.0
    %348 = vmatpush1.msra.mxu0 0.0
    %349 = vmatprep.subr.mxu0 0.0
    %350 = vmatpush1.msra.mxu0 0.0
    %351 = vmatprep.subr.mxu0 0.0
    %352 = vmatpush1.msra.mxu0 0.0
    %353 = vmatprep.subr.mxu0 0.0
    %354 = vmatpush1.msra.mxu0 0.0
    %355 = vmatprep.subr.mxu0 0.0
    %356 = vmatpush1.msra.mxu0 0.0
    %357 = vmatprep.subr.mxu0 0.0
    %358 = vmatpush1.msra.mxu0 0.0
    %359 = vmatprep.subr.mxu0 0.0
    %360 = vmatpush1.msra.mxu0 0.0
    %361 = vmatprep.subr.mxu0 0.0
    %362 = vmatpush1.msra.mxu0 0.0
    %363 = vmatprep.subr.mxu0 0.0
    %364 = vmatpush1.msra.mxu0 0.0
    %365 = vmatprep.subr.mxu0 0.0
    %366 = vmatpush1.msra.mxu0 0.0
    %367 = vmatprep.subr.mxu0 0.0
    %368 = vmatpush1.msra.mxu0 0.0
    %369 = vmatprep.subr.mxu0 0.0
    %370 = vmatpush1.msra.mxu0 0.0
    %371 = vmatprep.subr.mxu0 0.0
    %372 = vmatpush1.msra.mxu0 0.0
    %373 = vmatprep.subr.mxu0 0.0
    %374 = vmatpush1.msra.mxu0 0.0
    %375 = vmatprep.subr.mxu0 0.0
    %376 = vmatpush1.msra.mxu0 0.0
    %377 = vmatprep.subr.mxu0 0.0
    %378 = vmatpush1.msra.mxu0 0.0
    %379 = vmatprep.subr.mxu0 0.0
    %380 = vmatpush1.msra.mxu0 0.0
    %381 = vmatprep.subr.mxu0 0.0
    %382 = vmatpush1.msra.mxu0 0.0
    %383 = vmatprep.subr.mxu0 0.0
    %384 = vmatpush1.msra.mxu0 0.0
    %385 = vmatprep.subr.mxu0 0.0
    %386 = vmatpush1.msra.mxu0 0.0
    %387 = vmatprep.subr.mxu0 0.0
    %388 = vmatpush1.msra.mxu0 0.0
    %389 = vmatprep.subr.mxu0 0.0
    %390 = vmatpush1.msra.mxu0 0.0
    %391 = vmatprep.subr.mxu0 0.0
    %392 = vmatpush1.msra.mxu0 0.0
    %393 = vmatprep.subr.mxu0 0.0
    %394 = vmatpush1.msra.mxu0 0.0
    %395 = vmatprep.mubr.f32.mxu0 0.0
    %396 = vmatmul.mubr.f32.gmra.mrb[0].mxu0 %v329
    %v397 = vpop.f32.mrb[0].mxu0
    %v398 = vadd.f32 0.0, %v397
    %v399 = vpop.f32.mrb[0].mxu0
    %400 = vdwg.mxu0
    %v401 = vadd.f32 %v310, %v398
    %v402 = vxor.u32 %v401, 2147483648
    %v403 = vmul.f32 %v402, 1.442695
    %v404 = vpow.pop %v403
    %v405 = vadd.f32 %v404, 1.0
    %v406 = vrcp.pop %v405
    %v407 = vmul.f32 1.0, %v406
    %v408 = vtanh.pop %v401
    %410 = vrot.lane.b32.xlu0 %v321, 32
    %v411 = vpop.permute.xlu0 %410
    %v413 = vmul.f32 %v407, %v411
    %415 = vrot.lane.b32.xlu0 %v408, 64
    %v416 = vpop.permute.xlu0 %415
    %v418 = vmul.f32 %v407, %v416
    %420 = vrot.lane.b32.xlu0 %v418, 32
    %v421 = vpop.permute.xlu0 %420
    %v423 = vadd.f32 %v413, %v421
    %v424 = vtanh.pop %v423
    %426 = vrot.lane.b32.xlu0 %v424, 64
    %v427 = vpop.permute.xlu0 %426
    %v429 = vmul.f32 %v407, %v427
    %v430 = vld [vmem:[%s5] sm:$0xff]
    %v431 = vld [vmem:[%s5 + $0x8] sm:$0xff]
    %v432 = vld [vmem:[%s5 + $0x10] sm:$0xff]
    %v433 = vld [vmem:[%s5 + $0x18] sm:$0xff]
    %v434 = vld [vmem:[#allocation2] sm:$0xff]
    %v435 = vld [vmem:[#allocation2 + $0x8] sm:$0xff]
    %v436 = vld [vmem:[#allocation2 + $0x10] sm:$0xff]
    %v437 = vld [vmem:[#allocation2 + $0x18] sm:$0xff]
    %v439 = vsel %vm99, %v320, 0
    %441 = vmatprep.subr.mxu0 0.0
    %442 = vmatpush1.msra.mxu0 %v434
    %443 = vmatprep.subr.mxu0 0.0
    %444 = vmatpush1.msra.mxu0 %v435
    %445 = vmatprep.subr.mxu0 0.0
    %446 = vmatpush1.msra.mxu0 %v436
    %447 = vmatprep.subr.mxu0 0.0
    %448 = vmatpush1.msra.mxu0 %v437
    %449 = vmatprep.subr.mxu0 0.0
    %450 = vmatpush1.msra.mxu0 0.0
    %451 = vmatprep.subr.mxu0 0.0
    %452 = vmatpush1.msra.mxu0 0.0
    %453 = vmatprep.subr.mxu0 0.0
    %454 = vmatpush1.msra.mxu0 0.0
    %455 = vmatprep.subr.mxu0 0.0
    %456 = vmatpush1.msra.mxu0 0.0
    %457 = vmatprep.subr.mxu0 0.0
    %458 = vmatpush1.msra.mxu0 0.0
    %459 = vmatprep.subr.mxu0 0.0
    %460 = vmatpush1.msra.mxu0 0.0
    %461 = vmatprep.subr.mxu0 0.0
    %462 = vmatpush1.msra.mxu0 0.0
    %463 = vmatprep.subr.mxu0 0.0
    %464 = vmatpush1.msra.mxu0 0.0
    %465 = vmatprep.subr.mxu0 0.0
    %466 = vmatpush1.msra.mxu0 0.0
    %467 = vmatprep.subr.mxu0 0.0
    %468 = vmatpush1.msra.mxu0 0.0
    %469 = vmatprep.subr.mxu0 0.0
    %470 = vmatpush1.msra.mxu0 0.0
    %471 = vmatprep.subr.mxu0 0.0
    %472 = vmatpush1.msra.mxu0 0.0
    %473 = vmatprep.subr.mxu0 0.0
    %474 = vmatpush1.msra.mxu0 0.0
    %475 = vmatprep.subr.mxu0 0.0
    %476 = vmatpush1.msra.mxu0 0.0
    %477 = vmatprep.subr.mxu0 0.0
    %478 = vmatpush1.msra.mxu0 0.0
    %479 = vmatprep.subr.mxu0 0.0
    %480 = vmatpush1.msra.mxu0 0.0
    %481 = vmatprep.subr.mxu0 0.0
    %482 = vmatpush1.msra.mxu0 0.0
    %483 = vmatprep.subr.mxu0 0.0
    %484 = vmatpush1.msra.mxu0 0.0
    %485 = vmatprep.subr.mxu0 0.0
    %486 = vmatpush1.msra.mxu0 0.0
    %487 = vmatprep.subr.mxu0 0.0
    %488 = vmatpush1.msra.mxu0 0.0
    %489 = vmatprep.subr.mxu0 0.0
    %490 = vmatpush1.msra.mxu0 0.0
    %491 = vmatprep.subr.mxu0 0.0
    %492 = vmatpush1.msra.mxu0 0.0
    %493 = vmatprep.subr.mxu0 0.0
    %494 = vmatpush1.msra.mxu0 0.0
    %495 = vmatprep.subr.mxu0 0.0
    %496 = vmatpush1.msra.mxu0 0.0
    %497 = vmatprep.subr.mxu0 0.0
    %498 = vmatpush1.msra.mxu0 0.0
    %499 = vmatprep.subr.mxu0 0.0
    %500 = vmatpush1.msra.mxu0 0.0
    %501 = vmatprep.subr.mxu0 0.0
    %502 = vmatpush1.msra.mxu0 0.0
    %503 = vmatprep.subr.mxu0 0.0
    %504 = vmatpush1.msra.mxu0 0.0
    %505 = vmatprep.mubr.f32.mxu0 0.0
    %506 = vmatmul.mubr.f32.gmra.mrb[0].mxu0 %v439
    %v507 = vpop.f32.mrb[0].mxu0
    %v508 = vadd.f32 0.0, %v507
    %v509 = vpop.f32.mrb[0].mxu0
    %510 = vdwg.mxu0
    %512 = vrot.lane.b32.xlu0 %v429, 32
    %v513 = vpop.permute.xlu0 %512
    %v514 = vsel %vm99, %v513, 0
    %516 = vmatprep.subr.mxu0 0.0
    %517 = vmatpush1.msra.mxu0 %v430
    %518 = vmatprep.subr.mxu0 0.0
    %519 = vmatpush1.msra.mxu0 %v431
    %520 = vmatprep.subr.mxu0 0.0
    %521 = vmatpush1.msra.mxu0 %v432
    %522 = vmatprep.subr.mxu0 0.0
    %523 = vmatpush1.msra.mxu0 %v433
    %524 = vmatprep.subr.mxu0 0.0
    %525 = vmatpush1.msra.mxu0 0.0
    %526 = vmatprep.subr.mxu0 0.0
    %527 = vmatpush1.msra.mxu0 0.0
    %528 = vmatprep.subr.mxu0 0.0
    %529 = vmatpush1.msra.mxu0 0.0
    %530 = vmatprep.subr.mxu0 0.0
    %531 = vmatpush1.msra.mxu0 0.0
    %532 = vmatprep.subr.mxu0 0.0
    %533 = vmatpush1.msra.mxu0 0.0
    %534 = vmatprep.subr.mxu0 0.0
    %535 = vmatpush1.msra.mxu0 0.0
    %536 = vmatprep.subr.mxu0 0.0
    %537 = vmatpush1.msra.mxu0 0.0
    %538 = vmatprep.subr.mxu0 0.0
    %539 = vmatpush1.msra.mxu0 0.0
    %540 = vmatprep.subr.mxu0 0.0
    %541 = vmatpush1.msra.mxu0 0.0
    %542 = vmatprep.subr.mxu0 0.0
    %543 = vmatpush1.msra.mxu0 0.0
    %544 = vmatprep.subr.mxu0 0.0
    %545 = vmatpush1.msra.mxu0 0.0
    %546 = vmatprep.subr.mxu0 0.0
    %547 = vmatpush1.msra.mxu0 0.0
    %548 = vmatprep.subr.mxu0 0.0
    %549 = vmatpush1.msra.mxu0 0.0
    %550 = vmatprep.subr.mxu0 0.0
    %551 = vmatpush1.msra.mxu0 0.0
    %552 = vmatprep.subr.mxu0 0.0
    %553 = vmatpush1.msra.mxu0 0.0
    %554 = vmatprep.subr.mxu0 0.0
    %555 = vmatpush1.msra.mxu0 0.0
    %556 = vmatprep.subr.mxu0 0.0
    %557 = vmatpush1.msra.mxu0 0.0
    %558 = vmatprep.subr.mxu0 0.0
    %559 = vmatpush1.msra.mxu0 0.0
    %560 = vmatprep.subr.mxu0 0.0
    %561 = vmatpush1.msra.mxu0 0.0
    %562 = vmatprep.subr.mxu0 0.0
    %563 = vmatpush1.msra.mxu0 0.0
    %564 = vmatprep.subr.mxu0 0.0
    %565 = vmatpush1.msra.mxu0 0.0
    %566 = vmatprep.subr.mxu0 0.0
    %567 = vmatpush1.msra.mxu0 0.0
    %568 = vmatprep.subr.mxu0 0.0
    %569 = vmatpush1.msra.mxu0 0.0
    %570 = vmatprep.subr.mxu0 0.0
    %571 = vmatpush1.msra.mxu0 0.0
    %572 = vmatprep.subr.mxu0 0.0
    %573 = vmatpush1.msra.mxu0 0.0
    %574 = vmatprep.subr.mxu0 0.0
    %575 = vmatpush1.msra.mxu0 0.0
    %576 = vmatprep.subr.mxu0 0.0
    %577 = vmatpush1.msra.mxu0 0.0
    %578 = vmatprep.subr.mxu0 0.0
    %579 = vmatpush1.msra.mxu0 0.0
    %580 = vmatprep.mubr.f32.mxu0 0.0
    %581 = vmatmul.mubr.f32.gmra.mrb[0].mxu0 %v514
    %v582 = vpop.f32.mrb[0].mxu0
    %v583 = vadd.f32 %v508, %v582
    %v584 = vpop.f32.mrb[0].mxu0
    %585 = vdwg.mxu0
    %v586 = vld [vmem:[%s7] sm:$0x1]
    %v588 = vlaneseq
    %v589 = vshrl.u32 %v588, 7
    %v590 = vsub.s32 0, %v589
    %v591 = vrot.slane %v586, %v590
    %v593 = vadd.f32 %v583, %v591
    %v594 = vxor.u32 %v593, 2147483648
    %v595 = vmul.f32 %v594, 1.442695
    %v596 = vpow.pop %v595
    %v597 = vadd.f32 %v596, 1.0
    %v598 = vrcp.pop %v597
    %v599 = vmul.f32 1.0, %v598
    %v600 = vtanh.pop %v593
    %602 = vrot.lane.b32.xlu0 %v323, 32
    %v603 = vpop.permute.xlu0 %602
    %v605 = vmul.f32 %v599, %v603
    %607 = vrot.lane.b32.xlu0 %v600, 64
    %v608 = vpop.permute.xlu0 %607
    %v610 = vmul.f32 %v599, %v608
    %612 = vrot.lane.b32.xlu0 %v610, 32
    %v613 = vpop.permute.xlu0 %612
    %v615 = vadd.f32 %v605, %v613
    %v616 = vtanh.pop %v615
    %618 = vrot.lane.b32.xlu0 %v616, 64
    %v619 = vpop.permute.xlu0 %618
    %v621 = vmul.f32 %v599, %v619
    %622 = vmatprep.subr.mxu0 0.0
    %623 = vmatpush1.msra.mxu0 %v324
    %624 = vmatprep.subr.mxu0 0.0
    %625 = vmatpush1.msra.mxu0 %v325
    %626 = vmatprep.subr.mxu0 0.0
    %627 = vmatpush1.msra.mxu0 %v326
    %628 = vmatprep.subr.mxu0 0.0
    %629 = vmatpush1.msra.mxu0 %v327
    %630 = vmatprep.subr.mxu0 0.0
    %631 = vmatpush1.msra.mxu0 0.0
    %632 = vmatprep.subr.mxu0 0.0
    %633 = vmatpush1.msra.mxu0 0.0
    %634 = vmatprep.subr.mxu0 0.0
    %635 = vmatpush1.msra.mxu0 0.0
    %636 = vmatprep.subr.mxu0 0.0
    %637 = vmatpush1.msra.mxu0 0.0
    %638 = vmatprep.subr.mxu0 0.0
    %639 = vmatpush1.msra.mxu0 0.0
    %640 = vmatprep.subr.mxu0 0.0
    %641 = vmatpush1.msra.mxu0 0.0
    %642 = vmatprep.subr.mxu0 0.0
    %643 = vmatpush1.msra.mxu0 0.0
    %644 = vmatprep.subr.mxu0 0.0
    %645 = vmatpush1.msra.mxu0 0.0
    %646 = vmatprep.subr.mxu0 0.0
    %647 = vmatpush1.msra.mxu0 0.0
    %648 = vmatprep.subr.mxu0 0.0
    %649 = vmatpush1.msra.mxu0 0.0
    %650 = vmatprep.subr.mxu0 0.0
    %651 = vmatpush1.msra.mxu0 0.0
    %652 = vmatprep.subr.mxu0 0.0
    %653 = vmatpush1.msra.mxu0 0.0
    %654 = vmatprep.subr.mxu0 0.0
    %655 = vmatpush1.msra.mxu0 0.0
    %656 = vmatprep.subr.mxu0 0.0
    %657 = vmatpush1.msra.mxu0 0.0
    %658 = vmatprep.subr.mxu0 0.0
    %659 = vmatpush1.msra.mxu0 0.0
    %660 = vmatprep.subr.mxu0 0.0
    %661 = vmatpush1.msra.mxu0 0.0
    %662 = vmatprep.subr.mxu0 0.0
    %663 = vmatpush1.msra.mxu0 0.0
    %664 = vmatprep.subr.mxu0 0.0
    %665 = vmatpush1.msra.mxu0 0.0
    %666 = vmatprep.subr.mxu0 0.0
    %667 = vmatpush1.msra.mxu0 0.0
    %668 = vmatprep.subr.mxu0 0.0
    %669 = vmatpush1.msra.mxu0 0.0
    %670 = vmatprep.subr.mxu0 0.0
    %671 = vmatpush1.msra.mxu0 0.0
    %672 = vmatprep.subr.mxu0 0.0
    %673 = vmatpush1.msra.mxu0 0.0
    %674 = vmatprep.subr.mxu0 0.0
    %675 = vmatpush1.msra.mxu0 0.0
    %676 = vmatprep.subr.mxu0 0.0
    %677 = vmatpush1.msra.mxu0 0.0
    %678 = vmatprep.subr.mxu0 0.0
    %679 = vmatpush1.msra.mxu0 0.0
    %680 = vmatprep.subr.mxu0 0.0
    %681 = vmatpush1.msra.mxu0 0.0
    %682 = vmatprep.subr.mxu0 0.0
    %683 = vmatpush1.msra.mxu0 0.0
    %684 = vmatprep.subr.mxu0 0.0
    %685 = vmatpush1.msra.mxu0 0.0
    %686 = vmatprep.mubr.f32.mxu0 0.0
    %687 = vmatmul.mubr.f32.gmra.mrb[0].mxu0 %v514
    %v688 = vpop.f32.mrb[0].mxu0
    %v689 = vadd.f32 0.0, %v688
    %v690 = vpop.f32.mrb[0].mxu0
    %691 = vdwg.mxu0
    %v693 = vrot.slane %v689, 6
    %v695 = vadd.f32 %v310, %v693
    %v696 = vxor.u32 %v695, 2147483648
    %v697 = vmul.f32 %v696, 1.442695
    %v698 = vpow.pop %v697
    %v699 = vadd.f32 %v698, 1.0
    %v700 = vrcp.pop %v699
    %v701 = vmul.f32 1.0, %v700
    %v702 = vtanh.pop %v695
    %v704 = vrot.slane %v423, 6
    %v706 = vmul.f32 %v701, %v704
    %708 = vrot.lane.b32.xlu0 %v702, 64
    %v709 = vpop.permute.xlu0 %708
    %v711 = vmul.f32 %v701, %v709
    %713 = vrot.lane.b32.xlu0 %v711, 32
    %v714 = vpop.permute.xlu0 %713
    %v716 = vadd.f32 %v706, %v714
    %v717 = vtanh.pop %v716
    %719 = vrot.lane.b32.xlu0 %v717, 64
    %v720 = vpop.permute.xlu0 %719
    %v722 = vmul.f32 %v701, %v720
    %724 = vrot.lane.b32.xlu0 %v621, 32
    %v725 = vpop.permute.xlu0 %724
    %v726 = vsel %vm99, %v725, 0
    %728 = vmatprep.subr.mxu0 0.0
    %729 = vmatpush1.msra.mxu0 %v434
    %730 = vmatprep.subr.mxu0 0.0
    %731 = vmatpush1.msra.mxu0 %v435
    %732 = vmatprep.subr.mxu0 0.0
    %733 = vmatpush1.msra.mxu0 %v436
    %734 = vmatprep.subr.mxu0 0.0
    %735 = vmatpush1.msra.mxu0 %v437
    %736 = vmatprep.subr.mxu0 0.0
    %737 = vmatpush1.msra.mxu0 0.0
    %738 = vmatprep.subr.mxu0 0.0
    %739 = vmatpush1.msra.mxu0 0.0
    %740 = vmatprep.subr.mxu0 0.0
    %741 = vmatpush1.msra.mxu0 0.0
    %742 = vmatprep.subr.mxu0 0.0
    %743 = vmatpush1.msra.mxu0 0.0
    %744 = vmatprep.subr.mxu0 0.0
    %745 = vmatpush1.msra.mxu0 0.0
    %746 = vmatprep.subr.mxu0 0.0
    %747 = vmatpush1.msra.mxu0 0.0
    %748 = vmatprep.subr.mxu0 0.0
    %749 = vmatpush1.msra.mxu0 0.0
    %750 = vmatprep.subr.mxu0 0.0
    %751 = vmatpush1.msra.mxu0 0.0
    %752 = vmatprep.subr.mxu0 0.0
    %753 = vmatpush1.msra.mxu0 0.0
    %754 = vmatprep.subr.mxu0 0.0
    %755 = vmatpush1.msra.mxu0 0.0
    %756 = vmatprep.subr.mxu0 0.0
    %757 = vmatpush1.msra.mxu0 0.0
    %758 = vmatprep.subr.mxu0 0.0
    %759 = vmatpush1.msra.mxu0 0.0
    %760 = vmatprep.subr.mxu0 0.0
    %761 = vmatpush1.msra.mxu0 0.0
    %762 = vmatprep.subr.mxu0 0.0
    %763 = vmatpush1.msra.mxu0 0.0
    %764 = vmatprep.subr.mxu0 0.0
    %765 = vmatpush1.msra.mxu0 0.0
    %766 = vmatprep.subr.mxu0 0.0
    %767 = vmatpush1.msra.mxu0 0.0
    %768 = vmatprep.subr.mxu0 0.0
    %769 = vmatpush1.msra.mxu0 0.0
    %770 = vmatprep.subr.mxu0 0.0
    %771 = vmatpush1.msra.mxu0 0.0
    %772 = vmatprep.subr.mxu0 0.0
    %773 = vmatpush1.msra.mxu0 0.0
    %774 = vmatprep.subr.mxu0 0.0
    %775 = vmatpush1.msra.mxu0 0.0
    %776 = vmatprep.subr.mxu0 0.0
    %777 = vmatpush1.msra.mxu0 0.0
    %778 = vmatprep.subr.mxu0 0.0
    %779 = vmatpush1.msra.mxu0 0.0
    %780 = vmatprep.subr.mxu0 0.0
    %781 = vmatpush1.msra.mxu0 0.0
    %782 = vmatprep.subr.mxu0 0.0
    %783 = vmatpush1.msra.mxu0 0.0
    %784 = vmatprep.subr.mxu0 0.0
    %785 = vmatpush1.msra.mxu0 0.0
    %786 = vmatprep.subr.mxu0 0.0
    %787 = vmatpush1.msra.mxu0 0.0
    %788 = vmatprep.subr.mxu0 0.0
    %789 = vmatpush1.msra.mxu0 0.0
    %790 = vmatprep.subr.mxu0 0.0
    %791 = vmatpush1.msra.mxu0 0.0
    %792 = vmatprep.mubr.f32.mxu0 0.0
    %793 = vmatmul.mubr.f32.gmra.mrb[0].mxu0 %v726
    %v794 = vpop.f32.mrb[0].mxu0
    %v795 = vadd.f32 0.0, %v794
    %v796 = vpop.f32.mrb[0].mxu0
    %797 = vdwg.mxu0
    %v799 = vrot.slane %v722, 2
    %800 = vrot.lane.b32.xlu0 %v799, 32
    %v801 = vpop.permute.xlu0 %800
    %v802 = vsel %vm99, %v801, 0
    %804 = vmatprep.subr.mxu0 0.0
    %805 = vmatpush1.msra.mxu0 %v430
    %806 = vmatprep.subr.mxu0 0.0
    %807 = vmatpush1.msra.mxu0 %v431
    %808 = vmatprep.subr.mxu0 0.0
    %809 = vmatpush1.msra.mxu0 %v432
    %810 = vmatprep.subr.mxu0 0.0
    %811 = vmatpush1.msra.mxu0 %v433
    %812 = vmatprep.subr.mxu0 0.0
    %813 = vmatpush1.msra.mxu0 0.0
    %814 = vmatprep.subr.mxu0 0.0
    %815 = vmatpush1.msra.mxu0 0.0
    %816 = vmatprep.subr.mxu0 0.0
    %817 = vmatpush1.msra.mxu0 0.0
    %818 = vmatprep.subr.mxu0 0.0
    %819 = vmatpush1.msra.mxu0 0.0
    %820 = vmatprep.subr.mxu0 0.0
    %821 = vmatpush1.msra.mxu0 0.0
    %822 = vmatprep.subr.mxu0 0.0
    %823 = vmatpush1.msra.mxu0 0.0
    %824 = vmatprep.subr.mxu0 0.0
    %825 = vmatpush1.msra.mxu0 0.0
    %826 = vmatprep.subr.mxu0 0.0
    %827 = vmatpush1.msra.mxu0 0.0
    %828 = vmatprep.subr.mxu0 0.0
    %829 = vmatpush1.msra.mxu0 0.0
    %830 = vmatprep.subr.mxu0 0.0
    %831 = vmatpush1.msra.mxu0 0.0
    %832 = vmatprep.subr.mxu0 0.0
    %833 = vmatpush1.msra.mxu0 0.0
    %834 = vmatprep.subr.mxu0 0.0
    %835 = vmatpush1.msra.mxu0 0.0
    %836 = vmatprep.subr.mxu0 0.0
    %837 = vmatpush1.msra.mxu0 0.0
    %838 = vmatprep.subr.mxu0 0.0
    %839 = vmatpush1.msra.mxu0 0.0
    %840 = vmatprep.subr.mxu0 0.0
    %841 = vmatpush1.msra.mxu0 0.0
    %842 = vmatprep.subr.mxu0 0.0
    %843 = vmatpush1.msra.mxu0 0.0
    %844 = vmatprep.subr.mxu0 0.0
    %845 = vmatpush1.msra.mxu0 0.0
    %846 = vmatprep.subr.mxu0 0.0
    %847 = vmatpush1.msra.mxu0 0.0
    %848 = vmatprep.subr.mxu0 0.0
    %849 = vmatpush1.msra.mxu0 0.0
    %850 = vmatprep.subr.mxu0 0.0
    %851 = vmatpush1.msra.mxu0 0.0
    %852 = vmatprep.subr.mxu0 0.0
    %853 = vmatpush1.msra.mxu0 0.0
    %854 = vmatprep.subr.mxu0 0.0
    %855 = vmatpush1.msra.mxu0 0.0
    %856 = vmatprep.subr.mxu0 0.0
    %857 = vmatpush1.msra.mxu0 0.0
    %858 = vmatprep.subr.mxu0 0.0
    %859 = vmatpush1.msra.mxu0 0.0
    %860 = vmatprep.subr.mxu0 0.0
    %861 = vmatpush1.msra.mxu0 0.0
    %862 = vmatprep.subr.mxu0 0.0
    %863 = vmatpush1.msra.mxu0 0.0
    %864 = vmatprep.subr.mxu0 0.0
    %865 = vmatpush1.msra.mxu0 0.0
    %866 = vmatprep.subr.mxu0 0.0
    %867 = vmatpush1.msra.mxu0 0.0
    %868 = vmatprep.mubr.f32.mxu0 0.0
    %869 = vmatmul.mubr.f32.gmra.mrb[0].mxu0 %v802
    %v870 = vpop.f32.mrb[0].mxu0
    %v871 = vadd.f32 %v795, %v870
    %v872 = vpop.f32.mrb[0].mxu0
    %873 = vdwg.mxu0
    %v874 = vadd.f32 %v871, %v591
    %v875 = vxor.u32 %v874, 2147483648
    %v876 = vmul.f32 %v875, 1.442695
    %v877 = vpow.pop %v876
    %v878 = vadd.f32 %v877, 1.0
    %v879 = vrcp.pop %v878
    %v880 = vmul.f32 1.0, %v879
    %v881 = vtanh.pop %v874
    %v882 = vmul.f32 %v880, %v615
    %884 = vrot.lane.b32.xlu0 %v881, 64
    %v885 = vpop.permute.xlu0 %884
    %v887 = vmul.f32 %v880, %v885
    %889 = vrot.lane.b32.xlu0 %v887, 32
    %v890 = vpop.permute.xlu0 %889
    %v892 = vadd.f32 %v882, %v890
    %v893 = vtanh.pop %v892
    %895 = vrot.lane.b32.xlu0 %v893, 64
    %v896 = vpop.permute.xlu0 %895
    %v898 = vmul.f32 %v880, %v896
    %899 = vmatprep.subr.mxu0 0.0
    %900 = vmatpush1.msra.mxu0 %v324
    %901 = vmatprep.subr.mxu0 0.0
    %902 = vmatpush1.msra.mxu0 %v325
    %903 = vmatprep.subr.mxu0 0.0
    %904 = vmatpush1.msra.mxu0 %v326
    %905 = vmatprep.subr.mxu0 0.0
    %906 = vmatpush1.msra.mxu0 %v327
    %907 = vmatprep.subr.mxu0 0.0
    %908 = vmatpush1.msra.mxu0 0.0
    %909 = vmatprep.subr.mxu0 0.0
    %910 = vmatpush1.msra.mxu0 0.0
    %911 = vmatprep.subr.mxu0 0.0
    %912 = vmatpush1.msra.mxu0 0.0
    %913 = vmatprep.subr.mxu0 0.0
    %914 = vmatpush1.msra.mxu0 0.0
    %915 = vmatprep.subr.mxu0 0.0
    %916 = vmatpush1.msra.mxu0 0.0
    %917 = vmatprep.subr.mxu0 0.0
    %918 = vmatpush1.msra.mxu0 0.0
    %919 = vmatprep.subr.mxu0 0.0
    %920 = vmatpush1.msra.mxu0 0.0
    %921 = vmatprep.subr.mxu0 0.0
    %922 = vmatpush1.msra.mxu0 0.0
    %923 = vmatprep.subr.mxu0 0.0
    %924 = vmatpush1.msra.mxu0 0.0
    %925 = vmatprep.subr.mxu0 0.0
    %926 = vmatpush1.msra.mxu0 0.0
    %927 = vmatprep.subr.mxu0 0.0
    %928 = vmatpush1.msra.mxu0 0.0
    %929 = vmatprep.subr.mxu0 0.0
    %930 = vmatpush1.msra.mxu0 0.0
    %931 = vmatprep.subr.mxu0 0.0
    %932 = vmatpush1.msra.mxu0 0.0
    %933 = vmatprep.subr.mxu0 0.0
    %934 = vmatpush1.msra.mxu0 0.0
    %935 = vmatprep.subr.mxu0 0.0
    %936 = vmatpush1.msra.mxu0 0.0
    %937 = vmatprep.subr.mxu0 0.0
    %938 = vmatpush1.msra.mxu0 0.0
    %939 = vmatprep.subr.mxu0 0.0
    %940 = vmatpush1.msra.mxu0 0.0
    %941 = vmatprep.subr.mxu0 0.0
    %942 = vmatpush1.msra.mxu0 0.0
    %943 = vmatprep.subr.mxu0 0.0
    %944 = vmatpush1.msra.mxu0 0.0
    %945 = vmatprep.subr.mxu0 0.0
    %946 = vmatpush1.msra.mxu0 0.0
    %947 = vmatprep.subr.mxu0 0.0
    %948 = vmatpush1.msra.mxu0 0.0
    %949 = vmatprep.subr.mxu0 0.0
    %950 = vmatpush1.msra.mxu0 0.0
    %951 = vmatprep.subr.mxu0 0.0
    %952 = vmatpush1.msra.mxu0 0.0
    %953 = vmatprep.subr.mxu0 0.0
    %954 = vmatpush1.msra.mxu0 0.0
    %955 = vmatprep.subr.mxu0 0.0
    %956 = vmatpush1.msra.mxu0 0.0
    %957 = vmatprep.subr.mxu0 0.0
    %958 = vmatpush1.msra.mxu0 0.0
    %959 = vmatprep.subr.mxu0 0.0
    %960 = vmatpush1.msra.mxu0 0.0
    %961 = vmatprep.subr.mxu0 0.0
    %962 = vmatpush1.msra.mxu0 0.0
    %963 = vmatprep.mubr.f32.mxu0 0.0
    %964 = vmatmul.mubr.f32.gmra.mrb[0].mxu0 %v802
    %v965 = vpop.f32.mrb[0].mxu0
    %v966 = vadd.f32 0.0, %v965
    %v967 = vpop.f32.mrb[0].mxu0
    %968 = vdwg.mxu0
    %v970 = vrot.slane %v966, 4
    %v972 = vadd.f32 %v310, %v970
    %v973 = vxor.u32 %v972, 2147483648
    %v974 = vmul.f32 %v973, 1.442695
    %v975 = vpow.pop %v974
    %v976 = vadd.f32 %v975, 1.0
    %v977 = vrcp.pop %v976
    %v978 = vmul.f32 1.0, %v977
    %v979 = vtanh.pop %v972
    %v981 = vrot.slane %v716, 6
    %v983 = vmul.f32 %v978, %v981
    %985 = vrot.lane.b32.xlu0 %v979, 64
    %v986 = vpop.permute.xlu0 %985
    %v988 = vmul.f32 %v978, %v986
    %990 = vrot.lane.b32.xlu0 %v988, 32
    %v991 = vpop.permute.xlu0 %990
    %v993 = vadd.f32 %v983, %v991
    %v994 = vtanh.pop %v993
    %996 = vrot.lane.b32.xlu0 %v994, 64
    %v997 = vpop.permute.xlu0 %996
    %v999 = vmul.f32 %v978, %v997
    %1001 = vrot.lane.b32.xlu0 %v898, 32
    %v1002 = vpop.permute.xlu0 %1001
    %v1003 = vsel %vm99, %v1002, 0
    %1005 = vmatprep.subr.mxu0 0.0
    %1006 = vmatpush1.msra.mxu0 %v434
    %1007 = vmatprep.subr.mxu0 0.0
    %1008 = vmatpush1.msra.mxu0 %v435
    %1009 = vmatprep.subr.mxu0 0.0
    %1010 = vmatpush1.msra.mxu0 %v436
    %1011 = vmatprep.subr.mxu0 0.0
    %1012 = vmatpush1.msra.mxu0 %v437
    %1013 = vmatprep.subr.mxu0 0.0
    %1014 = vmatpush1.msra.mxu0 0.0
    %1015 = vmatprep.subr.mxu0 0.0
    %1016 = vmatpush1.msra.mxu0 0.0
    %1017 = vmatprep.subr.mxu0 0.0
    %1018 = vmatpush1.msra.mxu0 0.0
    %1019 = vmatprep.subr.mxu0 0.0
    %1020 = vmatpush1.msra.mxu0 0.0
    %1021 = vmatprep.subr.mxu0 0.0
    %1022 = vmatpush1.msra.mxu0 0.0
    %1023 = vmatprep.subr.mxu0 0.0
    %1024 = vmatpush1.msra.mxu0 0.0
    %1025 = vmatprep.subr.mxu0 0.0
    %1026 = vmatpush1.msra.mxu0 0.0
    %1027 = vmatprep.subr.mxu0 0.0
    %1028 = vmatpush1.msra.mxu0 0.0
    %1029 = vmatprep.subr.mxu0 0.0
    %1030 = vmatpush1.msra.mxu0 0.0
    %1031 = vmatprep.subr.mxu0 0.0
    %1032 = vmatpush1.msra.mxu0 0.0
    %1033 = vmatprep.subr.mxu0 0.0
    %1034 = vmatpush1.msra.mxu0 0.0
    %1035 = vmatprep.subr.mxu0 0.0
    %1036 = vmatpush1.msra.mxu0 0.0
    %1037 = vmatprep.subr.mxu0 0.0
    %1038 = vmatpush1.msra.mxu0 0.0
    %1039 = vmatprep.subr.mxu0 0.0
    %1040 = vmatpush1.msra.mxu0 0.0
    %1041 = vmatprep.subr.mxu0 0.0
    %1042 = vmatpush1.msra.mxu0 0.0
    %1043 = vmatprep.subr.mxu0 0.0
    %1044 = vmatpush1.msra.mxu0 0.0
    %1045 = vmatprep.subr.mxu0 0.0
    %1046 = vmatpush1.msra.mxu0 0.0
    %1047 = vmatprep.subr.mxu0 0.0
    %1048 = vmatpush1.msra.mxu0 0.0
    %1049 = vmatprep.subr.mxu0 0.0
    %1050 = vmatpush1.msra.mxu0 0.0
    %1051 = vmatprep.subr.mxu0 0.0
    %1052 = vmatpush1.msra.mxu0 0.0
    %1053 = vmatprep.subr.mxu0 0.0
    %1054 = vmatpush1.msra.mxu0 0.0
    %1055 = vmatprep.subr.mxu0 0.0
    %1056 = vmatpush1.msra.mxu0 0.0
    %1057 = vmatprep.subr.mxu0 0.0
    %1058 = vmatpush1.msra.mxu0 0.0
    %1059 = vmatprep.subr.mxu0 0.0
    %1060 = vmatpush1.msra.mxu0 0.0
    %1061 = vmatprep.subr.mxu0 0.0
    %1062 = vmatpush1.msra.mxu0 0.0
    %1063 = vmatprep.subr.mxu0 0.0
    %1064 = vmatpush1.msra.mxu0 0.0
    %1065 = vmatprep.subr.mxu0 0.0
    %1066 = vmatpush1.msra.mxu0 0.0
    %1067 = vmatprep.subr.mxu0 0.0
    %1068 = vmatpush1.msra.mxu0 0.0
    %1069 = vmatprep.mubr.f32.mxu0 0.0
    %1070 = vmatmul.mubr.f32.gmra.mrb[0].mxu0 %v1003
    %v1071 = vpop.f32.mrb[0].mxu0
    %v1072 = vadd.f32 0.0, %v1071
    %v1073 = vpop.f32.mrb[0].mxu0
    %1074 = vdwg.mxu0
    %v1076 = vrot.slane %v999, 4
    %1077 = vrot.lane.b32.xlu0 %v1076, 32
    %v1078 = vpop.permute.xlu0 %1077
    %v1079 = vsel %vm99, %v1078, 0
    %1081 = vmatprep.subr.mxu0 0.0
    %1082 = vmatpush1.msra.mxu0 %v430
    %1083 = vmatprep.subr.mxu0 0.0
    %1084 = vmatpush1.msra.mxu0 %v431
    %1085 = vmatprep.subr.mxu0 0.0
    %1086 = vmatpush1.msra.mxu0 %v432
    %1087 = vmatprep.subr.mxu0 0.0
    %1088 = vmatpush1.msra.mxu0 %v433
    %1089 = vmatprep.subr.mxu0 0.0
    %1090 = vmatpush1.msra.mxu0 0.0
    %1091 = vmatprep.subr.mxu0 0.0
    %1092 = vmatpush1.msra.mxu0 0.0
    %1093 = vmatprep.subr.mxu0 0.0
    %1094 = vmatpush1.msra.mxu0 0.0
    %1095 = vmatprep.subr.mxu0 0.0
    %1096 = vmatpush1.msra.mxu0 0.0
    %1097 = vmatprep.subr.mxu0 0.0
    %1098 = vmatpush1.msra.mxu0 0.0
    %1099 = vmatprep.subr.mxu0 0.0
    %1100 = vmatpush1.msra.mxu0 0.0
    %1101 = vmatprep.subr.mxu0 0.0
    %1102 = vmatpush1.msra.mxu0 0.0
    %1103 = vmatprep.subr.mxu0 0.0
    %1104 = vmatpush1.msra.mxu0 0.0
    %1105 = vmatprep.subr.mxu0 0.0
    %1106 = vmatpush1.msra.mxu0 0.0
    %1107 = vmatprep.subr.mxu0 0.0
    %1108 = vmatpush1.msra.mxu0 0.0
    %1109 = vmatprep.subr.mxu0 0.0
    %1110 = vmatpush1.msra.mxu0 0.0
    %1111 = vmatprep.subr.mxu0 0.0
    %1112 = vmatpush1.msra.mxu0 0.0
    %1113 = vmatprep.subr.mxu0 0.0
    %1114 = vmatpush1.msra.mxu0 0.0
    %1115 = vmatprep.subr.mxu0 0.0
    %1116 = vmatpush1.msra.mxu0 0.0
    %1117 = vmatprep.subr.mxu0 0.0
    %1118 = vmatpush1.msra.mxu0 0.0
    %1119 = vmatprep.subr.mxu0 0.0
    %1120 = vmatpush1.msra.mxu0 0.0
    %1121 = vmatprep.subr.mxu0 0.0
    %1122 = vmatpush1.msra.mxu0 0.0
    %1123 = vmatprep.subr.mxu0 0.0
    %1124 = vmatpush1.msra.mxu0 0.0
    %1125 = vmatprep.subr.mxu0 0.0
    %1126 = vmatpush1.msra.mxu0 0.0
    %1127 = vmatprep.subr.mxu0 0.0
    %1128 = vmatpush1.msra.mxu0 0.0
    %1129 = vmatprep.subr.mxu0 0.0
    %1130 = vmatpush1.msra.mxu0 0.0
    %1131 = vmatprep.subr.mxu0 0.0
    %1132 = vmatpush1.msra.mxu0 0.0
    %1133 = vmatprep.subr.mxu0 0.0
    %1134 = vmatpush1.msra.mxu0 0.0
    %1135 = vmatprep.subr.mxu0 0.0
    %1136 = vmatpush1.msra.mxu0 0.0
    %1137 = vmatprep.subr.mxu0 0.0
    %1138 = vmatpush1.msra.mxu0 0.0
    %1139 = vmatprep.subr.mxu0 0.0
    %1140 = vmatpush1.msra.mxu0 0.0
    %1141 = vmatprep.subr.mxu0 0.0
    %1142 = vmatpush1.msra.mxu0 0.0
    %1143 = vmatprep.subr.mxu0 0.0
    %1144 = vmatpush1.msra.mxu0 0.0
    %1145 = vmatprep.mubr.f32.mxu0 0.0
    %1146 = vmatmul.mubr.f32.gmra.mrb[0].mxu0 %v1079
    %v1147 = vpop.f32.mrb[0].mxu0
    %v1148 = vadd.f32 %v1072, %v1147
    %v1149 = vpop.f32.mrb[0].mxu0
    %1150 = vdwg.mxu0
    %v1151 = vadd.f32 %v1148, %v591
    %v1152 = vxor.u32 %v1151, 2147483648
    %v1153 = vmul.f32 %v1152, 1.442695
    %v1154 = vpow.pop %v1153
    %v1155 = vadd.f32 %v1154, 1.0
    %v1156 = vrcp.pop %v1155
    %v1157 = vmul.f32 1.0, %v1156
    %v1158 = vtanh.pop %v1151
    %v1159 = vmul.f32 %v1157, %v892
    %1161 = vrot.lane.b32.xlu0 %v1158, 64
    %v1162 = vpop.permute.xlu0 %1161
    %v1164 = vmul.f32 %v1157, %v1162
    %1166 = vrot.lane.b32.xlu0 %v1164, 32
    %v1167 = vpop.permute.xlu0 %1166
    %v1169 = vadd.f32 %v1159, %v1167
    %v1170 = vtanh.pop %v1169
    %1172 = vrot.lane.b32.xlu0 %v1170, 64
    %v1173 = vpop.permute.xlu0 %1172
    %v1175 = vmul.f32 %v1157, %v1173
    %1176 = vmatprep.subr.mxu0 0.0
    %1177 = vmatpush1.msra.mxu0 %v324
    %1178 = vmatprep.subr.mxu0 0.0
    %1179 = vmatpush1.msra.mxu0 %v325
    %1180 = vmatprep.subr.mxu0 0.0
    %1181 = vmatpush1.msra.mxu0 %v326
    %1182 = vmatprep.subr.mxu0 0.0
    %1183 = vmatpush1.msra.mxu0 %v327
    %1184 = vmatprep.subr.mxu0 0.0
    %1185 = vmatpush1.msra.mxu0 0.0
    %1186 = vmatprep.subr.mxu0 0.0
    %1187 = vmatpush1.msra.mxu0 0.0
    %1188 = vmatprep.subr.mxu0 0.0
    %1189 = vmatpush1.msra.mxu0 0.0
    %1190 = vmatprep.subr.mxu0 0.0
    %1191 = vmatpush1.msra.mxu0 0.0
    %1192 = vmatprep.subr.mxu0 0.0
    %1193 = vmatpush1.msra.mxu0 0.0
    %1194 = vmatprep.subr.mxu0 0.0
    %1195 = vmatpush1.msra.mxu0 0.0
    %1196 = vmatprep.subr.mxu0 0.0
    %1197 = vmatpush1.msra.mxu0 0.0
    %1198 = vmatprep.subr.mxu0 0.0
    %1199 = vmatpush1.msra.mxu0 0.0
    %1200 = vmatprep.subr.mxu0 0.0
    %1201 = vmatpush1.msra.mxu0 0.0
    %1202 = vmatprep.subr.mxu0 0.0
    %1203 = vmatpush1.msra.mxu0 0.0
    %1204 = vmatprep.subr.mxu0 0.0
    %1205 = vmatpush1.msra.mxu0 0.0
    %1206 = vmatprep.subr.mxu0 0.0
    %1207 = vmatpush1.msra.mxu0 0.0
    %1208 = vmatprep.subr.mxu0 0.0
    %1209 = vmatpush1.msra.mxu0 0.0
    %1210 = vmatprep.subr.mxu0 0.0
    %1211 = vmatpush1.msra.mxu0 0.0
    %1212 = vmatprep.subr.mxu0 0.0
    %1213 = vmatpush1.msra.mxu0 0.0
    %1214 = vmatprep.subr.mxu0 0.0
    %1215 = vmatpush1.msra.mxu0 0.0
    %1216 = vmatprep.subr.mxu0 0.0
    %1217 = vmatpush1.msra.mxu0 0.0
    %1218 = vmatprep.subr.mxu0 0.0
    %1219 = vmatpush1.msra.mxu0 0.0
    %1220 = vmatprep.subr.mxu0 0.0
    %1221 = vmatpush1.msra.mxu0 0.0
    %1222 = vmatprep.subr.mxu0 0.0
    %1223 = vmatpush1.msra.mxu0 0.0
    %1224 = vmatprep.subr.mxu0 0.0
    %1225 = vmatpush1.msra.mxu0 0.0
    %1226 = vmatprep.subr.mxu0 0.0
    %1227 = vmatpush1.msra.mxu0 0.0
    %1228 = vmatprep.subr.mxu0 0.0
    %1229 = vmatpush1.msra.mxu0 0.0
    %1230 = vmatprep.subr.mxu0 0.0
    %1231 = vmatpush1.msra.mxu0 0.0
    %1232 = vmatprep.subr.mxu0 0.0
    %1233 = vmatpush1.msra.mxu0 0.0
    %1234 = vmatprep.subr.mxu0 0.0
    %1235 = vmatpush1.msra.mxu0 0.0
    %1236 = vmatprep.subr.mxu0 0.0
    %1237 = vmatpush1.msra.mxu0 0.0
    %1238 = vmatprep.subr.mxu0 0.0
    %1239 = vmatpush1.msra.mxu0 0.0
    %1240 = vmatprep.mubr.f32.mxu0 0.0
    %1241 = vmatmul.mubr.f32.gmra.mrb[0].mxu0 %v1079
    %v1242 = vpop.f32.mrb[0].mxu0
    %v1243 = vadd.f32 0.0, %v1242
    %v1244 = vpop.f32.mrb[0].mxu0
    %1245 = vdwg.mxu0
    %v1247 = vrot.slane %v1243, 2
    %v1249 = vadd.f32 %v310, %v1247
    %v1250 = vxor.u32 %v1249, 2147483648
    %v1251 = vmul.f32 %v1250, 1.442695
    %v1252 = vpow.pop %v1251
    %v1253 = vadd.f32 %v1252, 1.0
    %v1254 = vrcp.pop %v1253
    %v1255 = vmul.f32 1.0, %v1254
    %v1256 = vtanh.pop %v1249
    %v1258 = vrot.slane %v993, 6
    %v1260 = vmul.f32 %v1255, %v1258
    %1262 = vrot.lane.b32.xlu0 %v1256, 64
    %v1263 = vpop.permute.xlu0 %1262
    %v1265 = vmul.f32 %v1255, %v1263
    %1267 = vrot.lane.b32.xlu0 %v1265, 32
    %v1268 = vpop.permute.xlu0 %1267
    %v1270 = vadd.f32 %v1260, %v1268
    %v1271 = vtanh.pop %v1270
    %1273 = vrot.lane.b32.xlu0 %v1271, 64
    %v1274 = vpop.permute.xlu0 %1273
    %v1276 = vmul.f32 %v1255, %v1274
    %1278 = vrot.lane.b32.xlu0 %v1175, 32
    %v1279 = vpop.permute.xlu0 %1278
    %v1280 = vsel %vm99, %v1279, 0
    %1282 = vmatprep.subr.mxu0 0.0
    %1283 = vmatpush1.msra.mxu0 %v434
    %1284 = vmatprep.subr.mxu0 0.0
    %1285 = vmatpush1.msra.mxu0 %v435
    %1286 = vmatprep.subr.mxu0 0.0
    %1287 = vmatpush1.msra.mxu0 %v436
    %1288 = vmatprep.subr.mxu0 0.0
    %1289 = vmatpush1.msra.mxu0 %v437
    %1290 = vmatprep.subr.mxu0 0.0
    %1291 = vmatpush1.msra.mxu0 0.0
    %1292 = vmatprep.subr.mxu0 0.0
    %1293 = vmatpush1.msra.mxu0 0.0
    %1294 = vmatprep.subr.mxu0 0.0
    %1295 = vmatpush1.msra.mxu0 0.0
    %1296 = vmatprep.subr.mxu0 0.0
    %1297 = vmatpush1.msra.mxu0 0.0
    %1298 = vmatprep.subr.mxu0 0.0
    %1299 = vmatpush1.msra.mxu0 0.0
    %1300 = vmatprep.subr.mxu0 0.0
    %1301 = vmatpush1.msra.mxu0 0.0
    %1302 = vmatprep.subr.mxu0 0.0
    %1303 = vmatpush1.msra.mxu0 0.0
    %1304 = vmatprep.subr.mxu0 0.0
    %1305 = vmatpush1.msra.mxu0 0.0
    %1306 = vmatprep.subr.mxu0 0.0
    %1307 = vmatpush1.msra.mxu0 0.0
    %1308 = vmatprep.subr.mxu0 0.0
    %1309 = vmatpush1.msra.mxu0 0.0
    %1310 = vmatprep.subr.mxu0 0.0
    %1311 = vmatpush1.msra.mxu0 0.0
    %1312 = vmatprep.subr.mxu0 0.0
    %1313 = vmatpush1.msra.mxu0 0.0
    %1314 = vmatprep.subr.mxu0 0.0
    %1315 = vmatpush1.msra.mxu0 0.0
    %1316 = vmatprep.subr.mxu0 0.0
    %1317 = vmatpush1.msra.mxu0 0.0
    %1318 = vmatprep.subr.mxu0 0.0
    %1319 = vmatpush1.msra.mxu0 0.0
    %1320 = vmatprep.subr.mxu0 0.0
    %1321 = vmatpush1.msra.mxu0 0.0
    %1322 = vmatprep.subr.mxu0 0.0
    %1323 = vmatpush1.msra.mxu0 0.0
    %1324 = vmatprep.subr.mxu0 0.0
    %1325 = vmatpush1.msra.mxu0 0.0
    %1326 = vmatprep.subr.mxu0 0.0
    %1327 = vmatpush1.msra.mxu0 0.0
    %1328 = vmatprep.subr.mxu0 0.0
    %1329 = vmatpush1.msra.mxu0 0.0
    %1330 = vmatprep.subr.mxu0 0.0
    %1331 = vmatpush1.msra.mxu0 0.0
    %1332 = vmatprep.subr.mxu0 0.0
    %1333 = vmatpush1.msra.mxu0 0.0
    %1334 = vmatprep.subr.mxu0 0.0
    %1335 = vmatpush1.msra.mxu0 0.0
    %1336 = vmatprep.subr.mxu0 0.0
    %1337 = vmatpush1.msra.mxu0 0.0
    %1338 = vmatprep.subr.mxu0 0.0
    %1339 = vmatpush1.msra.mxu0 0.0
    %1340 = vmatprep.subr.mxu0 0.0
    %1341 = vmatpush1.msra.mxu0 0.0
    %1342 = vmatprep.subr.mxu0 0.0
    %1343 = vmatpush1.msra.mxu0 0.0
    %1344 = vmatprep.subr.mxu0 0.0
    %1345 = vmatpush1.msra.mxu0 0.0
    %1346 = vmatprep.mubr.f32.mxu0 0.0
    %1347 = vmatmul.mubr.f32.gmra.mrb[0].mxu0 %v1280
    %v1348 = vpop.f32.mrb[0].mxu0
    %v1349 = vadd.f32 0.0, %v1348
    %v1350 = vpop.f32.mrb[0].mxu0
    %1351 = vdwg.mxu0
    %v1353 = vrot.slane %v1276, 6
    %1354 = vrot.lane.b32.xlu0 %v1353, 32
    %v1355 = vpop.permute.xlu0 %1354
    %v1356 = vsel %vm99, %v1355, 0
    %1358 = vmatprep.subr.mxu0 0.0
    %1359 = vmatpush1.msra.mxu0 %v430
    %1360 = vmatprep.subr.mxu0 0.0
    %1361 = vmatpush1.msra.mxu0 %v431
    %1362 = vmatprep.subr.mxu0 0.0
    %1363 = vmatpush1.msra.mxu0 %v432
    %1364 = vmatprep.subr.mxu0 0.0
    %1365 = vmatpush1.msra.mxu0 %v433
    %1366 = vmatprep.subr.mxu0 0.0
    %1367 = vmatpush1.msra.mxu0 0.0
    %1368 = vmatprep.subr.mxu0 0.0
    %1369 = vmatpush1.msra.mxu0 0.0
    %1370 = vmatprep.subr.mxu0 0.0
    %1371 = vmatpush1.msra.mxu0 0.0
    %1372 = vmatprep.subr.mxu0 0.0
    %1373 = vmatpush1.msra.mxu0 0.0
    %1374 = vmatprep.subr.mxu0 0.0
    %1375 = vmatpush1.msra.mxu0 0.0
    %1376 = vmatprep.subr.mxu0 0.0
    %1377 = vmatpush1.msra.mxu0 0.0
    %1378 = vmatprep.subr.mxu0 0.0
    %1379 = vmatpush1.msra.mxu0 0.0
    %1380 = vmatprep.subr.mxu0 0.0
    %1381 = vmatpush1.msra.mxu0 0.0
    %1382 = vmatprep.subr.mxu0 0.0
    %1383 = vmatpush1.msra.mxu0 0.0
    %1384 = vmatprep.subr.mxu0 0.0
    %1385 = vmatpush1.msra.mxu0 0.0
    %1386 = vmatprep.subr.mxu0 0.0
    %1387 = vmatpush1.msra.mxu0 0.0
    %1388 = vmatprep.subr.mxu0 0.0
    %1389 = vmatpush1.msra.mxu0 0.0
    %1390 = vmatprep.subr.mxu0 0.0
    %1391 = vmatpush1.msra.mxu0 0.0
    %1392 = vmatprep.subr.mxu0 0.0
    %1393 = vmatpush1.msra.mxu0 0.0
    %1394 = vmatprep.subr.mxu0 0.0
    %1395 = vmatpush1.msra.mxu0 0.0
    %1396 = vmatprep.subr.mxu0 0.0
    %1397 = vmatpush1.msra.mxu0 0.0
    %1398 = vmatprep.subr.mxu0 0.0
    %1399 = vmatpush1.msra.mxu0 0.0
    %1400 = vmatprep.subr.mxu0 0.0
    %1401 = vmatpush1.msra.mxu0 0.0
    %1402 = vmatprep.subr.mxu0 0.0
    %1403 = vmatpush1.msra.mxu0 0.0
    %1404 = vmatprep.subr.mxu0 0.0
    %1405 = vmatpush1.msra.mxu0 0.0
    %1406 = vmatprep.subr.mxu0 0.0
    %1407 = vmatpush1.msra.mxu0 0.0
    %1408 = vmatprep.subr.mxu0 0.0
    %1409 = vmatpush1.msra.mxu0 0.0
    %1410 = vmatprep.subr.mxu0 0.0
    %1411 = vmatpush1.msra.mxu0 0.0
    %1412 = vmatprep.subr.mxu0 0.0
    %1413 = vmatpush1.msra.mxu0 0.0
    %1414 = vmatprep.subr.mxu0 0.0
    %1415 = vmatpush1.msra.mxu0 0.0
    %1416 = vmatprep.subr.mxu0 0.0
    %1417 = vmatpush1.msra.mxu0 0.0
    %1418 = vmatprep.subr.mxu0 0.0
    %1419 = vmatpush1.msra.mxu0 0.0
    %1420 = vmatprep.subr.mxu0 0.0
    %1421 = vmatpush1.msra.mxu0 0.0
    %1422 = vmatprep.mubr.f32.mxu0 0.0
    %1423 = vmatmul.mubr.f32.gmra.mrb[0].mxu0 %v1356
    %v1424 = vpop.f32.mrb[0].mxu0
    %v1425 = vadd.f32 %v1349, %v1424
    %v1426 = vpop.f32.mrb[0].mxu0
    %1427 = vdwg.mxu0
    %v1428 = vadd.f32 %v1425, %v591
    %v1429 = vxor.u32 %v1428, 2147483648
    %v1430 = vmul.f32 %v1429, 1.442695
    %v1431 = vpow.pop %v1430
    %v1432 = vadd.f32 %v1431, 1.0
    %v1433 = vrcp.pop %v1432
    %v1434 = vmul.f32 1.0, %v1433
    %v1435 = vtanh.pop %v1428
    %v1436 = vmul.f32 %v1434, %v1169
    %1438 = vrot.lane.b32.xlu0 %v1435, 64
    %v1439 = vpop.permute.xlu0 %1438
    %v1441 = vmul.f32 %v1434, %v1439
    %1443 = vrot.lane.b32.xlu0 %v1441, 32
    %v1444 = vpop.permute.xlu0 %1443
    %v1446 = vadd.f32 %v1436, %v1444
    %v1447 = vtanh.pop %v1446
    %1449 = vrot.lane.b32.xlu0 %v1447, 64
    %v1450 = vpop.permute.xlu0 %1449
    %v1452 = vmul.f32 %v1434, %v1450
    %1453 = vmatprep.subr.mxu0 0.0
    %1454 = vmatpush1.msra.mxu0 %v324
    %1455 = vmatprep.subr.mxu0 0.0
    %1456 = vmatpush1.msra.mxu0 %v325
    %1457 = vmatprep.subr.mxu0 0.0
    %1458 = vmatpush1.msra.mxu0 %v326
    %1459 = vmatprep.subr.mxu0 0.0
    %1460 = vmatpush1.msra.mxu0 %v327
    %1461 = vmatprep.subr.mxu0 0.0
    %1462 = vmatpush1.msra.mxu0 0.0
    %1463 = vmatprep.subr.mxu0 0.0
    %1464 = vmatpush1.msra.mxu0 0.0
    %1465 = vmatprep.subr.mxu0 0.0
    %1466 = vmatpush1.msra.mxu0 0.0
    %1467 = vmatprep.subr.mxu0 0.0
    %1468 = vmatpush1.msra.mxu0 0.0
    %1469 = vmatprep.subr.mxu0 0.0
    %1470 = vmatpush1.msra.mxu0 0.0
    %1471 = vmatprep.subr.mxu0 0.0
    %1472 = vmatpush1.msra.mxu0 0.0
    %1473 = vmatprep.subr.mxu0 0.0
    %1474 = vmatpush1.msra.mxu0 0.0
    %1475 = vmatprep.subr.mxu0 0.0
    %1476 = vmatpush1.msra.mxu0 0.0
    %1477 = vmatprep.subr.mxu0 0.0
    %1478 = vmatpush1.msra.mxu0 0.0
    %1479 = vmatprep.subr.mxu0 0.0
    %1480 = vmatpush1.msra.mxu0 0.0
    %1481 = vmatprep.subr.mxu0 0.0
    %1482 = vmatpush1.msra.mxu0 0.0
    %1483 = vmatprep.subr.mxu0 0.0
    %1484 = vmatpush1.msra.mxu0 0.0
    %1485 = vmatprep.subr.mxu0 0.0
    %1486 = vmatpush1.msra.mxu0 0.0
    %1487 = vmatprep.subr.mxu0 0.0
    %1488 = vmatpush1.msra.mxu0 0.0
    %1489 = vmatprep.subr.mxu0 0.0
    %1490 = vmatpush1.msra.mxu0 0.0
    %1491 = vmatprep.subr.mxu0 0.0
    %1492 = vmatpush1.msra.mxu0 0.0
    %1493 = vmatprep.subr.mxu0 0.0
    %1494 = vmatpush1.msra.mxu0 0.0
    %1495 = vmatprep.subr.mxu0 0.0
    %1496 = vmatpush1.msra.mxu0 0.0
    %1497 = vmatprep.subr.mxu0 0.0
    %1498 = vmatpush1.msra.mxu0 0.0
    %1499 = vmatprep.subr.mxu0 0.0
    %1500 = vmatpush1.msra.mxu0 0.0
    %1501 = vmatprep.subr.mxu0 0.0
    %1502 = vmatpush1.msra.mxu0 0.0
    %1503 = vmatprep.subr.mxu0 0.0
    %1504 = vmatpush1.msra.mxu0 0.0
    %1505 = vmatprep.subr.mxu0 0.0
    %1506 = vmatpush1.msra.mxu0 0.0
    %1507 = vmatprep.subr.mxu0 0.0
    %1508 = vmatpush1.msra.mxu0 0.0
    %1509 = vmatprep.subr.mxu0 0.0
    %1510 = vmatpush1.msra.mxu0 0.0
    %1511 = vmatprep.subr.mxu0 0.0
    %1512 = vmatpush1.msra.mxu0 0.0
    %1513 = vmatprep.subr.mxu0 0.0
    %1514 = vmatpush1.msra.mxu0 0.0
    %1515 = vmatprep.subr.mxu0 0.0
    %1516 = vmatpush1.msra.mxu0 0.0
    %1517 = vmatprep.mubr.f32.mxu0 0.0
    %1518 = vmatmul.mubr.f32.gmra.mrb[0].mxu0 %v1356
    %v1519 = vpop.f32.mrb[0].mxu0
    %v1520 = vadd.f32 0.0, %v1519
    %v1521 = vpop.f32.mrb[0].mxu0
    %1522 = vdwg.mxu0
    %v1523 = vadd.f32 %v315, %v1520
    %v1524 = vxor.u32 %v1523, 2147483648
    %v1525 = vmul.f32 %v1524, 1.442695
    %v1526 = vpow.pop %v1525
    %v1527 = vadd.f32 %v1526, 1.0
    %v1528 = vrcp.pop %v1527
    %v1529 = vmul.f32 1.0, %v1528
    %v1530 = vtanh.pop %v1523
    %v1532 = vrot.slane %v1270, 6
    %v1534 = vmul.f32 %v1529, %v1532
    %1536 = vrot.lane.b32.xlu0 %v1530, 64
    %v1537 = vpop.permute.xlu0 %1536
    %v1539 = vmul.f32 %v1529, %v1537
    %1541 = vrot.lane.b32.xlu0 %v1539, 32
    %v1542 = vpop.permute.xlu0 %1541
    %v1544 = vadd.f32 %v1534, %v1542
    %v1545 = vtanh.pop %v1544
    %1547 = vrot.lane.b32.xlu0 %v1545, 64
    %v1548 = vpop.permute.xlu0 %1547
    %v1550 = vmul.f32 %v1529, %v1548
    %1552 = vrot.lane.b32.xlu0 %v1452, 32
    %v1553 = vpop.permute.xlu0 %1552
    %v1554 = vsel %vm99, %v1553, 0
    %1556 = vmatprep.subr.mxu0 0.0
    %1557 = vmatpush1.msra.mxu0 %v434
    %1558 = vmatprep.subr.mxu0 0.0
    %1559 = vmatpush1.msra.mxu0 %v435
    %1560 = vmatprep.subr.mxu0 0.0
    %1561 = vmatpush1.msra.mxu0 %v436
    %1562 = vmatprep.subr.mxu0 0.0
    %1563 = vmatpush1.msra.mxu0 %v437
    %1564 = vmatprep.subr.mxu0 0.0
    %1565 = vmatpush1.msra.mxu0 0.0
    %1566 = vmatprep.subr.mxu0 0.0
    %1567 = vmatpush1.msra.mxu0 0.0
    %1568 = vmatprep.subr.mxu0 0.0
    %1569 = vmatpush1.msra.mxu0 0.0
    %1570 = vmatprep.subr.mxu0 0.0
    %1571 = vmatpush1.msra.mxu0 0.0
    %1572 = vmatprep.subr.mxu0 0.0
    %1573 = vmatpush1.msra.mxu0 0.0
    %1574 = vmatprep.subr.mxu0 0.0
    %1575 = vmatpush1.msra.mxu0 0.0
    %1576 = vmatprep.subr.mxu0 0.0
    %1577 = vmatpush1.msra.mxu0 0.0
    %1578 = vmatprep.subr.mxu0 0.0
    %1579 = vmatpush1.msra.mxu0 0.0
    %1580 = vmatprep.subr.mxu0 0.0
    %1581 = vmatpush1.msra.mxu0 0.0
    %1582 = vmatprep.subr.mxu0 0.0
    %1583 = vmatpush1.msra.mxu0 0.0
    %1584 = vmatprep.subr.mxu0 0.0
    %1585 = vmatpush1.msra.mxu0 0.0
    %1586 = vmatprep.subr.mxu0 0.0
    %1587 = vmatpush1.msra.mxu0 0.0
    %1588 = vmatprep.subr.mxu0 0.0
    %1589 = vmatpush1.msra.mxu0 0.0
    %1590 = vmatprep.subr.mxu0 0.0
    %1591 = vmatpush1.msra.mxu0 0.0
    %1592 = vmatprep.subr.mxu0 0.0
    %1593 = vmatpush1.msra.mxu0 0.0
    %1594 = vmatprep.subr.mxu0 0.0
    %1595 = vmatpush1.msra.mxu0 0.0
    %1596 = vmatprep.subr.mxu0 0.0
    %1597 = vmatpush1.msra.mxu0 0.0
    %1598 = vmatprep.subr.mxu0 0.0
    %1599 = vmatpush1.msra.mxu0 0.0
    %1600 = vmatprep.subr.mxu0 0.0
    %1601 = vmatpush1.msra.mxu0 0.0
    %1602 = vmatprep.subr.mxu0 0.0
    %1603 = vmatpush1.msra.mxu0 0.0
    %1604 = vmatprep.subr.mxu0 0.0
    %1605 = vmatpush1.msra.mxu0 0.0
    %1606 = vmatprep.subr.mxu0 0.0
    %1607 = vmatpush1.msra.mxu0 0.0
    %1608 = vmatprep.subr.mxu0 0.0
    %1609 = vmatpush1.msra.mxu0 0.0
    %1610 = vmatprep.subr.mxu0 0.0
    %1611 = vmatpush1.msra.mxu0 0.0
    %1612 = vmatprep.subr.mxu0 0.0
    %1613 = vmatpush1.msra.mxu0 0.0
    %1614 = vmatprep.subr.mxu0 0.0
    %1615 = vmatpush1.msra.mxu0 0.0
    %1616 = vmatprep.subr.mxu0 0.0
    %1617 = vmatpush1.msra.mxu0 0.0
    %1618 = vmatprep.subr.mxu0 0.0
    %1619 = vmatpush1.msra.mxu0 0.0
    %1620 = vmatprep.mubr.f32.mxu0 0.0
    %1621 = vmatmul.mubr.f32.gmra.mrb[0].mxu0 %v1554
    %v1622 = vpop.f32.mrb[0].mxu0
    %v1623 = vadd.f32 0.0, %v1622
    %v1624 = vpop.f32.mrb[0].mxu0
    %1625 = vdwg.mxu0
    %1627 = vrot.lane.b32.xlu0 %v1550, 32
    %v1628 = vpop.permute.xlu0 %1627
    %v1629 = vsel %vm99, %v1628, 0
    %1631 = vmatprep.subr.mxu0 0.0
    %1632 = vmatpush1.msra.mxu0 %v430
    %1633 = vmatprep.subr.mxu0 0.0
    %1634 = vmatpush1.msra.mxu0 %v431
    %1635 = vmatprep.subr.mxu0 0.0
    %1636 = vmatpush1.msra.mxu0 %v432
    %1637 = vmatprep.subr.mxu0 0.0
    %1638 = vmatpush1.msra.mxu0 %v433
    %1639 = vmatprep.subr.mxu0 0.0
    %1640 = vmatpush1.msra.mxu0 0.0
    %1641 = vmatprep.subr.mxu0 0.0
    %1642 = vmatpush1.msra.mxu0 0.0
    %1643 = vmatprep.subr.mxu0 0.0
    %1644 = vmatpush1.msra.mxu0 0.0
    %1645 = vmatprep.subr.mxu0 0.0
    %1646 = vmatpush1.msra.mxu0 0.0
    %1647 = vmatprep.subr.mxu0 0.0
    %1648 = vmatpush1.msra.mxu0 0.0
    %1649 = vmatprep.subr.mxu0 0.0
    %1650 = vmatpush1.msra.mxu0 0.0
    %1651 = vmatprep.subr.mxu0 0.0
    %1652 = vmatpush1.msra.mxu0 0.0
    %1653 = vmatprep.subr.mxu0 0.0
    %1654 = vmatpush1.msra.mxu0 0.0
    %1655 = vmatprep.subr.mxu0 0.0
    %1656 = vmatpush1.msra.mxu0 0.0
    %1657 = vmatprep.subr.mxu0 0.0
    %1658 = vmatpush1.msra.mxu0 0.0
    %1659 = vmatprep.subr.mxu0 0.0
    %1660 = vmatpush1.msra.mxu0 0.0
    %1661 = vmatprep.subr.mxu0 0.0
    %1662 = vmatpush1.msra.mxu0 0.0
    %1663 = vmatprep.subr.mxu0 0.0
    %1664 = vmatpush1.msra.mxu0 0.0
    %1665 = vmatprep.subr.mxu0 0.0
    %1666 = vmatpush1.msra.mxu0 0.0
    %1667 = vmatprep.subr.mxu0 0.0
    %1668 = vmatpush1.msra.mxu0 0.0
    %1669 = vmatprep.subr.mxu0 0.0
    %1670 = vmatpush1.msra.mxu0 0.0
    %1671 = vmatprep.subr.mxu0 0.0
    %1672 = vmatpush1.msra.mxu0 0.0
    %1673 = vmatprep.subr.mxu0 0.0
    %1674 = vmatpush1.msra.mxu0 0.0
    %1675 = vmatprep.subr.mxu0 0.0
    %1676 = vmatpush1.msra.mxu0 0.0
    %1677 = vmatprep.subr.mxu0 0.0
    %1678 = vmatpush1.msra.mxu0 0.0
    %1679 = vmatprep.subr.mxu0 0.0
    %1680 = vmatpush1.msra.mxu0 0.0
    %1681 = vmatprep.subr.mxu0 0.0
    %1682 = vmatpush1.msra.mxu0 0.0
    %1683 = vmatprep.subr.mxu0 0.0
    %1684 = vmatpush1.msra.mxu0 0.0
    %1685 = vmatprep.subr.mxu0 0.0
    %1686 = vmatpush1.msra.mxu0 0.0
    %1687 = vmatprep.subr.mxu0 0.0
    %1688 = vmatpush1.msra.mxu0 0.0
    %1689 = vmatprep.subr.mxu0 0.0
    %1690 = vmatpush1.msra.mxu0 0.0
    %1691 = vmatprep.subr.mxu0 0.0
    %1692 = vmatpush1.msra.mxu0 0.0
    %1693 = vmatprep.subr.mxu0 0.0
    %1694 = vmatpush1.msra.mxu0 0.0
    %1695 = vmatprep.mubr.f32.mxu0 0.0
    %1696 = vmatmul.mubr.f32.gmra.mrb[0].mxu0 %v1629
    %v1697 = vpop.f32.mrb[0].mxu0
    %v1698 = vadd.f32 %v1623, %v1697
    %v1699 = vpop.f32.mrb[0].mxu0
    %1700 = vdwg.mxu0
    %v1701 = vadd.f32 %v1698, %v591
    %v1702 = vxor.u32 %v1701, 2147483648
    %v1703 = vmul.f32 %v1702, 1.442695
    %v1704 = vpow.pop %v1703
    %v1705 = vadd.f32 %v1704, 1.0
    %v1706 = vrcp.pop %v1705
    %v1707 = vmul.f32 1.0, %v1706
    %v1708 = vtanh.pop %v1701
    %v1709 = vmul.f32 %v1707, %v1446
    %1711 = vrot.lane.b32.xlu0 %v1708, 64
    %v1712 = vpop.permute.xlu0 %1711
    %v1714 = vmul.f32 %v1707, %v1712
    %1716 = vrot.lane.b32.xlu0 %v1714, 32
    %v1717 = vpop.permute.xlu0 %1716
    %v1719 = vadd.f32 %v1709, %v1717
    %v1720 = vtanh.pop %v1719
    %1722 = vrot.lane.b32.xlu0 %v1720, 64
    %v1723 = vpop.permute.xlu0 %1722
    %v1725 = vmul.f32 %v1707, %v1723
    %1726 = vmatprep.subr.mxu0 0.0
    %1727 = vmatpush1.msra.mxu0 %v324
    %1728 = vmatprep.subr.mxu0 0.0
    %1729 = vmatpush1.msra.mxu0 %v325
    %1730 = vmatprep.subr.mxu0 0.0
    %1731 = vmatpush1.msra.mxu0 %v326
    %1732 = vmatprep.subr.mxu0 0.0
    %1733 = vmatpush1.msra.mxu0 %v327
    %1734 = vmatprep.subr.mxu0 0.0
    %1735 = vmatpush1.msra.mxu0 0.0
    %1736 = vmatprep.subr.mxu0 0.0
    %1737 = vmatpush1.msra.mxu0 0.0
    %1738 = vmatprep.subr.mxu0 0.0
    %1739 = vmatpush1.msra.mxu0 0.0
    %1740 = vmatprep.subr.mxu0 0.0
    %1741 = vmatpush1.msra.mxu0 0.0
    %1742 = vmatprep.subr.mxu0 0.0
    %1743 = vmatpush1.msra.mxu0 0.0
    %1744 = vmatprep.subr.mxu0 0.0
    %1745 = vmatpush1.msra.mxu0 0.0
    %1746 = vmatprep.subr.mxu0 0.0
    %1747 = vmatpush1.msra.mxu0 0.0
    %1748 = vmatprep.subr.mxu0 0.0
    %1749 = vmatpush1.msra.mxu0 0.0
    %1750 = vmatprep.subr.mxu0 0.0
    %1751 = vmatpush1.msra.mxu0 0.0
    %1752 = vmatprep.subr.mxu0 0.0
    %1753 = vmatpush1.msra.mxu0 0.0
    %1754 = vmatprep.subr.mxu0 0.0
    %1755 = vmatpush1.msra.mxu0 0.0
    %1756 = vmatprep.subr.mxu0 0.0
    %1757 = vmatpush1.msra.mxu0 0.0
    %1758 = vmatprep.subr.mxu0 0.0
    %1759 = vmatpush1.msra.mxu0 0.0
    %1760 = vmatprep.subr.mxu0 0.0
    %1761 = vmatpush1.msra.mxu0 0.0
    %1762 = vmatprep.subr.mxu0 0.0
    %1763 = vmatpush1.msra.mxu0 0.0
    %1764 = vmatprep.subr.mxu0 0.0
    %1765 = vmatpush1.msra.mxu0 0.0
    %1766 = vmatprep.subr.mxu0 0.0
    %1767 = vmatpush1.msra.mxu0 0.0
    %1768 = vmatprep.subr.mxu0 0.0
    %1769 = vmatpush1.msra.mxu0 0.0
    %1770 = vmatprep.subr.mxu0 0.0
    %1771 = vmatpush1.msra.mxu0 0.0
    %1772 = vmatprep.subr.mxu0 0.0
    %1773 = vmatpush1.msra.mxu0 0.0
    %1774 = vmatprep.subr.mxu0 0.0
    %1775 = vmatpush1.msra.mxu0 0.0
    %1776 = vmatprep.subr.mxu0 0.0
    %1777 = vmatpush1.msra.mxu0 0.0
    %1778 = vmatprep.subr.mxu0 0.0
    %1779 = vmatpush1.msra.mxu0 0.0
    %1780 = vmatprep.subr.mxu0 0.0
    %1781 = vmatpush1.msra.mxu0 0.0
    %1782 = vmatprep.subr.mxu0 0.0
    %1783 = vmatpush1.msra.mxu0 0.0
    %1784 = vmatprep.subr.mxu0 0.0
    %1785 = vmatpush1.msra.mxu0 0.0
    %1786 = vmatprep.subr.mxu0 0.0
    %1787 = vmatpush1.msra.mxu0 0.0
    %1788 = vmatprep.subr.mxu0 0.0
    %1789 = vmatpush1.msra.mxu0 0.0
    %1790 = vmatprep.mubr.f32.mxu0 0.0
    %1791 = vmatmul.mubr.f32.gmra.mrb[0].mxu0 %v1629
    %v1792 = vpop.f32.mrb[0].mxu0
    %v1793 = vadd.f32 0.0, %v1792
    %v1794 = vpop.f32.mrb[0].mxu0
    %1795 = vdwg.mxu0
    %v1797 = vrot.slane %v1793, 6
    %v1799 = vadd.f32 %v315, %v1797
    %v1800 = vxor.u32 %v1799, 2147483648
    %v1801 = vmul.f32 %v1800, 1.442695
    %v1802 = vpow.pop %v1801
    %v1803 = vadd.f32 %v1802, 1.0
    %v1804 = vrcp.pop %v1803
    %v1805 = vmul.f32 1.0, %v1804
    %v1806 = vtanh.pop %v1799
    %v1808 = vrot.slane %v1544, 6
    %v1810 = vmul.f32 %v1805, %v1808
    %1812 = vrot.lane.b32.xlu0 %v1806, 64
    %v1813 = vpop.permute.xlu0 %1812
    %v1815 = vmul.f32 %v1805, %v1813
    %1817 = vrot.lane.b32.xlu0 %v1815, 32
    %v1818 = vpop.permute.xlu0 %1817
    %v1820 = vadd.f32 %v1810, %v1818
    %v1821 = vtanh.pop %v1820
    %1823 = vrot.lane.b32.xlu0 %v1821, 64
    %v1824 = vpop.permute.xlu0 %1823
    %v1826 = vmul.f32 %v1805, %v1824
    %1828 = vrot.lane.b32.xlu0 %v1725, 32
    %v1829 = vpop.permute.xlu0 %1828
    %v1830 = vsel %vm99, %v1829, 0
    %1832 = vmatprep.subr.mxu0 0.0
    %1833 = vmatpush1.msra.mxu0 %v434
    %1834 = vmatprep.subr.mxu0 0.0
    %1835 = vmatpush1.msra.mxu0 %v435
    %1836 = vmatprep.subr.mxu0 0.0
    %1837 = vmatpush1.msra.mxu0 %v436
    %1838 = vmatprep.subr.mxu0 0.0
    %1839 = vmatpush1.msra.mxu0 %v437
    %1840 = vmatprep.subr.mxu0 0.0
    %1841 = vmatpush1.msra.mxu0 0.0
    %1842 = vmatprep.subr.mxu0 0.0
    %1843 = vmatpush1.msra.mxu0 0.0
    %1844 = vmatprep.subr.mxu0 0.0
    %1845 = vmatpush1.msra.mxu0 0.0
    %1846 = vmatprep.subr.mxu0 0.0
    %1847 = vmatpush1.msra.mxu0 0.0
    %1848 = vmatprep.subr.mxu0 0.0
    %1849 = vmatpush1.msra.mxu0 0.0
    %1850 = vmatprep.subr.mxu0 0.0
    %1851 = vmatpush1.msra.mxu0 0.0
    %1852 = vmatprep.subr.mxu0 0.0
    %1853 = vmatpush1.msra.mxu0 0.0
    %1854 = vmatprep.subr.mxu0 0.0
    %1855 = vmatpush1.msra.mxu0 0.0
    %1856 = vmatprep.subr.mxu0 0.0
    %1857 = vmatpush1.msra.mxu0 0.0
    %1858 = vmatprep.subr.mxu0 0.0
    %1859 = vmatpush1.msra.mxu0 0.0
    %1860 = vmatprep.subr.mxu0 0.0
    %1861 = vmatpush1.msra.mxu0 0.0
    %1862 = vmatprep.subr.mxu0 0.0
    %1863 = vmatpush1.msra.mxu0 0.0
    %1864 = vmatprep.subr.mxu0 0.0
    %1865 = vmatpush1.msra.mxu0 0.0
    %1866 = vmatprep.subr.mxu0 0.0
    %1867 = vmatpush1.msra.mxu0 0.0
    %1868 = vmatprep.subr.mxu0 0.0
    %1869 = vmatpush1.msra.mxu0 0.0
    %1870 = vmatprep.subr.mxu0 0.0
    %1871 = vmatpush1.msra.mxu0 0.0
    %1872 = vmatprep.subr.mxu0 0.0
    %1873 = vmatpush1.msra.mxu0 0.0
    %1874 = vmatprep.subr.mxu0 0.0
    %1875 = vmatpush1.msra.mxu0 0.0
    %1876 = vmatprep.subr.mxu0 0.0
    %1877 = vmatpush1.msra.mxu0 0.0
    %1878 = vmatprep.subr.mxu0 0.0
    %1879 = vmatpush1.msra.mxu0 0.0
    %1880 = vmatprep.subr.mxu0 0.0
    %1881 = vmatpush1.msra.mxu0 0.0
    %1882 = vmatprep.subr.mxu0 0.0
    %1883 = vmatpush1.msra.mxu0 0.0
    %1884 = vmatprep.subr.mxu0 0.0
    %1885 = vmatpush1.msra.mxu0 0.0
    %1886 = vmatprep.subr.mxu0 0.0
    %1887 = vmatpush1.msra.mxu0 0.0
    %1888 = vmatprep.subr.mxu0 0.0
    %1889 = vmatpush1.msra.mxu0 0.0
    %1890 = vmatprep.subr.mxu0 0.0
    %1891 = vmatpush1.msra.mxu0 0.0
    %1892 = vmatprep.subr.mxu0 0.0
    %1893 = vmatpush1.msra.mxu0 0.0
    %1894 = vmatprep.subr.mxu0 0.0
    %1895 = vmatpush1.msra.mxu0 0.0
    %1896 = vmatprep.mubr.f32.mxu0 0.0
    %1897 = vmatmul.mubr.f32.gmra.mrb[0].mxu0 %v1830
    %v1898 = vpop.f32.mrb[0].mxu0
    %v1899 = vadd.f32 0.0, %v1898
    %v1900 = vpop.f32.mrb[0].mxu0
    %1901 = vdwg.mxu0
    %v1903 = vrot.slane %v1826, 2
    %1904 = vrot.lane.b32.xlu0 %v1903, 32
    %v1905 = vpop.permute.xlu0 %1904
    %v1906 = vsel %vm99, %v1905, 0
    %1908 = vmatprep.subr.mxu0 0.0
    %1909 = vmatpush1.msra.mxu0 %v430
    %1910 = vmatprep.subr.mxu0 0.0
    %1911 = vmatpush1.msra.mxu0 %v431
    %1912 = vmatprep.subr.mxu0 0.0
    %1913 = vmatpush1.msra.mxu0 %v432
    %1914 = vmatprep.subr.mxu0 0.0
    %1915 = vmatpush1.msra.mxu0 %v433
    %1916 = vmatprep.subr.mxu0 0.0
    %1917 = vmatpush1.msra.mxu0 0.0
    %1918 = vmatprep.subr.mxu0 0.0
    %1919 = vmatpush1.msra.mxu0 0.0
    %1920 = vmatprep.subr.mxu0 0.0
    %1921 = vmatpush1.msra.mxu0 0.0
    %1922 = vmatprep.subr.mxu0 0.0
    %1923 = vmatpush1.msra.mxu0 0.0
    %1924 = vmatprep.subr.mxu0 0.0
    %1925 = vmatpush1.msra.mxu0 0.0
    %1926 = vmatprep.subr.mxu0 0.0
    %1927 = vmatpush1.msra.mxu0 0.0
    %1928 = vmatprep.subr.mxu0 0.0
    %1929 = vmatpush1.msra.mxu0 0.0
    %1930 = vmatprep.subr.mxu0 0.0
    %1931 = vmatpush1.msra.mxu0 0.0
    %1932 = vmatprep.subr.mxu0 0.0
    %1933 = vmatpush1.msra.mxu0 0.0
    %1934 = vmatprep.subr.mxu0 0.0
    %1935 = vmatpush1.msra.mxu0 0.0
    %1936 = vmatprep.subr.mxu0 0.0
    %1937 = vmatpush1.msra.mxu0 0.0
    %1938 = vmatprep.subr.mxu0 0.0
    %1939 = vmatpush1.msra.mxu0 0.0
    %1940 = vmatprep.subr.mxu0 0.0
    %1941 = vmatpush1.msra.mxu0 0.0
    %1942 = vmatprep.subr.mxu0 0.0
    %1943 = vmatpush1.msra.mxu0 0.0
    %1944 = vmatprep.subr.mxu0 0.0
    %1945 = vmatpush1.msra.mxu0 0.0
    %1946 = vmatprep.subr.mxu0 0.0
    %1947 = vmatpush1.msra.mxu0 0.0
    %1948 = vmatprep.subr.mxu0 0.0
    %1949 = vmatpush1.msra.mxu0 0.0
    %1950 = vmatprep.subr.mxu0 0.0
    %1951 = vmatpush1.msra.mxu0 0.0
    %1952 = vmatprep.subr.mxu0 0.0
    %1953 = vmatpush1.msra.mxu0 0.0
    %1954 = vmatprep.subr.mxu0 0.0
    %1955 = vmatpush1.msra.mxu0 0.0
    %1956 = vmatprep.subr.mxu0 0.0
    %1957 = vmatpush1.msra.mxu0 0.0
    %1958 = vmatprep.subr.mxu0 0.0
    %1959 = vmatpush1.msra.mxu0 0.0
    %1960 = vmatprep.subr.mxu0 0.0
    %1961 = vmatpush1.msra.mxu0 0.0
    %1962 = vmatprep.subr.mxu0 0.0
    %1963 = vmatpush1.msra.mxu0 0.0
    %1964 = vmatprep.subr.mxu0 0.0
    %1965 = vmatpush1.msra.mxu0 0.0
    %1966 = vmatprep.subr.mxu0 0.0
    %1967 = vmatpush1.msra.mxu0 0.0
    %1968 = vmatprep.subr.mxu0 0.0
    %1969 = vmatpush1.msra.mxu0 0.0
    %1970 = vmatprep.subr.mxu0 0.0
    %1971 = vmatpush1.msra.mxu0 0.0
    %1972 = vmatprep.mubr.f32.mxu0 0.0
    %1973 = vmatmul.mubr.f32.gmra.mrb[0].mxu0 %v1906
    %v1974 = vpop.f32.mrb[0].mxu0
    %v1975 = vadd.f32 %v1899, %v1974
    %v1976 = vpop.f32.mrb[0].mxu0
    %1977 = vdwg.mxu0
    %v1978 = vadd.f32 %v1975, %v591
    %v1979 = vxor.u32 %v1978, 2147483648
    %v1980 = vmul.f32 %v1979, 1.442695
    %v1981 = vpow.pop %v1980
    %v1982 = vadd.f32 %v1981, 1.0
    %v1983 = vrcp.pop %v1982
    %v1984 = vmul.f32 1.0, %v1983
    %v1985 = vtanh.pop %v1978
    %v1986 = vmul.f32 %v1984, %v1719
    %1988 = vrot.lane.b32.xlu0 %v1985, 64
    %v1989 = vpop.permute.xlu0 %1988
    %v1991 = vmul.f32 %v1984, %v1989
    %1993 = vrot.lane.b32.xlu0 %v1991, 32
    %v1994 = vpop.permute.xlu0 %1993
    %v1996 = vadd.f32 %v1986, %v1994
    %v1997 = vtanh.pop %v1996
    %1999 = vrot.lane.b32.xlu0 %v1997, 64
    %v2000 = vpop.permute.xlu0 %1999
    %v2002 = vmul.f32 %v1984, %v2000
    %2003 = vmatprep.subr.mxu0 0.0
    %2004 = vmatpush1.msra.mxu0 %v324
    %2005 = vmatprep.subr.mxu0 0.0
    %2006 = vmatpush1.msra.mxu0 %v325
    %2007 = vmatprep.subr.mxu0 0.0
    %2008 = vmatpush1.msra.mxu0 %v326
    %2009 = vmatprep.subr.mxu0 0.0
    %2010 = vmatpush1.msra.mxu0 %v327
    %2011 = vmatprep.subr.mxu0 0.0
    %2012 = vmatpush1.msra.mxu0 0.0
    %2013 = vmatprep.subr.mxu0 0.0
    %2014 = vmatpush1.msra.mxu0 0.0
    %2015 = vmatprep.subr.mxu0 0.0
    %2016 = vmatpush1.msra.mxu0 0.0
    %2017 = vmatprep.subr.mxu0 0.0
    %2018 = vmatpush1.msra.mxu0 0.0
    %2019 = vmatprep.subr.mxu0 0.0
    %2020 = vmatpush1.msra.mxu0 0.0
    %2021 = vmatprep.subr.mxu0 0.0
    %2022 = vmatpush1.msra.mxu0 0.0
    %2023 = vmatprep.subr.mxu0 0.0
    %2024 = vmatpush1.msra.mxu0 0.0
    %2025 = vmatprep.subr.mxu0 0.0
    %2026 = vmatpush1.msra.mxu0 0.0
    %2027 = vmatprep.subr.mxu0 0.0
    %2028 = vmatpush1.msra.mxu0 0.0
    %2029 = vmatprep.subr.mxu0 0.0
    %2030 = vmatpush1.msra.mxu0 0.0
    %2031 = vmatprep.subr.mxu0 0.0
    %2032 = vmatpush1.msra.mxu0 0.0
    %2033 = vmatprep.subr.mxu0 0.0
    %2034 = vmatpush1.msra.mxu0 0.0
    %2035 = vmatprep.subr.mxu0 0.0
    %2036 = vmatpush1.msra.mxu0 0.0
    %2037 = vmatprep.subr.mxu0 0.0
    %2038 = vmatpush1.msra.mxu0 0.0
    %2039 = vmatprep.subr.mxu0 0.0
    %2040 = vmatpush1.msra.mxu0 0.0
    %2041 = vmatprep.subr.mxu0 0.0
    %2042 = vmatpush1.msra.mxu0 0.0
    %2043 = vmatprep.subr.mxu0 0.0
    %2044 = vmatpush1.msra.mxu0 0.0
    %2045 = vmatprep.subr.mxu0 0.0
    %2046 = vmatpush1.msra.mxu0 0.0
    %2047 = vmatprep.subr.mxu0 0.0
    %2048 = vmatpush1.msra.mxu0 0.0
    %2049 = vmatprep.subr.mxu0 0.0
    %2050 = vmatpush1.msra.mxu0 0.0
    %2051 = vmatprep.subr.mxu0 0.0
    %2052 = vmatpush1.msra.mxu0 0.0
    %2053 = vmatprep.subr.mxu0 0.0
    %2054 = vmatpush1.msra.mxu0 0.0
    %2055 = vmatprep.subr.mxu0 0.0
    %2056 = vmatpush1.msra.mxu0 0.0
    %2057 = vmatprep.subr.mxu0 0.0
    %2058 = vmatpush1.msra.mxu0 0.0
    %2059 = vmatprep.subr.mxu0 0.0
    %2060 = vmatpush1.msra.mxu0 0.0
    %2061 = vmatprep.subr.mxu0 0.0
    %2062 = vmatpush1.msra.mxu0 0.0
    %2063 = vmatprep.subr.mxu0 0.0
    %2064 = vmatpush1.msra.mxu0 0.0
    %2065 = vmatprep.subr.mxu0 0.0
    %2066 = vmatpush1.msra.mxu0 0.0
    %2067 = vmatprep.mubr.f32.mxu0 0.0
    %2068 = vmatmul.mubr.f32.gmra.mrb[0].mxu0 %v1906
    %v2069 = vpop.f32.mrb[0].mxu0
    %v2070 = vadd.f32 0.0, %v2069
    %v2071 = vpop.f32.mrb[0].mxu0
    %2072 = vdwg.mxu0
    %v2074 = vrot.slane %v2070, 4
    %v2076 = vadd.f32 %v315, %v2074
    %v2077 = vxor.u32 %v2076, 2147483648
    %v2078 = vmul.f32 %v2077, 1.442695
    %v2079 = vpow.pop %v2078
    %v2080 = vadd.f32 %v2079, 1.0
    %v2081 = vrcp.pop %v2080
    %v2082 = vmul.f32 1.0, %v2081
    %v2083 = vtanh.pop %v2076
    %v2085 = vrot.slane %v1820, 6
    %v2087 = vmul.f32 %v2082, %v2085
    %2089 = vrot.lane.b32.xlu0 %v2083, 64
    %v2090 = vpop.permute.xlu0 %2089
    %v2092 = vmul.f32 %v2082, %v2090
    %2094 = vrot.lane.b32.xlu0 %v2092, 32
    %v2095 = vpop.permute.xlu0 %2094
    %v2097 = vadd.f32 %v2087, %v2095
    %v2098 = vtanh.pop %v2097
    %2100 = vrot.lane.b32.xlu0 %v2098, 64
    %v2101 = vpop.permute.xlu0 %2100
    %v2103 = vmul.f32 %v2082, %v2101
    %2105 = vrot.lane.b32.xlu0 %v2002, 32
    %v2106 = vpop.permute.xlu0 %2105
    %v2107 = vsel %vm99, %v2106, 0
    %2109 = vmatprep.subr.mxu0 0.0
    %2110 = vmatpush1.msra.mxu0 %v434
    %2111 = vmatprep.subr.mxu0 0.0
    %2112 = vmatpush1.msra.mxu0 %v435
    %2113 = vmatprep.subr.mxu0 0.0
    %2114 = vmatpush1.msra.mxu0 %v436
    %2115 = vmatprep.subr.mxu0 0.0
    %2116 = vmatpush1.msra.mxu0 %v437
    %2117 = vmatprep.subr.mxu0 0.0
    %2118 = vmatpush1.msra.mxu0 0.0
    %2119 = vmatprep.subr.mxu0 0.0
    %2120 = vmatpush1.msra.mxu0 0.0
    %2121 = vmatprep.subr.mxu0 0.0
    %2122 = vmatpush1.msra.mxu0 0.0
    %2123 = vmatprep.subr.mxu0 0.0
    %2124 = vmatpush1.msra.mxu0 0.0
    %2125 = vmatprep.subr.mxu0 0.0
    %2126 = vmatpush1.msra.mxu0 0.0
    %2127 = vmatprep.subr.mxu0 0.0
    %2128 = vmatpush1.msra.mxu0 0.0
    %2129 = vmatprep.subr.mxu0 0.0
    %2130 = vmatpush1.msra.mxu0 0.0
    %2131 = vmatprep.subr.mxu0 0.0
    %2132 = vmatpush1.msra.mxu0 0.0
    %2133 = vmatprep.subr.mxu0 0.0
    %2134 = vmatpush1.msra.mxu0 0.0
    %2135 = vmatprep.subr.mxu0 0.0
    %2136 = vmatpush1.msra.mxu0 0.0
    %2137 = vmatprep.subr.mxu0 0.0
    %2138 = vmatpush1.msra.mxu0 0.0
    %2139 = vmatprep.subr.mxu0 0.0
    %2140 = vmatpush1.msra.mxu0 0.0
    %2141 = vmatprep.subr.mxu0 0.0
    %2142 = vmatpush1.msra.mxu0 0.0
    %2143 = vmatprep.subr.mxu0 0.0
    %2144 = vmatpush1.msra.mxu0 0.0
    %2145 = vmatprep.subr.mxu0 0.0
    %2146 = vmatpush1.msra.mxu0 0.0
    %2147 = vmatprep.subr.mxu0 0.0
    %2148 = vmatpush1.msra.mxu0 0.0
    %2149 = vmatprep.subr.mxu0 0.0
    %2150 = vmatpush1.msra.mxu0 0.0
    %2151 = vmatprep.subr.mxu0 0.0
    %2152 = vmatpush1.msra.mxu0 0.0
    %2153 = vmatprep.subr.mxu0 0.0
    %2154 = vmatpush1.msra.mxu0 0.0
    %2155 = vmatprep.subr.mxu0 0.0
    %2156 = vmatpush1.msra.mxu0 0.0
    %2157 = vmatprep.subr.mxu0 0.0
    %2158 = vmatpush1.msra.mxu0 0.0
    %2159 = vmatprep.subr.mxu0 0.0
    %2160 = vmatpush1.msra.mxu0 0.0
    %2161 = vmatprep.subr.mxu0 0.0
    %2162 = vmatpush1.msra.mxu0 0.0
    %2163 = vmatprep.subr.mxu0 0.0
    %2164 = vmatpush1.msra.mxu0 0.0
    %2165 = vmatprep.subr.mxu0 0.0
    %2166 = vmatpush1.msra.mxu0 0.0
    %2167 = vmatprep.subr.mxu0 0.0
    %2168 = vmatpush1.msra.mxu0 0.0
    %2169 = vmatprep.subr.mxu0 0.0
    %2170 = vmatpush1.msra.mxu0 0.0
    %2171 = vmatprep.subr.mxu0 0.0
    %2172 = vmatpush1.msra.mxu0 0.0
    %2173 = vmatprep.mubr.f32.mxu0 0.0
    %2174 = vmatmul.mubr.f32.gmra.mrb[0].mxu0 %v2107
    %v2175 = vpop.f32.mrb[0].mxu0
    %v2176 = vadd.f32 0.0, %v2175
    %v2177 = vpop.f32.mrb[0].mxu0
    %2178 = vdwg.mxu0
    %v2180 = vrot.slane %v2103, 4
    %2181 = vrot.lane.b32.xlu0 %v2180, 32
    %v2182 = vpop.permute.xlu0 %2181
    %v2183 = vsel %vm99, %v2182, 0
    %2185 = vmatprep.subr.mxu0 0.0
    %2186 = vmatpush1.msra.mxu0 %v430
    %2187 = vmatprep.subr.mxu0 0.0
    %2188 = vmatpush1.msra.mxu0 %v431
    %2189 = vmatprep.subr.mxu0 0.0
    %2190 = vmatpush1.msra.mxu0 %v432
    %2191 = vmatprep.subr.mxu0 0.0
    %2192 = vmatpush1.msra.mxu0 %v433
    %2193 = vmatprep.subr.mxu0 0.0
    %2194 = vmatpush1.msra.mxu0 0.0
    %2195 = vmatprep.subr.mxu0 0.0
    %2196 = vmatpush1.msra.mxu0 0.0
    %2197 = vmatprep.subr.mxu0 0.0
    %2198 = vmatpush1.msra.mxu0 0.0
    %2199 = vmatprep.subr.mxu0 0.0
    %2200 = vmatpush1.msra.mxu0 0.0
    %2201 = vmatprep.subr.mxu0 0.0
    %2202 = vmatpush1.msra.mxu0 0.0
    %2203 = vmatprep.subr.mxu0 0.0
    %2204 = vmatpush1.msra.mxu0 0.0
    %2205 = vmatprep.subr.mxu0 0.0
    %2206 = vmatpush1.msra.mxu0 0.0
    %2207 = vmatprep.subr.mxu0 0.0
    %2208 = vmatpush1.msra.mxu0 0.0
    %2209 = vmatprep.subr.mxu0 0.0
    %2210 = vmatpush1.msra.mxu0 0.0
    %2211 = vmatprep.subr.mxu0 0.0
    %2212 = vmatpush1.msra.mxu0 0.0
    %2213 = vmatprep.subr.mxu0 0.0
    %2214 = vmatpush1.msra.mxu0 0.0
    %2215 = vmatprep.subr.mxu0 0.0
    %2216 = vmatpush1.msra.mxu0 0.0
    %2217 = vmatprep.subr.mxu0 0.0
    %2218 = vmatpush1.msra.mxu0 0.0
    %2219 = vmatprep.subr.mxu0 0.0
    %2220 = vmatpush1.msra.mxu0 0.0
    %2221 = vmatprep.subr.mxu0 0.0
    %2222 = vmatpush1.msra.mxu0 0.0
    %2223 = vmatprep.subr.mxu0 0.0
    %2224 = vmatpush1.msra.mxu0 0.0
    %2225 = vmatprep.subr.mxu0 0.0
    %2226 = vmatpush1.msra.mxu0 0.0
    %2227 = vmatprep.subr.mxu0 0.0
    %2228 = vmatpush1.msra.mxu0 0.0
    %2229 = vmatprep.subr.mxu0 0.0
    %2230 = vmatpush1.msra.mxu0 0.0
    %2231 = vmatprep.subr.mxu0 0.0
    %2232 = vmatpush1.msra.mxu0 0.0
    %2233 = vmatprep.subr.mxu0 0.0
    %2234 = vmatpush1.msra.mxu0 0.0
    %2235 = vmatprep.subr.mxu0 0.0
    %2236 = vmatpush1.msra.mxu0 0.0
    %2237 = vmatprep.subr.mxu0 0.0
    %2238 = vmatpush1.msra.mxu0 0.0
    %2239 = vmatprep.subr.mxu0 0.0
    %2240 = vmatpush1.msra.mxu0 0.0
    %2241 = vmatprep.subr.mxu0 0.0
    %2242 = vmatpush1.msra.mxu0 0.0
    %2243 = vmatprep.subr.mxu0 0.0
    %2244 = vmatpush1.msra.mxu0 0.0
    %2245 = vmatprep.subr.mxu0 0.0
    %2246 = vmatpush1.msra.mxu0 0.0
    %2247 = vmatprep.subr.mxu0 0.0
    %2248 = vmatpush1.msra.mxu0 0.0
    %2249 = vmatprep.mubr.f32.mxu0 0.0
    %2250 = vmatmul.mubr.f32.gmra.mrb[0].mxu0 %v2183
    %v2251 = vpop.f32.mrb[0].mxu0
    %v2252 = vadd.f32 %v2176, %v2251
    %v2253 = vpop.f32.mrb[0].mxu0
    %2254 = vdwg.mxu0
    %v2255 = vadd.f32 %v2252, %v591
    %v2256 = vxor.u32 %v2255, 2147483648
    %v2257 = vmul.f32 %v2256, 1.442695
    %v2258 = vpow.pop %v2257
    %v2259 = vadd.f32 %v2258, 1.0
    %v2260 = vrcp.pop %v2259
    %v2261 = vmul.f32 1.0, %v2260
    %v2262 = vtanh.pop %v2255
    %v2263 = vmul.f32 %v2261, %v1996
    %2265 = vrot.lane.b32.xlu0 %v2262, 64
    %v2266 = vpop.permute.xlu0 %2265
    %v2268 = vmul.f32 %v2261, %v2266
    %2270 = vrot.lane.b32.xlu0 %v2268, 32
    %v2271 = vpop.permute.xlu0 %2270
    %v2273 = vadd.f32 %v2263, %v2271
    %v2274 = vtanh.pop %v2273
    %2276 = vrot.lane.b32.xlu0 %v2274, 64
    %v2277 = vpop.permute.xlu0 %2276
    %v2279 = vmul.f32 %v2261, %v2277
    %2280 = vmatprep.subr.mxu0 0.0
    %2281 = vmatpush1.msra.mxu0 %v324
    %2282 = vmatprep.subr.mxu0 0.0
    %2283 = vmatpush1.msra.mxu0 %v325
    %2284 = vmatprep.subr.mxu0 0.0
    %2285 = vmatpush1.msra.mxu0 %v326
    %2286 = vmatprep.subr.mxu0 0.0
    %2287 = vmatpush1.msra.mxu0 %v327
    %2288 = vmatprep.subr.mxu0 0.0
    %2289 = vmatpush1.msra.mxu0 0.0
    %2290 = vmatprep.subr.mxu0 0.0
    %2291 = vmatpush1.msra.mxu0 0.0
    %2292 = vmatprep.subr.mxu0 0.0
    %2293 = vmatpush1.msra.mxu0 0.0
    %2294 = vmatprep.subr.mxu0 0.0
    %2295 = vmatpush1.msra.mxu0 0.0
    %2296 = vmatprep.subr.mxu0 0.0
    %2297 = vmatpush1.msra.mxu0 0.0
    %2298 = vmatprep.subr.mxu0 0.0
    %2299 = vmatpush1.msra.mxu0 0.0
    %2300 = vmatprep.subr.mxu0 0.0
    %2301 = vmatpush1.msra.mxu0 0.0
    %2302 = vmatprep.subr.mxu0 0.0
    %2303 = vmatpush1.msra.mxu0 0.0
    %2304 = vmatprep.subr.mxu0 0.0
    %2305 = vmatpush1.msra.mxu0 0.0
    %2306 = vmatprep.subr.mxu0 0.0
    %2307 = vmatpush1.msra.mxu0 0.0
    %2308 = vmatprep.subr.mxu0 0.0
    %2309 = vmatpush1.msra.mxu0 0.0
    %2310 = vmatprep.subr.mxu0 0.0
    %2311 = vmatpush1.msra.mxu0 0.0
    %2312 = vmatprep.subr.mxu0 0.0
    %2313 = vmatpush1.msra.mxu0 0.0
    %2314 = vmatprep.subr.mxu0 0.0
    %2315 = vmatpush1.msra.mxu0 0.0
    %2316 = vmatprep.subr.mxu0 0.0
    %2317 = vmatpush1.msra.mxu0 0.0
    %2318 = vmatprep.subr.mxu0 0.0
    %2319 = vmatpush1.msra.mxu0 0.0
    %2320 = vmatprep.subr.mxu0 0.0
    %2321 = vmatpush1.msra.mxu0 0.0
    %2322 = vmatprep.subr.mxu0 0.0
    %2323 = vmatpush1.msra.mxu0 0.0
    %2324 = vmatprep.subr.mxu0 0.0
    %2325 = vmatpush1.msra.mxu0 0.0
    %2326 = vmatprep.subr.mxu0 0.0
    %2327 = vmatpush1.msra.mxu0 0.0
    %2328 = vmatprep.subr.mxu0 0.0
    %2329 = vmatpush1.msra.mxu0 0.0
    %2330 = vmatprep.subr.mxu0 0.0
    %2331 = vmatpush1.msra.mxu0 0.0
    %2332 = vmatprep.subr.mxu0 0.0
    %2333 = vmatpush1.msra.mxu0 0.0
    %2334 = vmatprep.subr.mxu0 0.0
    %2335 = vmatpush1.msra.mxu0 0.0
    %2336 = vmatprep.subr.mxu0 0.0
    %2337 = vmatpush1.msra.mxu0 0.0
    %2338 = vmatprep.subr.mxu0 0.0
    %2339 = vmatpush1.msra.mxu0 0.0
    %2340 = vmatprep.subr.mxu0 0.0
    %2341 = vmatpush1.msra.mxu0 0.0
    %2342 = vmatprep.subr.mxu0 0.0
    %2343 = vmatpush1.msra.mxu0 0.0
    %2344 = vmatprep.mubr.f32.mxu0 0.0
    %2345 = vmatmul.mubr.f32.gmra.mrb[0].mxu0 %v2183
    %v2346 = vpop.f32.mrb[0].mxu0
    %v2347 = vadd.f32 0.0, %v2346
    %v2348 = vpop.f32.mrb[0].mxu0
    %2349 = vdwg.mxu0
    %v2351 = vrot.slane %v2347, 2
    %v2353 = vadd.f32 %v315, %v2351
    %v2354 = vxor.u32 %v2353, 2147483648
    %v2355 = vmul.f32 %v2354, 1.442695
    %v2356 = vpow.pop %v2355
    %v2357 = vadd.f32 %v2356, 1.0
    %v2358 = vrcp.pop %v2357
    %v2359 = vmul.f32 1.0, %v2358
    %v2360 = vtanh.pop %v2353
    %v2362 = vrot.slane %v2097, 6
    %v2364 = vmul.f32 %v2359, %v2362
    %2366 = vrot.lane.b32.xlu0 %v2360, 64
    %v2367 = vpop.permute.xlu0 %2366
    %v2369 = vmul.f32 %v2359, %v2367
    %2371 = vrot.lane.b32.xlu0 %v2369, 32
    %v2372 = vpop.permute.xlu0 %2371
    %v2374 = vadd.f32 %v2364, %v2372
    %v2375 = vtanh.pop %v2374
    %2377 = vrot.lane.b32.xlu0 %v2375, 64
    %v2378 = vpop.permute.xlu0 %2377
    %v2380 = vmul.f32 %v2359, %v2378
    %2382 = vrot.lane.b32.xlu0 %v2279, 32
    %v2383 = vpop.permute.xlu0 %2382
    %v2384 = vsel %vm99, %v2383, 0
    %2386 = vmatprep.subr.mxu0 0.0
    %2387 = vmatpush1.msra.mxu0 %v434
    %2388 = vmatprep.subr.mxu0 0.0
    %2389 = vmatpush1.msra.mxu0 %v435
    %2390 = vmatprep.subr.mxu0 0.0
    %2391 = vmatpush1.msra.mxu0 %v436
    %2392 = vmatprep.subr.mxu0 0.0
    %2393 = vmatpush1.msra.mxu0 %v437
    %2394 = vmatprep.subr.mxu0 0.0
    %2395 = vmatpush1.msra.mxu0 0.0
    %2396 = vmatprep.subr.mxu0 0.0
    %2397 = vmatpush1.msra.mxu0 0.0
    %2398 = vmatprep.subr.mxu0 0.0
    %2399 = vmatpush1.msra.mxu0 0.0
    %2400 = vmatprep.subr.mxu0 0.0
    %2401 = vmatpush1.msra.mxu0 0.0
    %2402 = vmatprep.subr.mxu0 0.0
    %2403 = vmatpush1.msra.mxu0 0.0
    %2404 = vmatprep.subr.mxu0 0.0
    %2405 = vmatpush1.msra.mxu0 0.0
    %2406 = vmatprep.subr.mxu0 0.0
    %2407 = vmatpush1.msra.mxu0 0.0
    %2408 = vmatprep.subr.mxu0 0.0
    %2409 = vmatpush1.msra.mxu0 0.0
    %2410 = vmatprep.subr.mxu0 0.0
    %2411 = vmatpush1.msra.mxu0 0.0
    %2412 = vmatprep.subr.mxu0 0.0
    %2413 = vmatpush1.msra.mxu0 0.0
    %2414 = vmatprep.subr.mxu0 0.0
    %2415 = vmatpush1.msra.mxu0 0.0
    %2416 = vmatprep.subr.mxu0 0.0
    %2417 = vmatpush1.msra.mxu0 0.0
    %2418 = vmatprep.subr.mxu0 0.0
    %2419 = vmatpush1.msra.mxu0 0.0
    %2420 = vmatprep.subr.mxu0 0.0
    %2421 = vmatpush1.msra.mxu0 0.0
    %2422 = vmatprep.subr.mxu0 0.0
    %2423 = vmatpush1.msra.mxu0 0.0
    %2424 = vmatprep.subr.mxu0 0.0
    %2425 = vmatpush1.msra.mxu0 0.0
    %2426 = vmatprep.subr.mxu0 0.0
    %2427 = vmatpush1.msra.mxu0 0.0
    %2428 = vmatprep.subr.mxu0 0.0
    %2429 = vmatpush1.msra.mxu0 0.0
    %2430 = vmatprep.subr.mxu0 0.0
    %2431 = vmatpush1.msra.mxu0 0.0
    %2432 = vmatprep.subr.mxu0 0.0
    %2433 = vmatpush1.msra.mxu0 0.0
    %2434 = vmatprep.subr.mxu0 0.0
    %2435 = vmatpush1.msra.mxu0 0.0
    %2436 = vmatprep.subr.mxu0 0.0
    %2437 = vmatpush1.msra.mxu0 0.0
    %2438 = vmatprep.subr.mxu0 0.0
    %2439 = vmatpush1.msra.mxu0 0.0
    %2440 = vmatprep.subr.mxu0 0.0
    %2441 = vmatpush1.msra.mxu0 0.0
    %2442 = vmatprep.subr.mxu0 0.0
    %2443 = vmatpush1.msra.mxu0 0.0
    %2444 = vmatprep.subr.mxu0 0.0
    %2445 = vmatpush1.msra.mxu0 0.0
    %2446 = vmatprep.subr.mxu0 0.0
    %2447 = vmatpush1.msra.mxu0 0.0
    %2448 = vmatprep.subr.mxu0 0.0
    %2449 = vmatpush1.msra.mxu0 0.0
    %2450 = vmatprep.mubr.f32.mxu0 0.0
    %2451 = vmatmul.mubr.f32.gmra.mrb[0].mxu0 %v2384
    %v2452 = vpop.f32.mrb[0].mxu0
    %v2453 = vadd.f32 0.0, %v2452
    %v2454 = vpop.f32.mrb[0].mxu0
    %2455 = vdwg.mxu0
    %v2457 = vrot.slane %v2380, 6
    %2458 = vrot.lane.b32.xlu0 %v2457, 32
    %v2459 = vpop.permute.xlu0 %2458
    %v2460 = vsel %vm99, %v2459, 0
    %2462 = vmatprep.subr.mxu0 0.0
    %2463 = vmatpush1.msra.mxu0 %v430
    %2464 = vmatprep.subr.mxu0 0.0
    %2465 = vmatpush1.msra.mxu0 %v431
    %2466 = vmatprep.subr.mxu0 0.0
    %2467 = vmatpush1.msra.mxu0 %v432
    %2468 = vmatprep.subr.mxu0 0.0
    %2469 = vmatpush1.msra.mxu0 %v433
    %2470 = vmatprep.subr.mxu0 0.0
    %2471 = vmatpush1.msra.mxu0 0.0
    %2472 = vmatprep.subr.mxu0 0.0
    %2473 = vmatpush1.msra.mxu0 0.0
    %2474 = vmatprep.subr.mxu0 0.0
    %2475 = vmatpush1.msra.mxu0 0.0
    %2476 = vmatprep.subr.mxu0 0.0
    %2477 = vmatpush1.msra.mxu0 0.0
    %2478 = vmatprep.subr.mxu0 0.0
    %2479 = vmatpush1.msra.mxu0 0.0
    %2480 = vmatprep.subr.mxu0 0.0
    %2481 = vmatpush1.msra.mxu0 0.0
    %2482 = vmatprep.subr.mxu0 0.0
    %2483 = vmatpush1.msra.mxu0 0.0
    %2484 = vmatprep.subr.mxu0 0.0
    %2485 = vmatpush1.msra.mxu0 0.0
    %2486 = vmatprep.subr.mxu0 0.0
    %2487 = vmatpush1.msra.mxu0 0.0
    %2488 = vmatprep.subr.mxu0 0.0
    %2489 = vmatpush1.msra.mxu0 0.0
    %2490 = vmatprep.subr.mxu0 0.0
    %2491 = vmatpush1.msra.mxu0 0.0
    %2492 = vmatprep.subr.mxu0 0.0
    %2493 = vmatpush1.msra.mxu0 0.0
    %2494 = vmatprep.subr.mxu0 0.0
    %2495 = vmatpush1.msra.mxu0 0.0
    %2496 = vmatprep.subr.mxu0 0.0
    %2497 = vmatpush1.msra.mxu0 0.0
    %2498 = vmatprep.subr.mxu0 0.0
    %2499 = vmatpush1.msra.mxu0 0.0
    %2500 = vmatprep.subr.mxu0 0.0
    %2501 = vmatpush1.msra.mxu0 0.0
    %2502 = vmatprep.subr.mxu0 0.0
    %2503 = vmatpush1.msra.mxu0 0.0
    %2504 = vmatprep.subr.mxu0 0.0
    %2505 = vmatpush1.msra.mxu0 0.0
    %2506 = vmatprep.subr.mxu0 0.0
    %2507 = vmatpush1.msra.mxu0 0.0
    %2508 = vmatprep.subr.mxu0 0.0
    %2509 = vmatpush1.msra.mxu0 0.0
    %2510 = vmatprep.subr.mxu0 0.0
    %2511 = vmatpush1.msra.mxu0 0.0
    %2512 = vmatprep.subr.mxu0 0.0
    %2513 = vmatpush1.msra.mxu0 0.0
    %2514 = vmatprep.subr.mxu0 0.0
    %2515 = vmatpush1.msra.mxu0 0.0
    %2516 = vmatprep.subr.mxu0 0.0
    %2517 = vmatpush1.msra.mxu0 0.0
    %2518 = vmatprep.subr.mxu0 0.0
    %2519 = vmatpush1.msra.mxu0 0.0
    %2520 = vmatprep.subr.mxu0 0.0
    %2521 = vmatpush1.msra.mxu0 0.0
    %2522 = vmatprep.subr.mxu0 0.0
    %2523 = vmatpush1.msra.mxu0 0.0
    %2524 = vmatprep.subr.mxu0 0.0
    %2525 = vmatpush1.msra.mxu0 0.0
    %2526 = vmatprep.mubr.f32.mxu0 0.0
    %2527 = vmatmul.mubr.f32.gmra.mrb[0].mxu0 %v2460
    %v2528 = vpop.f32.mrb[0].mxu0
    %v2529 = vadd.f32 %v2453, %v2528
    %v2530 = vpop.f32.mrb[0].mxu0
    %2531 = vdwg.mxu0
    %v2532 = vadd.f32 %v2529, %v591
    %v2533 = vxor.u32 %v2532, 2147483648
    %v2534 = vmul.f32 %v2533, 1.442695
    %v2535 = vpow.pop %v2534
    %v2536 = vadd.f32 %v2535, 1.0
    %v2537 = vrcp.pop %v2536
    %v2538 = vmul.f32 1.0, %v2537
    %v2539 = vtanh.pop %v2532
    %v2540 = vmul.f32 %v2538, %v2273
    %2542 = vrot.lane.b32.xlu0 %v2539, 64
    %v2543 = vpop.permute.xlu0 %2542
    %v2545 = vmul.f32 %v2538, %v2543
    %2547 = vrot.lane.b32.xlu0 %v2545, 32
    %v2548 = vpop.permute.xlu0 %2547
    %v2550 = vadd.f32 %v2540, %v2548
    %v2551 = vtanh.pop %v2550
    %2553 = vrot.lane.b32.xlu0 %v2551, 64
    %v2554 = vpop.permute.xlu0 %2553
    %v2556 = vmul.f32 %v2538, %v2554
    %v2557 = vrot.slane %v898, 7
    %v2559 = vrot.slane %v1175, 6
    %v2561 = vrot.slane %v1452, 5
    %v2563 = vrot.slane %v1725, 4
    %v2565 = vrot.slane %v2002, 3
    %v2567 = vrot.slane %v2279, 2
    %v2569 = vrot.slane %v621, 2
    %v2571 = vrot.slane %v898, 1
    %v2573 = vrot.slane %v1452, 7
    %v2575 = vrot.slane %v1725, 6
    %v2577 = vrot.slane %v2002, 5
    %v2579 = vrot.slane %v2279, 4
    %vm2581 = vcmask 1040384
    %v2582 = vsel %vm2581, %v621, %v2557
    %vm2583 = vcmask 1041408
    %v2584 = vsel %vm2583, %v2582, %v2559
    %vm2585 = vcmask 1042432
    %v2586 = vsel %vm2585, %v2584, %v2561
    %vm2587 = vcmask 1043456
    %v2588 = vsel %vm2587, %v2586, %v2563
    %vm2589 = vcmask 1044480
    %v2590 = vsel %vm2589, %v2588, %v2565
    %vm2591 = vcmask 1045504
    %v2592 = vsel %vm2591, %v2590, %v2567
    %vm2593 = vcmask 1046528
    %v2594 = vsel %vm2593, %v2592, %v2569
    %v2595 = vsel %vm2581, %v2571, %v1175
    %v2596 = vsel %vm2583, %v2595, %v2573
    %v2597 = vsel %vm2585, %v2596, %v2575
    %v2598 = vsel %vm2587, %v2597, %v2577
    %v2599 = vsel %vm2589, %v2598, %v2579
    %v2600 = vld [vmem:[#allocation5] sm:$0xff]
    %v2601 = vld [vmem:[#allocation5 + $0x8] sm:$0xff]
    %v2602 = vld [vmem:[#allocation5 + $0x10] sm:$0xff]
    %v2603 = vld [vmem:[#allocation5 + $0x18] sm:$0xff]
    %2606 = vrot.lane.b32.xlu0 %v2594, 32
    %v2607 = vpop.permute.xlu0 %2606
    %2608 = vrot.lane.b32.xlu0 %v2599, 32
    %v2609 = vpop.permute.xlu0 %2608
    %v2610 = vsel %vm99, %v2607, 0
    %v2612 = vsel %vm99, %v2609, 0
    %2614 = vmatprep.subr.mxu0 0.0
    %2615 = vmatpush1.msra.mxu0 %v2600
    %2616 = vmatprep.subr.mxu0 0.0
    %2617 = vmatpush1.msra.mxu0 %v2601
    %2618 = vmatprep.subr.mxu0 0.0
    %2619 = vmatpush1.msra.mxu0 %v2602
    %2620 = vmatprep.subr.mxu0 0.0
    %2621 = vmatpush1.msra.mxu0 %v2603
    %2622 = vmatprep.subr.mxu0 0.0
    %2623 = vmatpush1.msra.mxu0 0.0
    %2624 = vmatprep.subr.mxu0 0.0
    %2625 = vmatpush1.msra.mxu0 0.0
    %2626 = vmatprep.subr.mxu0 0.0
    %2627 = vmatpush1.msra.mxu0 0.0
    %2628 = vmatprep.subr.mxu0 0.0
    %2629 = vmatpush1.msra.mxu0 0.0
    %2630 = vmatprep.subr.mxu0 0.0
    %2631 = vmatpush1.msra.mxu0 0.0
    %2632 = vmatprep.subr.mxu0 0.0
    %2633 = vmatpush1.msra.mxu0 0.0
    %2634 = vmatprep.subr.mxu0 0.0
    %2635 = vmatpush1.msra.mxu0 0.0
    %2636 = vmatprep.subr.mxu0 0.0
    %2637 = vmatpush1.msra.mxu0 0.0
    %2638 = vmatprep.subr.mxu0 0.0
    %2639 = vmatpush1.msra.mxu0 0.0
    %2640 = vmatprep.subr.mxu0 0.0
    %2641 = vmatpush1.msra.mxu0 0.0
    %2642 = vmatprep.subr.mxu0 0.0
    %2643 = vmatpush1.msra.mxu0 0.0
    %2644 = vmatprep.subr.mxu0 0.0
    %2645 = vmatpush1.msra.mxu0 0.0
    %2646 = vmatprep.subr.mxu0 0.0
    %2647 = vmatpush1.msra.mxu0 0.0
    %2648 = vmatprep.subr.mxu0 0.0
    %2649 = vmatpush1.msra.mxu0 0.0
    %2650 = vmatprep.subr.mxu0 0.0
    %2651 = vmatpush1.msra.mxu0 0.0
    %2652 = vmatprep.subr.mxu0 0.0
    %2653 = vmatpush1.msra.mxu0 0.0
    %2654 = vmatprep.subr.mxu0 0.0
    %2655 = vmatpush1.msra.mxu0 0.0
    %2656 = vmatprep.subr.mxu0 0.0
    %2657 = vmatpush1.msra.mxu0 0.0
    %2658 = vmatprep.subr.mxu0 0.0
    %2659 = vmatpush1.msra.mxu0 0.0
    %2660 = vmatprep.subr.mxu0 0.0
    %2661 = vmatpush1.msra.mxu0 0.0
    %2662 = vmatprep.subr.mxu0 0.0
    %2663 = vmatpush1.msra.mxu0 0.0
    %2664 = vmatprep.subr.mxu0 0.0
    %2665 = vmatpush1.msra.mxu0 0.0
    %2666 = vmatprep.subr.mxu0 0.0
    %2667 = vmatpush1.msra.mxu0 0.0
    %2668 = vmatprep.subr.mxu0 0.0
    %2669 = vmatpush1.msra.mxu0 0.0
    %2670 = vmatprep.subr.mxu0 0.0
    %2671 = vmatpush1.msra.mxu0 0.0
    %2672 = vmatprep.subr.mxu0 0.0
    %2673 = vmatpush1.msra.mxu0 0.0
    %2674 = vmatprep.subr.mxu0 0.0
    %2675 = vmatpush1.msra.mxu0 0.0
    %2676 = vmatprep.subr.mxu0 0.0
    %2677 = vmatpush1.msra.mxu0 0.0
    %2678 = vmatprep.mubr.f32.mxu0 0.0
    %2679 = vmatmul.mubr.f32.gmra.mrb[0].mxu0 %v2610
    %v2680 = vpop.f32.mrb[0].mxu0
    %v2681 = vadd.f32 0.0, %v2680
    %v2682 = vpop.f32.mrb[0].mxu0
    %2683 = vmatprep.mubr.f32.mxu0 0.0
    %2684 = vmatmul.mubr.f32.gmra.mrb[0].mxu0 %v2612
    %v2685 = vpop.f32.mrb[0].mxu0
    %v2686 = vadd.f32 0.0, %v2685
    %v2687 = vpop.f32.mrb[0].mxu0
    %2688 = vdwg.mxu0
    %2689 = vst.msk [vmem:[#allocation7] sm:$0xff] %vm236, %v2681
    %vm2690 = vcmask 521216
    %2691 = vst.msk [vmem:[#allocation7 + $0x8] sm:$0x3f] %vm2690, %v2686
    %2692 = vrot.lane.b32.xlu0 %v2380, 32
    %v2693 = vpop.permute.xlu0 %2692
    %vm2695 = vcmask 261126
    %2696 = vst.msk [vmem:[#allocation8 - $0x6] sm:$0xc0] %vm2695, %v2693
    %2698 = vrot.lane.b32.xlu0 %v2374, 96
    %v2699 = vpop.permute.xlu0 %2698
    %2701 = vst.msk [vmem:[#allocation10 - $0x6] sm:$0xc0] %vm2695, %v2699
    %2703 = vrot.lane.b32.xlu0 %v2556, 32
    %v2704 = vpop.permute.xlu0 %2703
    %s2706 = scalar_lea.vmem [#allocation8], 2
    %vm2707 = vcmask 254976
    %2708 = vst.msk [vmem:[%s2706] sm:$0x3] %vm2707, %v2704
    %2710 = vrot.lane.b32.xlu0 %v2550, 96
    %v2711 = vpop.permute.xlu0 %2710
    %s2713 = scalar_lea.vmem [#allocation10], 2
    %2714 = vst.msk [vmem:[%s2713] sm:$0x3] %vm2707, %v2711
    // Predicated region
    $region54: #{rnn_model_forward.1} parent=1 // pred_check
      _
    $region55: #{rnn_model_forward.1} parent=1 // pred_check_branch
      %2716 = sbr.rel (0) target = $region57
    $region56: #{rnn_model_forward.1} parent=1 // pred_region
      %s2718 = ssub.s32 256, 256
      %2719 = vsyncadd [#allocation4], %s2718
      %s2720 = sshll.u32 [#allocation7], 4
      %s2721 = int_to_ptr.vmem [resolvable:$true] %s2720
      %2726 = dma.vmem_to_hbm [thread:$0]  %s2721, 256, %s11, [#allocation4], 128, 128, 8
    $region57: #{rnn_model_forward.1} parent=1 // pred_fallthru
      _
    // Predicated region
    $region58: #{rnn_model_forward.1} parent=1 // pred_check
      _
    $region59: #{rnn_model_forward.1} parent=1 // pred_check_branch
      %2728 = sbr.rel (0) target = $region61
    $region60: #{rnn_model_forward.1} parent=1 // pred_region
      %s2730 = ssub.s32 64, 64
      %2731 = vsyncadd [#allocation9], %s2730
      %s2732 = sshll.u32 [#allocation8], 4
      %s2733 = int_to_ptr.vmem [resolvable:$true] %s2732
      %2738 = dma.vmem_to_hbm [thread:$0]  %s2733, 64, %s12, [#allocation9], 32, 32, 2
    $region61: #{rnn_model_forward.1} parent=1 // pred_fallthru
      _
    // Predicated region
    $region62: #{rnn_model_forward.1} parent=1 // pred_check
      _
    $region63: #{rnn_model_forward.1} parent=1 // pred_check_branch
      %2740 = sbr.rel (0) target = $region65
    $region64: #{rnn_model_forward.1} parent=1 // pred_region
      %s2742 = ssub.s32 64, 64
      %2743 = vsyncadd [#allocation9], %s2742
      %s2744 = sshll.u32 [#allocation10], 4
      %s2745 = int_to_ptr.vmem [resolvable:$true] %s2744
      %2750 = dma.vmem_to_hbm [thread:$0]  %s2745, 64, %s13, [#allocation9], 32, 32, 2
    $region65: #{rnn_model_forward.1} parent=1 // pred_fallthru
      _
    // Predicated region
    $region66: #{rnn_model_forward.1} parent=1 // pred_check
      _
    $region67: #{rnn_model_forward.1} parent=1 // pred_check_branch
      %2752 = sbr.rel (0) target = $region69
    $region68: #{rnn_model_forward.1} parent=1 // pred_region
      %2753 = dma.done [#allocation4], 256
    $region69: #{rnn_model_forward.1} parent=1 // pred_fallthru
      _
    // Predicated region
    $region70: #{rnn_model_forward.1} parent=1 // pred_check
      _
    $region71: #{rnn_model_forward.1} parent=1 // pred_check_branch
      %2755 = sbr.rel (0) target = $region73
    $region72: #{rnn_model_forward.1} parent=1 // pred_region
      %2756 = dma.done [#allocation9], 64
    $region73: #{rnn_model_forward.1} parent=1 // pred_fallthru
      _
    // Predicated region
    $region74: #{rnn_model_forward.1} parent=1 // pred_check
      _
    $region75: #{rnn_model_forward.1} parent=1 // pred_check_branch
      %2758 = sbr.rel (0) target = $region77
    $region76: #{rnn_model_forward.1} parent=1 // pred_region
      %2759 = dma.done [#allocation9], 64
    $region77: #{rnn_model_forward.1} parent=1 // pred_fallthru
      _
    %2760 = vsyncpa [#allocation3], 1
    %2761 = vsyncpa [#allocation6], 1
    %2762 = vsyncpa [#allocation4], 1
    %2763 = vsyncpa [#allocation9], 1

</llo_original>
